<compile_context>
chip_gen: v7x
topology: tpu7x:2x2x1
jax: 0.10.0
libtpu: 0.0.40
codegen_flags: <defaults>
</compile_context>

<pallas_src>
import math

import jax
import jax.numpy as jnp
from jax.experimental import pallas as pl
from jax.experimental.pallas import tpu as pltpu

# ----------------------------- hyper-parameters -----------------------------
B = 2        # batch
S = 8        # source sequence length
T = 8        # target sequence length
E = 32       # embedding dim (valid)
C = 32       # conv channel dim (valid)
V = 64       # vocab size (valid)
K = 3        # conv kernel width
ENC_LAYERS = 2
DEC_LAYERS = 2
MAX_POS = 16

# lane-padded dims (everything padded with zeros to 128 lanes)
EP = 128                 # padded embedding lanes
CP = 128                 # padded conv-channel lanes
VP = 128                 # padded vocab lanes
TWO_CP = 2 * CP          # GLU conv output: 'a' half in [0,CP), 'g' half in [CP,2CP)

MXU_DT = jnp.bfloat16    # MXU operand dtype (accumulation stays f32)
SQRT_HALF = math.sqrt(0.5)


# ------------------------------- fused kernel -------------------------------
def _fconv_kernel(src_emb_ref, src_mask_bc_ref, src_mask_row_ref, tgt_emb_ref,
                  efc1_w_ref, efc1_b_ref, econv_w_ref, econv_b_ref,
                  efc2_w_ref, efc2_b_ref,
                  dfc1_w_ref, dfc1_b_ref, dconv_w_ref, dconv_b_ref,
                  ain_w_ref, ain_b_ref, aout_w_ref, aout_b_ref,
                  dout_w_ref, dout_b_ref,
                  pred_ref, attn_ref,
                  xpad_e_ref, slab_e_ref, xpad_d_ref, slab_d_ref):
    f32 = jnp.float32

    def mm(a, b):
        # bf16 MXU operands, f32 accumulation.
        return jnp.dot(a.astype(MXU_DT), b.astype(MXU_DT),
                       preferred_element_type=f32)

    # ------------------------------- encoder -------------------------------
    src_emb = src_emb_ref[...]                       # (S, EP), already masked
    src_mask = src_mask_bc_ref[...]                  # (S, EP)
    x = mm(src_emb, efc1_w_ref[...]) + efc1_b_ref[...]    # fc1: (S, CP)

    pad_l = (K - 1) // 2                             # "same" conv left padding
    xpad_e_ref[...] = jnp.zeros_like(xpad_e_ref)
    for l in range(ENC_LAYERS):
        residual = x
        xpad_e_ref[pad_l:pad_l + S, :] = x * src_mask
        for j in range(K):                           # im2col slab (S, K*CP)
            slab_e_ref[:, j * CP:(j + 1) * CP] = xpad_e_ref[j:j + S, :]
        conv = mm(slab_e_ref[...], econv_w_ref[l]) + econv_b_ref[l]   # (S, 2CP)
        a, g = conv[:, :CP], conv[:, CP:]
        glu = a * pl.reciprocal(1.0 + jnp.exp(-g), approx=True)       # GLU
        x = (glu + residual) * SQRT_HALF
    enc_x = mm(x, efc2_w_ref[...]) + efc2_b_ref[...]                  # fc2: (S, EP)
    enc_x = enc_x * src_mask
    enc_y = (enc_x + src_emb) * SQRT_HALF
    enc_y = enc_y * src_mask
    enc_x16 = enc_x.astype(MXU_DT)
    enc_y16 = enc_y.astype(MXU_DT)

    # per-example attention rescale: s * rsqrt(s)
    mask_row = src_mask_row_ref[0]                   # (1, S)
    n_valid = jnp.sum(mask_row)
    scale = n_valid * jax.lax.rsqrt(jnp.maximum(n_valid, 1.0))

    # ------------------------------- decoder -------------------------------
    tgt_emb = tgt_emb_ref[...]                       # (T, EP), already masked
    x = mm(tgt_emb, dfc1_w_ref[...]) + dfc1_b_ref[...]                # (T, CP)

    attn_sum = jnp.zeros((T, S), f32)
    xpad_d_ref[...] = jnp.zeros_like(xpad_d_ref)
    for l in range(DEC_LAYERS):
        residual = x
        xpad_d_ref[K - 1:K - 1 + T, :] = x           # causal (left) padding
        for j in range(K):
            slab_d_ref[:, j * CP:(j + 1) * CP] = xpad_d_ref[j:j + T, :]
        conv = mm(slab_d_ref[...], dconv_w_ref[l]) + dconv_b_ref[l]   # (T, 2CP)
        a, g = conv[:, :CP], conv[:, CP:]
        x = a * pl.reciprocal(1.0 + jnp.exp(-g), approx=True)         # GLU

        # attention block
        attn_res = x
        q = mm(x, ain_w_ref[l]) + ain_b_ref[l]                        # (T, EP)
        q = (q + tgt_emb) * SQRT_HALF
        s = jax.lax.dot_general(                                      # q @ enc_x^T
            q.astype(MXU_DT), enc_x16,
            (((1,), (1,)), ((), ())), preferred_element_type=f32)     # (T, S)
        s = jnp.where(mask_row > 0.5, s, -1e30)
        s = s - jnp.max(s, axis=-1, keepdims=True)
        e = jnp.exp(s)
        p = e * pl.reciprocal(jnp.sum(e, axis=-1, keepdims=True), approx=True)
        attn_sum = attn_sum + p
        o = mm(p, enc_y16) * scale                                    # (T, EP)
        a_lin = mm(o, aout_w_ref[l]) + aout_b_ref[l]                  # (T, CP)
        x = (a_lin + attn_res) * SQRT_HALF
        x = (x + residual) * SQRT_HALF

    attn_ref[...] = attn_sum * (1.0 / DEC_LAYERS)
    # fused fc2 @ fc3 projection C -> V (folded at init time)
    pred_ref[...] = mm(x, dout_w_ref[...]) + dout_b_ref[...]


# ------------------------------ parameter setup ------------------------------
def _normal(key, shape, std):
    return std * jax.random.normal(key, shape, dtype=jnp.float32)


def _pad2(w, rows, cols):
    out = jnp.zeros((rows, cols), jnp.float32)
    return out.at[:w.shape[0], :w.shape[1]].set(w)


def init_params(seed=0):
    key = jax.random.PRNGKey(seed)
    keys = iter(jax.random.split(key, 64))

    def lin(in_d, out_d, in_p, out_p):
        std = math.sqrt(1.0 / in_d)
        w = _normal(next(keys), (in_d, out_d), std)
        b = jnp.zeros((1, out_d), jnp.float32)
        return _pad2(w, in_p, out_p), _pad2(b, 1, out_p)

    def conv_glu_w(in_d, half, k):
        # conv weight (k, in, 2*half) repacked to an im2col layout (k*CP, 2*CP):
        # 'a' half outputs in lanes [0,CP), 'g' half in [CP, 2*CP), zeros elsewhere.
        std = math.sqrt(4.0 / (k * in_d))
        w = _normal(next(keys), (k, in_d, 2 * half), std)
        wp = jnp.zeros((k, CP, TWO_CP), jnp.float32)
        wp = wp.at[:, :in_d, :half].set(w[:, :, :half])
        wp = wp.at[:, :in_d, CP:CP + half].set(w[:, :, half:])
        bp = jnp.zeros((1, TWO_CP), jnp.float32)
        return wp.reshape(k * CP, TWO_CP), bp

    # ----------------------------- encoder params -----------------------------
    enc_embed = _pad2(_normal(next(keys), (V, E), 0.1), V, EP)
    enc_pos = _pad2(_normal(next(keys), (MAX_POS, E), 0.1), MAX_POS, EP)
    efc1_w, efc1_b = lin(E, C, EP, CP)
    econvs = [conv_glu_w(C, C, K) for _ in range(ENC_LAYERS)]
    efc2_w, efc2_b = lin(C, E, CP, EP)

    # ----------------------------- decoder params -----------------------------
    dec_embed = _pad2(_normal(next(keys), (V, E), 0.1), V, EP)
    dec_pos = _pad2(_normal(next(keys), (MAX_POS, E), 0.1), MAX_POS, EP)
    dfc1_w, dfc1_b = lin(E, C, EP, CP)
    dlayers = []
    for _ in range(DEC_LAYERS):
        cw, cb = conv_glu_w(C, C, K)
        aiw, aib = lin(C, E, CP, EP)
        aow, aob = lin(E, C, EP, CP)
        dlayers.append((cw, cb, aiw, aib, aow, aob))
    dfc2_w, dfc2_b = lin(C, E, CP, EP)
    dfc3_w, dfc3_b = lin(E, V, EP, VP)
    # fold fc2 and fc3 (no nonlinearity in between): W = W2 @ W3, b = b2 @ W3 + b3
    dout_w = dfc2_w @ dfc3_w
    dout_b = dfc2_b @ dfc3_w + dfc3_b

    enc = {
        'embed': enc_embed, 'pos': enc_pos,
        'fc1': {'w': efc1_w.astype(MXU_DT), 'b': efc1_b},
        'conv_w': jnp.stack([c[0] for c in econvs]).astype(MXU_DT),
        'conv_b': jnp.stack([c[1] for c in econvs]),
        'fc2': {'w': efc2_w.astype(MXU_DT), 'b': efc2_b},
    }
    dec = {
        'embed': dec_embed, 'pos': dec_pos,
        'fc1': {'w': dfc1_w.astype(MXU_DT), 'b': dfc1_b},
        'conv_w': jnp.stack([l[0] for l in dlayers]).astype(MXU_DT),
        'conv_b': jnp.stack([l[1] for l in dlayers]),
        'attn_in_w': jnp.stack([l[2] for l in dlayers]).astype(MXU_DT),
        'attn_in_b': jnp.stack([l[3] for l in dlayers]),
        'attn_out_w': jnp.stack([l[4] for l in dlayers]).astype(MXU_DT),
        'attn_out_b': jnp.stack([l[5] for l in dlayers]),
        'out': {'w': dout_w.astype(MXU_DT), 'b': dout_b},
    }
    return {'enc': enc, 'dec': dec}


# ------------------------------ model forward --------------------------------
def fconv_forward(params, src_tokens, src_mask, prev_output_tokens, trg_mask):
    Bb, Ss = src_tokens.shape
    Tt = prev_output_tokens.shape[1]
    enc, dec = params['enc'], params['dec']

    # glue: embedding gather + positional embedding + padding mask (plain JAX)
    src_emb = (enc['embed'][src_tokens] + enc['pos'][:Ss][None]) * src_mask[..., None]
    tgt_emb = (dec['embed'][prev_output_tokens] + dec['pos'][:Tt][None]) * trg_mask[..., None]
    src_emb = src_emb.reshape(Bb * Ss, EP)
    tgt_emb = tgt_emb.reshape(Bb * Tt, EP)
    src_mask_bc = jnp.broadcast_to(src_mask[:, :, None], (Bb, Ss, EP)).reshape(Bb * Ss, EP)
    src_mask_row = src_mask.reshape(Bb, 1, Ss)

    row_s = pl.BlockSpec((Ss, EP), lambda b: (b, 0))
    row_t = pl.BlockSpec((Tt, EP), lambda b: (b, 0))

    def rep2(shape):
        return pl.BlockSpec(shape, lambda b: (0, 0))

    def rep3(shape):
        return pl.BlockSpec(shape, lambda b: (0, 0, 0))

    pred_flat, attn_flat = pl.pallas_call(
        _fconv_kernel,
        grid=(Bb,),
        in_specs=[
            row_s,                                              # src_emb
            row_s,                                              # src_mask (bcast over lanes)
            pl.BlockSpec((1, 1, Ss), lambda b: (b, 0, 0)),      # src_mask (per-row, attn)
            row_t,                                              # tgt_emb
            rep2((EP, CP)), rep2((1, CP)),                      # enc fc1
            rep3((ENC_LAYERS, K * CP, TWO_CP)),
            rep3((ENC_LAYERS, 1, TWO_CP)),                      # enc convs
            rep2((CP, EP)), rep2((1, EP)),                      # enc fc2
            rep2((EP, CP)), rep2((1, CP)),                      # dec fc1
            rep3((DEC_LAYERS, K * CP, TWO_CP)),
            rep3((DEC_LAYERS, 1, TWO_CP)),                      # dec convs
            rep3((DEC_LAYERS, CP, EP)), rep3((DEC_LAYERS, 1, EP)),   # attn_in
            rep3((DEC_LAYERS, EP, CP)), rep3((DEC_LAYERS, 1, CP)),   # attn_out
            rep2((CP, VP)), rep2((1, VP)),                      # fused fc2@fc3
        ],
        out_specs=(
            pl.BlockSpec((Tt, VP), lambda b: (b, 0)),           # logits (lane-dense 128)
            pl.BlockSpec((Tt, Ss), lambda b: (b, 0)),           # avg attention scores
        ),
        out_shape=(
            jax.ShapeDtypeStruct((Bb * Tt, VP), jnp.float32),
            jax.ShapeDtypeStruct((Bb * Tt, Ss), jnp.float32),
        ),
        scratch_shapes=[
            pltpu.VMEM((Ss + K - 1, CP), jnp.float32),          # encoder conv pad buffer
            pltpu.VMEM((Ss, K * CP), jnp.float32),              # encoder im2col slab
            pltpu.VMEM((Tt + K - 1, CP), jnp.float32),          # decoder conv pad buffer
            pltpu.VMEM((Tt, K * CP), jnp.float32),              # decoder im2col slab
        ],
        compiler_params=pltpu.CompilerParams(
            dimension_semantics=("parallel",)),                 # shard batch over TCs (v7x)
    )(src_emb, src_mask_bc, src_mask_row, tgt_emb,
      enc['fc1']['w'], enc['fc1']['b'],
      enc['conv_w'], enc['conv_b'],
      enc['fc2']['w'], enc['fc2']['b'],
      dec['fc1']['w'], dec['fc1']['b'],
      dec['conv_w'], dec['conv_b'],
      dec['attn_in_w'], dec['attn_in_b'],
      dec['attn_out_w'], dec['attn_out_b'],
      dec['out']['w'], dec['out']['b'])

    pred = pred_flat.reshape(Bb, Tt, VP)[:, :, :V]              # drop vocab lane padding
    attn_score = attn_flat.reshape(Bb, Tt, Ss)
    return pred, attn_score


# ----------------------------------- main -------------------------------------
if __name__ == "__main__":
    params = init_params(seed=0)

    key = jax.random.PRNGKey(0)
    k1, k2 = jax.random.split(key)
    src_tokens = jax.random.randint(k1, (B, S), 0, V, dtype=jnp.int32)
    prev_output_tokens = jax.random.randint(k2, (B, T), 0, V, dtype=jnp.int32)

    # simple padding masks: batch 0 fully valid, batch 1 has padded trailing positions
    src_mask = jnp.ones((B, S), jnp.float32).at[1, S - 2:].set(0.0)
    trg_mask = jnp.ones((B, T), jnp.float32).at[1, T - 1:].set(0.0)

    fwd = jax.jit(fconv_forward)
    pred, attn_score = fwd(params, src_tokens, src_mask, prev_output_tokens, trg_mask)
    jax.block_until_ready((pred, attn_score))

    assert pred.shape == (B, T, V), pred.shape
    assert attn_score.shape == (B, T, S), attn_score.shape
    assert bool(jnp.all(jnp.isfinite(pred))) and bool(jnp.all(jnp.isfinite(attn_score)))
    print("KERNEL_OK")
</pallas_src>

<mosaic_0001>
module attributes {stable_mosaic.version = 11 : i64} {
  func.func @_fconv_kernel(%arg0: i32, %arg1: memref<8x128xf32, #tpu.memory_space<vmem>>, %arg2: memref<8x128xf32, #tpu.memory_space<vmem>>, %arg3: memref<1x1x8xf32, #tpu.memory_space<vmem>>, %arg4: memref<8x128xf32, #tpu.memory_space<vmem>>, %arg5: memref<128x128xbf16, #tpu.memory_space<vmem>>, %arg6: memref<1x128xf32, #tpu.memory_space<vmem>>, %arg7: memref<2x384x256xbf16, #tpu.memory_space<vmem>>, %arg8: memref<2x1x256xf32, #tpu.memory_space<vmem>>, %arg9: memref<128x128xbf16, #tpu.memory_space<vmem>>, %arg10: memref<1x128xf32, #tpu.memory_space<vmem>>, %arg11: memref<128x128xbf16, #tpu.memory_space<vmem>>, %arg12: memref<1x128xf32, #tpu.memory_space<vmem>>, %arg13: memref<2x384x256xbf16, #tpu.memory_space<vmem>>, %arg14: memref<2x1x256xf32, #tpu.memory_space<vmem>>, %arg15: memref<2x128x128xbf16, #tpu.memory_space<vmem>>, %arg16: memref<2x1x128xf32, #tpu.memory_space<vmem>>, %arg17: memref<2x128x128xbf16, #tpu.memory_space<vmem>>, %arg18: memref<2x1x128xf32, #tpu.memory_space<vmem>>, %arg19: memref<128x128xbf16, #tpu.memory_space<vmem>>, %arg20: memref<1x128xf32, #tpu.memory_space<vmem>>, %arg21: memref<8x128xf32, #tpu.memory_space<vmem>>, %arg22: memref<8x8xf32, #tpu.memory_space<vmem>>, %arg23: memref<10x128xf32, #tpu.memory_space<vmem>>, %arg24: memref<8x384xf32, #tpu.memory_space<vmem>>, %arg25: memref<10x128xf32, #tpu.memory_space<vmem>>, %arg26: memref<8x384xf32, #tpu.memory_space<vmem>>) attributes {dimension_semantics = [#tpu.dimension_semantics<parallel>], iteration_bounds = array<i64: 2>, scalar_prefetch = 0 : i64, scratch_operands = 4 : i64, tpu.core_type = #tpu.core_type<tc>, window_params = [{transform_indices = @transform_0, window_bounds = array<i64: 8, 128>}, {transform_indices = @transform_1, window_bounds = array<i64: 8, 128>}, {transform_indices = @transform_2, window_bounds = array<i64: 1, 1, 8>}, {transform_indices = @transform_3, window_bounds = array<i64: 8, 128>}, {pipeline_mode = #tpu.pipeline_mode<synchronous>, transform_indices = @transform_4, window_bounds = array<i64: 128, 128>}, {pipeline_mode = #tpu.pipeline_mode<synchronous>, transform_indices = @transform_5, window_bounds = array<i64: 1, 128>}, {pipeline_mode = #tpu.pipeline_mode<synchronous>, transform_indices = @transform_6, window_bounds = array<i64: 2, 384, 256>}, {pipeline_mode = #tpu.pipeline_mode<synchronous>, transform_indices = @transform_7, window_bounds = array<i64: 2, 1, 256>}, {pipeline_mode = #tpu.pipeline_mode<synchronous>, transform_indices = @transform_8, window_bounds = array<i64: 128, 128>}, {pipeline_mode = #tpu.pipeline_mode<synchronous>, transform_indices = @transform_9, window_bounds = array<i64: 1, 128>}, {pipeline_mode = #tpu.pipeline_mode<synchronous>, transform_indices = @transform_10, window_bounds = array<i64: 128, 128>}, {pipeline_mode = #tpu.pipeline_mode<synchronous>, transform_indices = @transform_11, window_bounds = array<i64: 1, 128>}, {pipeline_mode = #tpu.pipeline_mode<synchronous>, transform_indices = @transform_12, window_bounds = array<i64: 2, 384, 256>}, {pipeline_mode = #tpu.pipeline_mode<synchronous>, transform_indices = @transform_13, window_bounds = array<i64: 2, 1, 256>}, {pipeline_mode = #tpu.pipeline_mode<synchronous>, transform_indices = @transform_14, window_bounds = array<i64: 2, 128, 128>}, {pipeline_mode = #tpu.pipeline_mode<synchronous>, transform_indices = @transform_15, window_bounds = array<i64: 2, 1, 128>}, {pipeline_mode = #tpu.pipeline_mode<synchronous>, transform_indices = @transform_16, window_bounds = array<i64: 2, 128, 128>}, {pipeline_mode = #tpu.pipeline_mode<synchronous>, transform_indices = @transform_17, window_bounds = array<i64: 2, 1, 128>}, {pipeline_mode = #tpu.pipeline_mode<synchronous>, transform_indices = @transform_18, window_bounds = array<i64: 128, 128>}, {pipeline_mode = #tpu.pipeline_mode<synchronous>, transform_indices = @transform_19, window_bounds = array<i64: 1, 128>}, {transform_indices = @transform_20, window_bounds = array<i64: 8, 128>}, {transform_indices = @transform_21, window_bounds = array<i64: 8, 8>}]} {
    %c0 = arith.constant 0 : index
    %c0_0 = arith.constant 0 : index
    %0 = vector.load %arg1[%c0, %c0_0] : memref<8x128xf32, #tpu.memory_space<vmem>>, vector<8x128xf32>
    %c0_1 = arith.constant 0 : index
    %c0_2 = arith.constant 0 : index
    %1 = vector.load %arg2[%c0_1, %c0_2] : memref<8x128xf32, #tpu.memory_space<vmem>>, vector<8x128xf32>
    %c0_3 = arith.constant 0 : index
    %c0_4 = arith.constant 0 : index
    %2 = vector.load %arg5[%c0_3, %c0_4] : memref<128x128xbf16, #tpu.memory_space<vmem>>, vector<128x128xbf16>
    %3 = arith.truncf %0 : vector<8x128xf32> to vector<8x128xbf16>
    %cst = arith.constant dense<0.000000e+00> : vector<8x128xf32>
    %4 = tpu.matmul %3, %2, %cst {dimension_numbers = #tpu.dot_dimension_numbers<[1], [0], [0], [1], [0, 0, 1, 1], [], []>} : vector<8x128xbf16>, vector<128x128xbf16>, vector<8x128xf32> -> vector<8x128xf32>
    %c0_5 = arith.constant 0 : index
    %c0_6 = arith.constant 0 : index
    %5 = vector.load %arg6[%c0_5, %c0_6] : memref<1x128xf32, #tpu.memory_space<vmem>>, vector<1x128xf32>
    %6 = vector.broadcast %5 : vector<1x128xf32> to vector<8x128xf32>
    %7 = arith.addf %4, %6 : vector<8x128xf32>
    %cst_7 = arith.constant 0.000000e+00 : f32
    %8 = vector.broadcast %cst_7 : f32 to vector<10x128xf32>
    %c0_8 = arith.constant 0 : index
    %c0_9 = arith.constant 0 : index
    %9 = vector.load %arg23[%c0_8, %c0_9] : memref<10x128xf32, #tpu.memory_space<vmem>>, vector<10x128xf32>
    tpu.vector_store %arg23[%c0_8, %c0_9], %8 {strides = array<i32>} : memref<10x128xf32, #tpu.memory_space<vmem>>, vector<10x128xf32>,
    %10 = arith.mulf %7, %1 : vector<8x128xf32>
    %c1 = arith.constant 1 : index
    %c0_10 = arith.constant 0 : index
    %11 = vector.load %arg23[%c1, %c0_10] : memref<10x128xf32, #tpu.memory_space<vmem>>, vector<8x128xf32>
    tpu.vector_store %arg23[%c1, %c0_10], %10 {strides = array<i32>} : memref<10x128xf32, #tpu.memory_space<vmem>>, vector<8x128xf32>,
    %c0_11 = arith.constant 0 : index
    %c0_12 = arith.constant 0 : index
    %12 = vector.load %arg23[%c0_11, %c0_12] : memref<10x128xf32, #tpu.memory_space<vmem>>, vector<8x128xf32>
    %c0_13 = arith.constant 0 : index
    %c0_14 = arith.constant 0 : index
    %13 = vector.load %arg24[%c0_13, %c0_14] : memref<8x384xf32, #tpu.memory_space<vmem>>, vector<8x128xf32>
    tpu.vector_store %arg24[%c0_13, %c0_14], %12 {strides = array<i32>} : memref<8x384xf32, #tpu.memory_space<vmem>>, vector<8x128xf32>,
    %c1_15 = arith.constant 1 : index
    %c0_16 = arith.constant 0 : index
    %14 = vector.load %arg23[%c1_15, %c0_16] : memref<10x128xf32, #tpu.memory_space<vmem>>, vector<8x128xf32>
    %c0_17 = arith.constant 0 : index
    %c128 = arith.constant 128 : index
    %15 = vector.load %arg24[%c0_17, %c128] : memref<8x384xf32, #tpu.memory_space<vmem>>, vector<8x128xf32>
    tpu.vector_store %arg24[%c0_17, %c128], %14 {strides = array<i32>} : memref<8x384xf32, #tpu.memory_space<vmem>>, vector<8x128xf32>,
    %c2 = arith.constant 2 : index
    %c0_18 = arith.constant 0 : index
    %16 = vector.load %arg23[%c2, %c0_18] : memref<10x128xf32, #tpu.memory_space<vmem>>, vector<8x128xf32>
    %c0_19 = arith.constant 0 : index
    %c256 = arith.constant 256 : index
    %17 = vector.load %arg24[%c0_19, %c256] : memref<8x384xf32, #tpu.memory_space<vmem>>, vector<8x128xf32>
    tpu.vector_store %arg24[%c0_19, %c256], %16 {strides = array<i32>} : memref<8x384xf32, #tpu.memory_space<vmem>>, vector<8x128xf32>,
    %c0_20 = arith.constant 0 : index
    %c0_21 = arith.constant 0 : index
    %18 = vector.load %arg24[%c0_20, %c0_21] : memref<8x384xf32, #tpu.memory_space<vmem>>, vector<8x384xf32>
    %c0_22 = arith.constant 0 : index
    %c0_23 = arith.constant 0 : index
    %c0_24 = arith.constant 0 : index
    %19 = vector.load %arg7[%c0_22, %c0_23, %c0_24] : memref<2x384x256xbf16, #tpu.memory_space<vmem>>, vector<1x384x256xbf16>
    %20 = vector.shape_cast %19 : vector<1x384x256xbf16> to vector<384x256xbf16>
    %21 = arith.truncf %18 : vector<8x384xf32> to vector<8x384xbf16>
    %cst_25 = arith.constant dense<0.000000e+00> : vector<8x256xf32>
    %22 = tpu.matmul %21, %20, %cst_25 {dimension_numbers = #tpu.dot_dimension_numbers<[1], [0], [0], [1], [0, 0, 1, 1], [], []>} : vector<8x384xbf16>, vector<384x256xbf16>, vector<8x256xf32> -> vector<8x256xf32>
    %c0_26 = arith.constant 0 : index
    %c0_27 = arith.constant 0 : index
    %c0_28 = arith.constant 0 : index
    %23 = vector.load %arg8[%c0_26, %c0_27, %c0_28] : memref<2x1x256xf32, #tpu.memory_space<vmem>>, vector<1x1x256xf32>
    %24 = vector.shape_cast %23 : vector<1x1x256xf32> to vector<1x256xf32>
    %25 = vector.broadcast %24 : vector<1x256xf32> to vector<8x256xf32>
    %26 = arith.addf %22, %25 : vector<8x256xf32>
    %27 = vector.extract_strided_slice %26 {offsets = [0, 0], sizes = [8, 128], strides = [1, 1]} : vector<8x256xf32> to vector<8x128xf32>
    %28 = vector.extract_strided_slice %26 {offsets = [0, 128], sizes = [8, 128], strides = [1, 1]} : vector<8x256xf32> to vector<8x128xf32>
    %cst_29 = arith.constant 0.000000e+00 : f32
    %29 = vector.broadcast %cst_29 : f32 to vector<8x128xf32>
    %30 = arith.subf %29, %28 : vector<8x128xf32>
    %31 = math.exp %30 : vector<8x128xf32>
    %cst_30 = arith.constant 1.000000e+00 : f32
    %32 = vector.broadcast %cst_30 : f32 to vector<8x128xf32>
    %33 = arith.addf %32, %31 : vector<8x128xf32>
    %34 = tpu.reciprocal %33 {approx = true} : vector<8x128xf32> -> vector<8x128xf32>
    %35 = arith.mulf %27, %34 : vector<8x128xf32>
    %36 = arith.addf %35, %7 : vector<8x128xf32>
    %cst_31 = arith.constant 0.707106769 : f32
    %37 = vector.broadcast %cst_31 : f32 to vector<8x128xf32>
    %38 = arith.mulf %36, %37 : vector<8x128xf32>
    %39 = arith.mulf %38, %1 : vector<8x128xf32>
    %c1_32 = arith.constant 1 : index
    %c0_33 = arith.constant 0 : index
    %40 = vector.load %arg23[%c1_32, %c0_33] : memref<10x128xf32, #tpu.memory_space<vmem>>, vector<8x128xf32>
    tpu.vector_store %arg23[%c1_32, %c0_33], %39 {strides = array<i32>} : memref<10x128xf32, #tpu.memory_space<vmem>>, vector<8x128xf32>,
    %c0_34 = arith.constant 0 : index
    %c0_35 = arith.constant 0 : index
    %41 = vector.load %arg23[%c0_34, %c0_35] : memref<10x128xf32, #tpu.memory_space<vmem>>, vector<8x128xf32>
    %c0_36 = arith.constant 0 : index
    %c0_37 = arith.constant 0 : index
    %42 = vector.load %arg24[%c0_36, %c0_37] : memref<8x384xf32, #tpu.memory_space<vmem>>, vector<8x128xf32>
    tpu.vector_store %arg24[%c0_36, %c0_37], %41 {strides = array<i32>} : memref<8x384xf32, #tpu.memory_space<vmem>>, vector<8x128xf32>,
    %c1_38 = arith.constant 1 : index
    %c0_39 = arith.constant 0 : index
    %43 = vector.load %arg23[%c1_38, %c0_39] : memref<10x128xf32, #tpu.memory_space<vmem>>, vector<8x128xf32>
    %c0_40 = arith.constant 0 : index
    %c128_41 = arith.constant 128 : index
    %44 = vector.load %arg24[%c0_40, %c128_41] : memref<8x384xf32, #tpu.memory_space<vmem>>, vector<8x128xf32>
    tpu.vector_store %arg24[%c0_40, %c128_41], %43 {strides = array<i32>} : memref<8x384xf32, #tpu.memory_space<vmem>>, vector<8x128xf32>,
    %c2_42 = arith.constant 2 : index
    %c0_43 = arith.constant 0 : index
    %45 = vector.load %arg23[%c2_42, %c0_43] : memref<10x128xf32, #tpu.memory_space<vmem>>, vector<8x128xf32>
    %c0_44 = arith.constant 0 : index
    %c256_45 = arith.constant 256 : index
    %46 = vector.load %arg24[%c0_44, %c256_45] : memref<8x384xf32, #tpu.memory_space<vmem>>, vector<8x128xf32>
    tpu.vector_store %arg24[%c0_44, %c256_45], %45 {strides = array<i32>} : memref<8x384xf32, #tpu.memory_space<vmem>>, vector<8x128xf32>,
    %c0_46 = arith.constant 0 : index
    %c0_47 = arith.constant 0 : index
    %47 = vector.load %arg24[%c0_46, %c0_47] : memref<8x384xf32, #tpu.memory_space<vmem>>, vector<8x384xf32>
    %c1_48 = arith.constant 1 : index
    %c0_49 = arith.constant 0 : index
    %c0_50 = arith.constant 0 : index
    %48 = vector.load %arg7[%c1_48, %c0_49, %c0_50] : memref<2x384x256xbf16, #tpu.memory_space<vmem>>, vector<1x384x256xbf16>
    %49 = vector.shape_cast %48 : vector<1x384x256xbf16> to vector<384x256xbf16>
    %50 = arith.truncf %47 : vector<8x384xf32> to vector<8x384xbf16>
    %cst_51 = arith.constant dense<0.000000e+00> : vector<8x256xf32>
    %51 = tpu.matmul %50, %49, %cst_51 {dimension_numbers = #tpu.dot_dimension_numbers<[1], [0], [0], [1], [0, 0, 1, 1], [], []>} : vector<8x384xbf16>, vector<384x256xbf16>, vector<8x256xf32> -> vector<8x256xf32>
    %c1_52 = arith.constant 1 : index
    %c0_53 = arith.constant 0 : index
    %c0_54 = arith.constant 0 : index
    %52 = vector.load %arg8[%c1_52, %c0_53, %c0_54] : memref<2x1x256xf32, #tpu.memory_space<vmem>>, vector<1x1x256xf32>
    %53 = vector.shape_cast %52 : vector<1x1x256xf32> to vector<1x256xf32>
    %54 = vector.broadcast %53 : vector<1x256xf32> to vector<8x256xf32>
    %55 = arith.addf %51, %54 : vector<8x256xf32>
    %56 = vector.extract_strided_slice %55 {offsets = [0, 0], sizes = [8, 128], strides = [1, 1]} : vector<8x256xf32> to vector<8x128xf32>
    %57 = vector.extract_strided_slice %55 {offsets = [0, 128], sizes = [8, 128], strides = [1, 1]} : vector<8x256xf32> to vector<8x128xf32>
    %cst_55 = arith.constant 0.000000e+00 : f32
    %58 = vector.broadcast %cst_55 : f32 to vector<8x128xf32>
    %59 = arith.subf %58, %57 : vector<8x128xf32>
    %60 = math.exp %59 : vector<8x128xf32>
    %cst_56 = arith.constant 1.000000e+00 : f32
    %61 = vector.broadcast %cst_56 : f32 to vector<8x128xf32>
    %62 = arith.addf %61, %60 : vector<8x128xf32>
    %63 = tpu.reciprocal %62 {approx = true} : vector<8x128xf32> -> vector<8x128xf32>
    %64 = arith.mulf %56, %63 : vector<8x128xf32>
    %65 = arith.addf %64, %38 : vector<8x128xf32>
    %cst_57 = arith.constant 0.707106769 : f32
    %66 = vector.broadcast %cst_57 : f32 to vector<8x128xf32>
    %67 = arith.mulf %65, %66 : vector<8x128xf32>
    %c0_58 = arith.constant 0 : index
    %c0_59 = arith.constant 0 : index
    %68 = vector.load %arg9[%c0_58, %c0_59] : memref<128x128xbf16, #tpu.memory_space<vmem>>, vector<128x128xbf16>
    %69 = arith.truncf %67 : vector<8x128xf32> to vector<8x128xbf16>
    %cst_60 = arith.constant dense<0.000000e+00> : vector<8x128xf32>
    %70 = tpu.matmul %69, %68, %cst_60 {dimension_numbers = #tpu.dot_dimension_numbers<[1], [0], [0], [1], [0, 0, 1, 1], [], []>} : vector<8x128xbf16>, vector<128x128xbf16>, vector<8x128xf32> -> vector<8x128xf32>
    %c0_61 = arith.constant 0 : index
    %c0_62 = arith.constant 0 : index
    %71 = vector.load %arg10[%c0_61, %c0_62] : memref<1x128xf32, #tpu.memory_space<vmem>>, vector<1x128xf32>
    %72 = vector.broadcast %71 : vector<1x128xf32> to vector<8x128xf32>
    %73 = arith.addf %70, %72 : vector<8x128xf32>
    %74 = arith.mulf %73, %1 : vector<8x128xf32>
    %75 = arith.addf %74, %0 : vector<8x128xf32>
    %cst_63 = arith.constant 0.707106769 : f32
    %76 = vector.broadcast %cst_63 : f32 to vector<8x128xf32>
    %77 = arith.mulf %75, %76 : vector<8x128xf32>
    %78 = arith.mulf %77, %1 : vector<8x128xf32>
    %79 = arith.truncf %74 : vector<8x128xf32> to vector<8x128xbf16>
    %80 = arith.truncf %78 : vector<8x128xf32> to vector<8x128xbf16>
    %c0_64 = arith.constant 0 : index
    %c0_65 = arith.constant 0 : index
    %c0_66 = arith.constant 0 : index
    %81 = vector.load %arg3[%c0_64, %c0_65, %c0_66] : memref<1x1x8xf32, #tpu.memory_space<vmem>>, vector<1x1x8xf32>
    %82 = vector.shape_cast %81 : vector<1x1x8xf32> to vector<1x8xf32>
    %83 = vector.shape_cast %82 : vector<1x8xf32> to vector<1x1x8xf32>
    %cst_67 = arith.constant dense<0.000000e+00> : vector<1xf32>
    %84 = vector.multi_reduction <add>, %83, %cst_67 [1, 2] : vector<1x1x8xf32> to vector<1xf32>
    %85 = vector.shape_cast %84 : vector<1xf32> to vector<1x1x1xf32>
    %86 = vector.extract %85[0, 0, 0] : f32 from vector<1x1x1xf32>
    %cst_68 = arith.constant 1.000000e+00 : f32
    %87 = arith.maximumf %86, %cst_68 : f32
    %88 = math.rsqrt %87 : f32
    %89 = arith.mulf %86, %88 : f32
    %c0_69 = arith.constant 0 : index
    %c0_70 = arith.constant 0 : index
    %90 = vector.load %arg4[%c0_69, %c0_70] : memref<8x128xf32, #tpu.memory_space<vmem>>, vector<8x128xf32>
    %c0_71 = arith.constant 0 : index
    %c0_72 = arith.constant 0 : index
    %91 = vector.load %arg11[%c0_71, %c0_72] : memref<128x128xbf16, #tpu.memory_space<vmem>>, vector<128x128xbf16>
    %92 = arith.truncf %90 : vector<8x128xf32> to vector<8x128xbf16>
    %cst_73 = arith.constant dense<0.000000e+00> : vector<8x128xf32>
    %93 = tpu.matmul %92, %91, %cst_73 {dimension_numbers = #tpu.dot_dimension_numbers<[1], [0], [0], [1], [0, 0, 1, 1], [], []>} : vector<8x128xbf16>, vector<128x128xbf16>, vector<8x128xf32> -> vector<8x128xf32>
    %c0_74 = arith.constant 0 : index
    %c0_75 = arith.constant 0 : index
    %94 = vector.load %arg12[%c0_74, %c0_75] : memref<1x128xf32, #tpu.memory_space<vmem>>, vector<1x128xf32>
    %95 = vector.broadcast %94 : vector<1x128xf32> to vector<8x128xf32>
    %96 = arith.addf %93, %95 : vector<8x128xf32>
    %cst_76 = arith.constant 0.000000e+00 : f32
    %97 = vector.broadcast %cst_76 : f32 to vector<8x8xf32>
    %cst_77 = arith.constant 0.000000e+00 : f32
    %98 = vector.broadcast %cst_77 : f32 to vector<10x128xf32>
    %c0_78 = arith.constant 0 : index
    %c0_79 = arith.constant 0 : index
    %99 = vector.load %arg25[%c0_78, %c0_79] : memref<10x128xf32, #tpu.memory_space<vmem>>, vector<10x128xf32>
    tpu.vector_store %arg25[%c0_78, %c0_79], %98 {strides = array<i32>} : memref<10x128xf32, #tpu.memory_space<vmem>>, vector<10x128xf32>,
    %c2_80 = arith.constant 2 : index
    %c0_81 = arith.constant 0 : index
    %100 = vector.load %arg25[%c2_80, %c0_81] : memref<10x128xf32, #tpu.memory_space<vmem>>, vector<8x128xf32>
    tpu.vector_store %arg25[%c2_80, %c0_81], %96 {strides = array<i32>} : memref<10x128xf32, #tpu.memory_space<vmem>>, vector<8x128xf32>,
    %c0_82 = arith.constant 0 : index
    %c0_83 = arith.constant 0 : index
    %101 = vector.load %arg25[%c0_82, %c0_83] : memref<10x128xf32, #tpu.memory_space<vmem>>, vector<8x128xf32>
    %c0_84 = arith.constant 0 : index
    %c0_85 = arith.constant 0 : index
    %102 = vector.load %arg26[%c0_84, %c0_85] : memref<8x384xf32, #tpu.memory_space<vmem>>, vector<8x128xf32>
    tpu.vector_store %arg26[%c0_84, %c0_85], %101 {strides = array<i32>} : memref<8x384xf32, #tpu.memory_space<vmem>>, vector<8x128xf32>,
    %c1_86 = arith.constant 1 : index
    %c0_87 = arith.constant 0 : index
    %103 = vector.load %arg25[%c1_86, %c0_87] : memref<10x128xf32, #tpu.memory_space<vmem>>, vector<8x128xf32>
    %c0_88 = arith.constant 0 : index
    %c128_89 = arith.constant 128 : index
    %104 = vector.load %arg26[%c0_88, %c128_89] : memref<8x384xf32, #tpu.memory_space<vmem>>, vector<8x128xf32>
    tpu.vector_store %arg26[%c0_88, %c128_89], %103 {strides = array<i32>} : memref<8x384xf32, #tpu.memory_space<vmem>>, vector<8x128xf32>,
    %c2_90 = arith.constant 2 : index
    %c0_91 = arith.constant 0 : index
    %105 = vector.load %arg25[%c2_90, %c0_91] : memref<10x128xf32, #tpu.memory_space<vmem>>, vector<8x128xf32>
    %c0_92 = arith.constant 0 : index
    %c256_93 = arith.constant 256 : index
    %106 = vector.load %arg26[%c0_92, %c256_93] : memref<8x384xf32, #tpu.memory_space<vmem>>, vector<8x128xf32>
    tpu.vector_store %arg26[%c0_92, %c256_93], %105 {strides = array<i32>} : memref<8x384xf32, #tpu.memory_space<vmem>>, vector<8x128xf32>,
    %c0_94 = arith.constant 0 : index
    %c0_95 = arith.constant 0 : index
    %107 = vector.load %arg26[%c0_94, %c0_95] : memref<8x384xf32, #tpu.memory_space<vmem>>, vector<8x384xf32>
    %c0_96 = arith.constant 0 : index
    %c0_97 = arith.constant 0 : index
    %c0_98 = arith.constant 0 : index
    %108 = vector.load %arg13[%c0_96, %c0_97, %c0_98] : memref<2x384x256xbf16, #tpu.memory_space<vmem>>, vector<1x384x256xbf16>
    %109 = vector.shape_cast %108 : vector<1x384x256xbf16> to vector<384x256xbf16>
    %110 = arith.truncf %107 : vector<8x384xf32> to vector<8x384xbf16>
    %cst_99 = arith.constant dense<0.000000e+00> : vector<8x256xf32>
    %111 = tpu.matmul %110, %109, %cst_99 {dimension_numbers = #tpu.dot_dimension_numbers<[1], [0], [0], [1], [0, 0, 1, 1], [], []>} : vector<8x384xbf16>, vector<384x256xbf16>, vector<8x256xf32> -> vector<8x256xf32>
    %c0_100 = arith.constant 0 : index
    %c0_101 = arith.constant 0 : index
    %c0_102 = arith.constant 0 : index
    %112 = vector.load %arg14[%c0_100, %c0_101, %c0_102] : memref<2x1x256xf32, #tpu.memory_space<vmem>>, vector<1x1x256xf32>
    %113 = vector.shape_cast %112 : vector<1x1x256xf32> to vector<1x256xf32>
    %114 = vector.broadcast %113 : vector<1x256xf32> to vector<8x256xf32>
    %115 = arith.addf %111, %114 : vector<8x256xf32>
    %116 = vector.extract_strided_slice %115 {offsets = [0, 0], sizes = [8, 128], strides = [1, 1]} : vector<8x256xf32> to vector<8x128xf32>
    %117 = vector.extract_strided_slice %115 {offsets = [0, 128], sizes = [8, 128], strides = [1, 1]} : vector<8x256xf32> to vector<8x128xf32>
    %cst_103 = arith.constant 0.000000e+00 : f32
    %118 = vector.broadcast %cst_103 : f32 to vector<8x128xf32>
    %119 = arith.subf %118, %117 : vector<8x128xf32>
    %120 = math.exp %119 : vector<8x128xf32>
    %cst_104 = arith.constant 1.000000e+00 : f32
    %121 = vector.broadcast %cst_104 : f32 to vector<8x128xf32>
    %122 = arith.addf %121, %120 : vector<8x128xf32>
    %123 = tpu.reciprocal %122 {approx = true} : vector<8x128xf32> -> vector<8x128xf32>
    %124 = arith.mulf %116, %123 : vector<8x128xf32>
    %c0_105 = arith.constant 0 : index
    %c0_106 = arith.constant 0 : index
    %c0_107 = arith.constant 0 : index
    %125 = vector.load %arg15[%c0_105, %c0_106, %c0_107] : memref<2x128x128xbf16, #tpu.memory_space<vmem>>, vector<1x128x128xbf16>
    %126 = vector.shape_cast %125 : vector<1x128x128xbf16> to vector<128x128xbf16>
    %127 = arith.truncf %124 : vector<8x128xf32> to vector<8x128xbf16>
    %cst_108 = arith.constant dense<0.000000e+00> : vector<8x128xf32>
    %128 = tpu.matmul %127, %126, %cst_108 {dimension_numbers = #tpu.dot_dimension_numbers<[1], [0], [0], [1], [0, 0, 1, 1], [], []>} : vector<8x128xbf16>, vector<128x128xbf16>, vector<8x128xf32> -> vector<8x128xf32>
    %c0_109 = arith.constant 0 : index
    %c0_110 = arith.constant 0 : index
    %c0_111 = arith.constant 0 : index
    %129 = vector.load %arg16[%c0_109, %c0_110, %c0_111] : memref<2x1x128xf32, #tpu.memory_space<vmem>>, vector<1x1x128xf32>
    %130 = vector.shape_cast %129 : vector<1x1x128xf32> to vector<1x128xf32>
    %131 = vector.broadcast %130 : vector<1x128xf32> to vector<8x128xf32>
    %132 = arith.addf %128, %131 : vector<8x128xf32>
    %133 = arith.addf %132, %90 : vector<8x128xf32>
    %cst_112 = arith.constant 0.707106769 : f32
    %134 = vector.broadcast %cst_112 : f32 to vector<8x128xf32>
    %135 = arith.mulf %133, %134 : vector<8x128xf32>
    %136 = arith.truncf %135 : vector<8x128xf32> to vector<8x128xbf16>
    %cst_113 = arith.constant dense<0.000000e+00> : vector<8x8xf32>
    %137 = tpu.matmul %136, %79, %cst_113 {dimension_numbers = #tpu.dot_dimension_numbers<[1], [1], [0], [0], [0, 0, 1, 0], [], []>} : vector<8x128xbf16>, vector<8x128xbf16>, vector<8x8xf32> -> vector<8x8xf32>
    %cst_114 = arith.constant 5.000000e-01 : f32
    %138 = vector.broadcast %cst_114 : f32 to vector<1x8xf32>
    %139 = arith.cmpf ogt, %82, %138 : vector<1x8xf32>
    %cst_115 = arith.constant -1.000000e+30 : f32
    %140 = vector.shape_cast %139 : vector<1x8xi1> to vector<1x8xi1>
    %141 = vector.broadcast %140 : vector<1x8xi1> to vector<8x8xi1>
    %142 = vector.broadcast %cst_115 : f32 to vector<8x8xf32>
    %143 = arith.select %141, %137, %142 : vector<8x8xi1>, vector<8x8xf32>
    %cst_116 = arith.constant dense<0xFF800000> : vector<8xf32>
    %144 = vector.multi_reduction <maximumf>, %143, %cst_116 [1] : vector<8x8xf32> to vector<8xf32>
    %145 = vector.shape_cast %144 : vector<8xf32> to vector<8x1xf32>
    %146 = vector.broadcast %145 : vector<8x1xf32> to vector<8x8xf32>
    %147 = arith.subf %143, %146 : vector<8x8xf32>
    %148 = math.exp %147 : vector<8x8xf32>
    %cst_117 = arith.constant dense<0.000000e+00> : vector<8xf32>
    %149 = vector.multi_reduction <add>, %148, %cst_117 [1] : vector<8x8xf32> to vector<8xf32>
    %150 = vector.shape_cast %149 : vector<8xf32> to vector<8x1xf32>
    %151 = tpu.reciprocal %150 {approx = true} : vector<8x1xf32> -> vector<8x1xf32>
    %152 = vector.broadcast %151 : vector<8x1xf32> to vector<8x8xf32>
    %153 = arith.mulf %148, %152 : vector<8x8xf32>
    %154 = arith.addf %97, %153 : vector<8x8xf32>
    %155 = arith.truncf %153 : vector<8x8xf32> to vector<8x8xbf16>
    %cst_118 = arith.constant dense<0.000000e+00> : vector<8x128xf32>
    %156 = tpu.matmul %155, %80, %cst_118 {dimension_numbers = #tpu.dot_dimension_numbers<[1], [0], [0], [1], [0, 0, 1, 1], [], []>} : vector<8x8xbf16>, vector<8x128xbf16>, vector<8x128xf32> -> vector<8x128xf32>
    %157 = vector.broadcast %89 : f32 to vector<8x128xf32>
    %158 = arith.mulf %156, %157 : vector<8x128xf32>
    %c0_119 = arith.constant 0 : index
    %c0_120 = arith.constant 0 : index
    %c0_121 = arith.constant 0 : index
    %159 = vector.load %arg17[%c0_119, %c0_120, %c0_121] : memref<2x128x128xbf16, #tpu.memory_space<vmem>>, vector<1x128x128xbf16>
    %160 = vector.shape_cast %159 : vector<1x128x128xbf16> to vector<128x128xbf16>
    %161 = arith.truncf %158 : vector<8x128xf32> to vector<8x128xbf16>
    %cst_122 = arith.constant dense<0.000000e+00> : vector<8x128xf32>
    %162 = tpu.matmul %161, %160, %cst_122 {dimension_numbers = #tpu.dot_dimension_numbers<[1], [0], [0], [1], [0, 0, 1, 1], [], []>} : vector<8x128xbf16>, vector<128x128xbf16>, vector<8x128xf32> -> vector<8x128xf32>
    %c0_123 = arith.constant 0 : index
    %c0_124 = arith.constant 0 : index
    %c0_125 = arith.constant 0 : index
    %163 = vector.load %arg18[%c0_123, %c0_124, %c0_125] : memref<2x1x128xf32, #tpu.memory_space<vmem>>, vector<1x1x128xf32>
    %164 = vector.shape_cast %163 : vector<1x1x128xf32> to vector<1x128xf32>
    %165 = vector.broadcast %164 : vector<1x128xf32> to vector<8x128xf32>
    %166 = arith.addf %162, %165 : vector<8x128xf32>
    %167 = arith.addf %166, %124 : vector<8x128xf32>
    %cst_126 = arith.constant 0.707106769 : f32
    %168 = vector.broadcast %cst_126 : f32 to vector<8x128xf32>
    %169 = arith.mulf %167, %168 : vector<8x128xf32>
    %170 = arith.addf %169, %96 : vector<8x128xf32>
    %cst_127 = arith.constant 0.707106769 : f32
    %171 = vector.broadcast %cst_127 : f32 to vector<8x128xf32>
    %172 = arith.mulf %170, %171 : vector<8x128xf32>
    %c2_128 = arith.constant 2 : index
    %c0_129 = arith.constant 0 : index
    %173 = vector.load %arg25[%c2_128, %c0_129] : memref<10x128xf32, #tpu.memory_space<vmem>>, vector<8x128xf32>
    tpu.vector_store %arg25[%c2_128, %c0_129], %172 {strides = array<i32>} : memref<10x128xf32, #tpu.memory_space<vmem>>, vector<8x128xf32>,
    %c0_130 = arith.constant 0 : index
    %c0_131 = arith.constant 0 : index
    %174 = vector.load %arg25[%c0_130, %c0_131] : memref<10x128xf32, #tpu.memory_space<vmem>>, vector<8x128xf32>
    %c0_132 = arith.constant 0 : index
    %c0_133 = arith.constant 0 : index
    %175 = vector.load %arg26[%c0_132, %c0_133] : memref<8x384xf32, #tpu.memory_space<vmem>>, vector<8x128xf32>
    tpu.vector_store %arg26[%c0_132, %c0_133], %174 {strides = array<i32>} : memref<8x384xf32, #tpu.memory_space<vmem>>, vector<8x128xf32>,
    %c1_134 = arith.constant 1 : index
    %c0_135 = arith.constant 0 : index
    %176 = vector.load %arg25[%c1_134, %c0_135] : memref<10x128xf32, #tpu.memory_space<vmem>>, vector<8x128xf32>
    %c0_136 = arith.constant 0 : index
    %c128_137 = arith.constant 128 : index
    %177 = vector.load %arg26[%c0_136, %c128_137] : memref<8x384xf32, #tpu.memory_space<vmem>>, vector<8x128xf32>
    tpu.vector_store %arg26[%c0_136, %c128_137], %176 {strides = array<i32>} : memref<8x384xf32, #tpu.memory_space<vmem>>, vector<8x128xf32>,
    %c2_138 = arith.constant 2 : index
    %c0_139 = arith.constant 0 : index
    %178 = vector.load %arg25[%c2_138, %c0_139] : memref<10x128xf32, #tpu.memory_space<vmem>>, vector<8x128xf32>
    %c0_140 = arith.constant 0 : index
    %c256_141 = arith.constant 256 : index
    %179 = vector.load %arg26[%c0_140, %c256_141] : memref<8x384xf32, #tpu.memory_space<vmem>>, vector<8x128xf32>
    tpu.vector_store %arg26[%c0_140, %c256_141], %178 {strides = array<i32>} : memref<8x384xf32, #tpu.memory_space<vmem>>, vector<8x128xf32>,
    %c0_142 = arith.constant 0 : index
    %c0_143 = arith.constant 0 : index
    %180 = vector.load %arg26[%c0_142, %c0_143] : memref<8x384xf32, #tpu.memory_space<vmem>>, vector<8x384xf32>
    %c1_144 = arith.constant 1 : index
    %c0_145 = arith.constant 0 : index
    %c0_146 = arith.constant 0 : index
    %181 = vector.load %arg13[%c1_144, %c0_145, %c0_146] : memref<2x384x256xbf16, #tpu.memory_space<vmem>>, vector<1x384x256xbf16>
    %182 = vector.shape_cast %181 : vector<1x384x256xbf16> to vector<384x256xbf16>
    %183 = arith.truncf %180 : vector<8x384xf32> to vector<8x384xbf16>
    %cst_147 = arith.constant dense<0.000000e+00> : vector<8x256xf32>
    %184 = tpu.matmul %183, %182, %cst_147 {dimension_numbers = #tpu.dot_dimension_numbers<[1], [0], [0], [1], [0, 0, 1, 1], [], []>} : vector<8x384xbf16>, vector<384x256xbf16>, vector<8x256xf32> -> vector<8x256xf32>
    %c1_148 = arith.constant 1 : index
    %c0_149 = arith.constant 0 : index
    %c0_150 = arith.constant 0 : index
    %185 = vector.load %arg14[%c1_148, %c0_149, %c0_150] : memref<2x1x256xf32, #tpu.memory_space<vmem>>, vector<1x1x256xf32>
    %186 = vector.shape_cast %185 : vector<1x1x256xf32> to vector<1x256xf32>
    %187 = vector.broadcast %186 : vector<1x256xf32> to vector<8x256xf32>
    %188 = arith.addf %184, %187 : vector<8x256xf32>
    %189 = vector.extract_strided_slice %188 {offsets = [0, 0], sizes = [8, 128], strides = [1, 1]} : vector<8x256xf32> to vector<8x128xf32>
    %190 = vector.extract_strided_slice %188 {offsets = [0, 128], sizes = [8, 128], strides = [1, 1]} : vector<8x256xf32> to vector<8x128xf32>
    %cst_151 = arith.constant 0.000000e+00 : f32
    %191 = vector.broadcast %cst_151 : f32 to vector<8x128xf32>
    %192 = arith.subf %191, %190 : vector<8x128xf32>
    %193 = math.exp %192 : vector<8x128xf32>
    %cst_152 = arith.constant 1.000000e+00 : f32
    %194 = vector.broadcast %cst_152 : f32 to vector<8x128xf32>
    %195 = arith.addf %194, %193 : vector<8x128xf32>
    %196 = tpu.reciprocal %195 {approx = true} : vector<8x128xf32> -> vector<8x128xf32>
    %197 = arith.mulf %189, %196 : vector<8x128xf32>
    %c1_153 = arith.constant 1 : index
    %c0_154 = arith.constant 0 : index
    %c0_155 = arith.constant 0 : index
    %198 = vector.load %arg15[%c1_153, %c0_154, %c0_155] : memref<2x128x128xbf16, #tpu.memory_space<vmem>>, vector<1x128x128xbf16>
    %199 = vector.shape_cast %198 : vector<1x128x128xbf16> to vector<128x128xbf16>
    %200 = arith.truncf %197 : vector<8x128xf32> to vector<8x128xbf16>
    %cst_156 = arith.constant dense<0.000000e+00> : vector<8x128xf32>
    %201 = tpu.matmul %200, %199, %cst_156 {dimension_numbers = #tpu.dot_dimension_numbers<[1], [0], [0], [1], [0, 0, 1, 1], [], []>} : vector<8x128xbf16>, vector<128x128xbf16>, vector<8x128xf32> -> vector<8x128xf32>
    %c1_157 = arith.constant 1 : index
    %c0_158 = arith.constant 0 : index
    %c0_159 = arith.constant 0 : index
    %202 = vector.load %arg16[%c1_157, %c0_158, %c0_159] : memref<2x1x128xf32, #tpu.memory_space<vmem>>, vector<1x1x128xf32>
    %203 = vector.shape_cast %202 : vector<1x1x128xf32> to vector<1x128xf32>
    %204 = vector.broadcast %203 : vector<1x128xf32> to vector<8x128xf32>
    %205 = arith.addf %201, %204 : vector<8x128xf32>
    %206 = arith.addf %205, %90 : vector<8x128xf32>
    %cst_160 = arith.constant 0.707106769 : f32
    %207 = vector.broadcast %cst_160 : f32 to vector<8x128xf32>
    %208 = arith.mulf %206, %207 : vector<8x128xf32>
    %209 = arith.truncf %208 : vector<8x128xf32> to vector<8x128xbf16>
    %cst_161 = arith.constant dense<0.000000e+00> : vector<8x8xf32>
    %210 = tpu.matmul %209, %79, %cst_161 {dimension_numbers = #tpu.dot_dimension_numbers<[1], [1], [0], [0], [0, 0, 1, 0], [], []>} : vector<8x128xbf16>, vector<8x128xbf16>, vector<8x8xf32> -> vector<8x8xf32>
    %cst_162 = arith.constant 5.000000e-01 : f32
    %211 = vector.broadcast %cst_162 : f32 to vector<1x8xf32>
    %212 = arith.cmpf ogt, %82, %211 : vector<1x8xf32>
    %cst_163 = arith.constant -1.000000e+30 : f32
    %213 = vector.shape_cast %212 : vector<1x8xi1> to vector<1x8xi1>
    %214 = vector.broadcast %213 : vector<1x8xi1> to vector<8x8xi1>
    %215 = vector.broadcast %cst_163 : f32 to vector<8x8xf32>
    %216 = arith.select %214, %210, %215 : vector<8x8xi1>, vector<8x8xf32>
    %cst_164 = arith.constant dense<0xFF800000> : vector<8xf32>
    %217 = vector.multi_reduction <maximumf>, %216, %cst_164 [1] : vector<8x8xf32> to vector<8xf32>
    %218 = vector.shape_cast %217 : vector<8xf32> to vector<8x1xf32>
    %219 = vector.broadcast %218 : vector<8x1xf32> to vector<8x8xf32>
    %220 = arith.subf %216, %219 : vector<8x8xf32>
    %221 = math.exp %220 : vector<8x8xf32>
    %cst_165 = arith.constant dense<0.000000e+00> : vector<8xf32>
    %222 = vector.multi_reduction <add>, %221, %cst_165 [1] : vector<8x8xf32> to vector<8xf32>
    %223 = vector.shape_cast %222 : vector<8xf32> to vector<8x1xf32>
    %224 = tpu.reciprocal %223 {approx = true} : vector<8x1xf32> -> vector<8x1xf32>
    %225 = vector.broadcast %224 : vector<8x1xf32> to vector<8x8xf32>
    %226 = arith.mulf %221, %225 : vector<8x8xf32>
    %227 = arith.addf %154, %226 : vector<8x8xf32>
    %228 = arith.truncf %226 : vector<8x8xf32> to vector<8x8xbf16>
    %cst_166 = arith.constant dense<0.000000e+00> : vector<8x128xf32>
    %229 = tpu.matmul %228, %80, %cst_166 {dimension_numbers = #tpu.dot_dimension_numbers<[1], [0], [0], [1], [0, 0, 1, 1], [], []>} : vector<8x8xbf16>, vector<8x128xbf16>, vector<8x128xf32> -> vector<8x128xf32>
    %230 = vector.broadcast %89 : f32 to vector<8x128xf32>
    %231 = arith.mulf %229, %230 : vector<8x128xf32>
    %c1_167 = arith.constant 1 : index
    %c0_168 = arith.constant 0 : index
    %c0_169 = arith.constant 0 : index
    %232 = vector.load %arg17[%c1_167, %c0_168, %c0_169] : memref<2x128x128xbf16, #tpu.memory_space<vmem>>, vector<1x128x128xbf16>
    %233 = vector.shape_cast %232 : vector<1x128x128xbf16> to vector<128x128xbf16>
    %234 = arith.truncf %231 : vector<8x128xf32> to vector<8x128xbf16>
    %cst_170 = arith.constant dense<0.000000e+00> : vector<8x128xf32>
    %235 = tpu.matmul %234, %233, %cst_170 {dimension_numbers = #tpu.dot_dimension_numbers<[1], [0], [0], [1], [0, 0, 1, 1], [], []>} : vector<8x128xbf16>, vector<128x128xbf16>, vector<8x128xf32> -> vector<8x128xf32>
    %c1_171 = arith.constant 1 : index
    %c0_172 = arith.constant 0 : index
    %c0_173 = arith.constant 0 : index
    %236 = vector.load %arg18[%c1_171, %c0_172, %c0_173] : memref<2x1x128xf32, #tpu.memory_space<vmem>>, vector<1x1x128xf32>
    %237 = vector.shape_cast %236 : vector<1x1x128xf32> to vector<1x128xf32>
    %238 = vector.broadcast %237 : vector<1x128xf32> to vector<8x128xf32>
    %239 = arith.addf %235, %238 : vector<8x128xf32>
    %240 = arith.addf %239, %197 : vector<8x128xf32>
    %cst_174 = arith.constant 0.707106769 : f32
    %241 = vector.broadcast %cst_174 : f32 to vector<8x128xf32>
    %242 = arith.mulf %240, %241 : vector<8x128xf32>
    %243 = arith.addf %242, %172 : vector<8x128xf32>
    %cst_175 = arith.constant 0.707106769 : f32
    %244 = vector.broadcast %cst_175 : f32 to vector<8x128xf32>
    %245 = arith.mulf %243, %244 : vector<8x128xf32>
    %cst_176 = arith.constant 5.000000e-01 : f32
    %246 = vector.broadcast %cst_176 : f32 to vector<8x8xf32>
    %247 = arith.mulf %227, %246 : vector<8x8xf32>
    %c0_177 = arith.constant 0 : index
    %c0_178 = arith.constant 0 : index
    %248 = vector.load %arg22[%c0_177, %c0_178] : memref<8x8xf32, #tpu.memory_space<vmem>>, vector<8x8xf32>
    tpu.vector_store %arg22[%c0_177, %c0_178], %247 {strides = array<i32>} : memref<8x8xf32, #tpu.memory_space<vmem>>, vector<8x8xf32>,
    %c0_179 = arith.constant 0 : index
    %c0_180 = arith.constant 0 : index
    %249 = vector.load %arg19[%c0_179, %c0_180] : memref<128x128xbf16, #tpu.memory_space<vmem>>, vector<128x128xbf16>
    %250 = arith.truncf %245 : vector<8x128xf32> to vector<8x128xbf16>
    %cst_181 = arith.constant dense<0.000000e+00> : vector<8x128xf32>
    %251 = tpu.matmul %250, %249, %cst_181 {dimension_numbers = #tpu.dot_dimension_numbers<[1], [0], [0], [1], [0, 0, 1, 1], [], []>} : vector<8x128xbf16>, vector<128x128xbf16>, vector<8x128xf32> -> vector<8x128xf32>
    %c0_182 = arith.constant 0 : index
    %c0_183 = arith.constant 0 : index
    %252 = vector.load %arg20[%c0_182, %c0_183] : memref<1x128xf32, #tpu.memory_space<vmem>>, vector<1x128xf32>
    %253 = vector.broadcast %252 : vector<1x128xf32> to vector<8x128xf32>
    %254 = arith.addf %251, %253 : vector<8x128xf32>
    %c0_184 = arith.constant 0 : index
    %c0_185 = arith.constant 0 : index
    %255 = vector.load %arg21[%c0_184, %c0_185] : memref<8x128xf32, #tpu.memory_space<vmem>>, vector<8x128xf32>
    tpu.vector_store %arg21[%c0_184, %c0_185], %254 {strides = array<i32>} : memref<8x128xf32, #tpu.memory_space<vmem>>, vector<8x128xf32>,
    return
  }
  func.func @transform_0(%arg0: i32) -> (i32, i32) {
    %c0_i32 = arith.constant 0 : i32
    %c0_i32_0 = arith.constant 0 : i32
    return %arg0, %c0_i32 : i32, i32
  }
  func.func @transform_1(%arg0: i32) -> (i32, i32) {
    %c0_i32 = arith.constant 0 : i32
    %c0_i32_0 = arith.constant 0 : i32
    return %arg0, %c0_i32 : i32, i32
  }
  func.func @transform_2(%arg0: i32) -> (i32, i32, i32) {
    %c0_i32 = arith.constant 0 : i32
    %c0_i32_0 = arith.constant 0 : i32
    %c0_i32_1 = arith.constant 0 : i32
    return %arg0, %c0_i32, %c0_i32_0 : i32, i32, i32
  }
  func.func @transform_3(%arg0: i32) -> (i32, i32) {
    %c0_i32 = arith.constant 0 : i32
    %c0_i32_0 = arith.constant 0 : i32
    return %arg0, %c0_i32 : i32, i32
  }
  func.func @transform_4(%arg0: i32) -> (i32, i32) {
    %c0_i32 = arith.constant 0 : i32
    %c0_i32_0 = arith.constant 0 : i32
    %c0_i32_1 = arith.constant 0 : i32
    return %c0_i32, %c0_i32_0 : i32, i32
  }
  func.func @transform_5(%arg0: i32) -> (i32, i32) {
    %c0_i32 = arith.constant 0 : i32
    %c0_i32_0 = arith.constant 0 : i32
    %c0_i32_1 = arith.constant 0 : i32
    return %c0_i32, %c0_i32_0 : i32, i32
  }
  func.func @transform_6(%arg0: i32) -> (i32, i32, i32) {
    %c0_i32 = arith.constant 0 : i32
    %c0_i32_0 = arith.constant 0 : i32
    %c0_i32_1 = arith.constant 0 : i32
    %c0_i32_2 = arith.constant 0 : i32
    return %c0_i32, %c0_i32_0, %c0_i32_1 : i32, i32, i32
  }
  func.func @transform_7(%arg0: i32) -> (i32, i32, i32) {
    %c0_i32 = arith.constant 0 : i32
    %c0_i32_0 = arith.constant 0 : i32
    %c0_i32_1 = arith.constant 0 : i32
    %c0_i32_2 = arith.constant 0 : i32
    return %c0_i32, %c0_i32_0, %c0_i32_1 : i32, i32, i32
  }
  func.func @transform_8(%arg0: i32) -> (i32, i32) {
    %c0_i32 = arith.constant 0 : i32
    %c0_i32_0 = arith.constant 0 : i32
    %c0_i32_1 = arith.constant 0 : i32
    return %c0_i32, %c0_i32_0 : i32, i32
  }
  func.func @transform_9(%arg0: i32) -> (i32, i32) {
    %c0_i32 = arith.constant 0 : i32
    %c0_i32_0 = arith.constant 0 : i32
    %c0_i32_1 = arith.constant 0 : i32
    return %c0_i32, %c0_i32_0 : i32, i32
  }
  func.func @transform_10(%arg0: i32) -> (i32, i32) {
    %c0_i32 = arith.constant 0 : i32
    %c0_i32_0 = arith.constant 0 : i32
    %c0_i32_1 = arith.constant 0 : i32
    return %c0_i32, %c0_i32_0 : i32, i32
  }
  func.func @transform_11(%arg0: i32) -> (i32, i32) {
    %c0_i32 = arith.constant 0 : i32
    %c0_i32_0 = arith.constant 0 : i32
    %c0_i32_1 = arith.constant 0 : i32
    return %c0_i32, %c0_i32_0 : i32, i32
  }
  func.func @transform_12(%arg0: i32) -> (i32, i32, i32) {
    %c0_i32 = arith.constant 0 : i32
    %c0_i32_0 = arith.constant 0 : i32
    %c0_i32_1 = arith.constant 0 : i32
    %c0_i32_2 = arith.constant 0 : i32
    return %c0_i32, %c0_i32_0, %c0_i32_1 : i32, i32, i32
  }
  func.func @transform_13(%arg0: i32) -> (i32, i32, i32) {
    %c0_i32 = arith.constant 0 : i32
    %c0_i32_0 = arith.constant 0 : i32
    %c0_i32_1 = arith.constant 0 : i32
    %c0_i32_2 = arith.constant 0 : i32
    return %c0_i32, %c0_i32_0, %c0_i32_1 : i32, i32, i32
  }
  func.func @transform_14(%arg0: i32) -> (i32, i32, i32) {
    %c0_i32 = arith.constant 0 : i32
    %c0_i32_0 = arith.constant 0 : i32
    %c0_i32_1 = arith.constant 0 : i32
    %c0_i32_2 = arith.constant 0 : i32
    return %c0_i32, %c0_i32_0, %c0_i32_1 : i32, i32, i32
  }
  func.func @transform_15(%arg0: i32) -> (i32, i32, i32) {
    %c0_i32 = arith.constant 0 : i32
    %c0_i32_0 = arith.constant 0 : i32
    %c0_i32_1 = arith.constant 0 : i32
    %c0_i32_2 = arith.constant 0 : i32
    return %c0_i32, %c0_i32_0, %c0_i32_1 : i32, i32, i32
  }
  func.func @transform_16(%arg0: i32) -> (i32, i32, i32) {
    %c0_i32 = arith.constant 0 : i32
    %c0_i32_0 = arith.constant 0 : i32
    %c0_i32_1 = arith.constant 0 : i32
    %c0_i32_2 = arith.constant 0 : i32
    return %c0_i32, %c0_i32_0, %c0_i32_1 : i32, i32, i32
  }
  func.func @transform_17(%arg0: i32) -> (i32, i32, i32) {
    %c0_i32 = arith.constant 0 : i32
    %c0_i32_0 = arith.constant 0 : i32
    %c0_i32_1 = arith.constant 0 : i32
    %c0_i32_2 = arith.constant 0 : i32
    return %c0_i32, %c0_i32_0, %c0_i32_1 : i32, i32, i32
  }
  func.func @transform_18(%arg0: i32) -> (i32, i32) {
    %c0_i32 = arith.constant 0 : i32
    %c0_i32_0 = arith.constant 0 : i32
    %c0_i32_1 = arith.constant 0 : i32
    return %c0_i32, %c0_i32_0 : i32, i32
  }
  func.func @transform_19(%arg0: i32) -> (i32, i32) {
    %c0_i32 = arith.constant 0 : i32
    %c0_i32_0 = arith.constant 0 : i32
    %c0_i32_1 = arith.constant 0 : i32
    return %c0_i32, %c0_i32_0 : i32, i32
  }
  func.func @transform_20(%arg0: i32) -> (i32, i32) {
    %c0_i32 = arith.constant 0 : i32
    %c0_i32_0 = arith.constant 0 : i32
    return %arg0, %c0_i32 : i32, i32
  }
  func.func @transform_21(%arg0: i32) -> (i32, i32) {
    %c0_i32 = arith.constant 0 : i32
    %c0_i32_0 = arith.constant 0 : i32
    return %arg0, %c0_i32 : i32, i32
  }
}

</mosaic_0001>

<llo_original>
// kernel: fconv_forward.1
$region0: #{fconv_forward.1}
  #allocation0 [shape = 'u32[]', space=smem, size = 0x4, offset = 0x4, fixed_abs, tag = 'smem constant byte address 0x4 - core index']
  #allocation1 [shape = 'u32[144,128]{1,0:T(1,128)}', space=vmem, size = 0x12000, scoped, tag = 'internal scratch']
  #allocation2 [shape = 'f32[10,128]{1,0:T(8,128)}', space=vmem, size = 0x2000, scoped, tag = 'scratch operand']
  #allocation3 [shape = 'f32[8,384]{1,0:T(8,128)}', space=vmem, size = 0x3000, scoped, tag = 'scratch operand']
  #allocation4 [shape = 'f32[10,128]{1,0:T(8,128)}', space=vmem, size = 0x2000, scoped, tag = 'scratch operand']
  #allocation5 [shape = 'f32[8,384]{1,0:T(8,128)}', space=vmem, size = 0x3000, scoped, tag = 'scratch operand']
  %s0 = inlined_call_operand.vmem [shape: f32[16,128], index: 0, kind: input, shape index: {}]
  %s1 = inlined_call_operand.vmem [shape: f32[16,128], index: 1, kind: input, shape index: {}]
  %s2 = inlined_call_operand.vmem [shape: f32[2,1,8], index: 2, kind: input, shape index: {}]
  %s3 = inlined_call_operand.vmem [shape: f32[16,128], index: 3, kind: input, shape index: {}]
  %s4 = inlined_call_operand.vmem [shape: bf16[128,128], index: 4, kind: input, shape index: {}]
  %s5 = inlined_call_operand.vmem [shape: f32[1,128], index: 5, kind: input, shape index: {}]
  %s6 = inlined_call_operand.hbm [shape: bf16[2,384,256], index: 6, kind: input, shape index: {}]
  %s7 = inlined_call_operand.vmem [shape: f32[2,1,256], index: 7, kind: input, shape index: {}]
  %s8 = inlined_call_operand.vmem [shape: bf16[128,128], index: 8, kind: input, shape index: {}]
  %s9 = inlined_call_operand.vmem [shape: f32[1,128], index: 9, kind: input, shape index: {}]
  %s10 = inlined_call_operand.hbm [shape: bf16[128,128], index: 10, kind: input, shape index: {}]
  %s11 = inlined_call_operand.vmem [shape: f32[1,128], index: 11, kind: input, shape index: {}]
  %s12 = inlined_call_operand.hbm [shape: bf16[2,384,256], index: 12, kind: input, shape index: {}]
  %s13 = inlined_call_operand.vmem [shape: f32[2,1,256], index: 13, kind: input, shape index: {}]
  %s14 = inlined_call_operand.vmem [shape: bf16[2,128,128], index: 14, kind: input, shape index: {}]
  %s15 = inlined_call_operand.vmem [shape: f32[2,1,128], index: 15, kind: input, shape index: {}]
  %s16 = inlined_call_operand.vmem [shape: bf16[2,128,128], index: 16, kind: input, shape index: {}]
  %s17 = inlined_call_operand.hbm [shape: f32[2,1,128], index: 17, kind: input, shape index: {}]
  %s18 = inlined_call_operand.hbm [shape: bf16[128,128], index: 18, kind: input, shape index: {}]
  %s19 = inlined_call_operand.vmem [shape: f32[1,128], index: 19, kind: input, shape index: {}]
  %s20 = inlined_call_operand.hbm [shape: f32[16,128], index: 20, kind: output, shape index: {0}]
  %s21 = inlined_call_operand.hbm [shape: f32[16,8], index: 21, kind: output, shape index: {1}]
  %22 = xla_tuple %s20, %s21
  %s23 = sld [smem:[#allocation0]]
  $region141: #{fconv_forward.1} parent=0
    _
  %s25 = ssub.s32 1, %s23
  %s26 = scalar_select 0, %s25, %s23
  $region1: #{fconv_forward.1} parent=0
    #allocation6 [shape = 'u8[393216]{0}', space=vmem, size = 0x60000, scoped, tag = 'input window, operand 6, single buffered']
    #allocation7 [shape = 's32[2]{0}', space=sflag, size = 0x8, scoped, tag = 'scoped memory for fconv_forward.1']
    #allocation8 [shape = 's32[2]{0}', space=sflag, size = 0x8, scoped, tag = 'scoped memory for fconv_forward.1']
    #allocation9 [shape = 'u8[32768]{0}', space=vmem, size = 0x8000, scoped, tag = 'input window, operand 10, single buffered']
    #allocation10 [shape = 's32[1]{0}', space=sflag, size = 0x4, scoped, tag = 'scoped memory for fconv_forward.1']
    #allocation11 [shape = 'u8[393216]{0}', space=vmem, size = 0x60000, scoped, tag = 'input window, operand 12, single buffered']
    #allocation12 [shape = 'u8[1024]{0}', space=vmem, size = 0x400, scoped, tag = 'input window, operand 17, single buffered']
    #allocation13 [shape = 's32[1]{0}', space=sflag, size = 0x4, scoped, tag = 'scoped memory for fconv_forward.1']
    #allocation14 [shape = 'u8[32768]{0}', space=vmem, size = 0x8000, scoped, tag = 'input window, operand 18, single buffered']
    #allocation15 [shape = 'u8[8192]{0}', space=vmem, size = 0x2000, scoped, tag = 'output window, operand 0']
    #allocation16 [shape = 'u8[8192]{0}', space=vmem, size = 0x2000, scoped, tag = 'output window, operand 1']
    #allocation17 [shape = 's32[2]{0}', space=sflag, size = 0x8, scoped, tag = 'scoped memory for fconv_forward.1']
    %27 = vsyncpa [#allocation7], 0
    %28 = vsyncpa [#allocation10], 0
    %29 = vsyncpa [#allocation13], 0
    %30 = vsyncpa [#allocation8], 0
    %s31 = scalar_lea.sflag [#allocation8], 1
    %32 = vsyncpa %s31, 0
    %33 = vsyncpa [#allocation17], 0
    %s34 = scalar_lea.sflag [#allocation17], 1
    %35 = vsyncpa %s34, 0
    loop: start=0, step=1, limit=4
    $region2: #{fconv_forward.1} parent=1 // loop_pre_header
      _
    $region3: #{fconv_forward.1} parent=1 // loop_header
      %s37 = sphi 0, %s41
      %p38 = scmp.ge.s32.totalorder %s37, 4
      %s47 = sphi 0, %s49
      %s50 = sphi 0, %s47
      %s51 = sphi 0, %s50
      %s67 = sphi 0, %s51
      %s73 = sphi 0, %s75
      %s76 = sphi 0, %s73
      %s77 = sphi 0, %s76
      %s93 = sphi 0, %s77
      %s99 = sphi 0, %s101
      %s102 = sphi 0, %s99
      %s103 = sphi 0, %s102
      %s119 = sphi 0, %s103
      %s125 = sphi 0, %s127
      %s128 = sphi 0, %s125
      %s129 = sphi 0, %s128
      %s145 = sphi 0, %s129
      %s149 = sphi 0, %s149
      %s151 = sphi 0, %s149
      %s152 = sphi 0, %s151
      %s166 = sphi 0, %s152
      %s170 = sphi 0, %s170
      %s172 = sphi 0, %s170
      %s173 = sphi 0, %s172
      %s187 = sphi 0, %s173
      %s191 = sphi 0, %s191
      %s193 = sphi 0, %s191
      %s194 = sphi 0, %s193
      %s208 = sphi 0, %s194
      %s212 = sphi 0, %s212
      %s214 = sphi 0, %s212
      %s215 = sphi 0, %s214
      %s229 = sphi 0, %s215
      %s233 = sphi 0, %s233
      %s235 = sphi 0, %s233
      %s236 = sphi 0, %s235
      %s250 = sphi 0, %s236
      %s254 = sphi 0, %s254
      %s256 = sphi 0, %s254
      %s257 = sphi 0, %s256
      %s271 = sphi 0, %s257
      %s275 = sphi 0, %s275
      %s277 = sphi 0, %s275
      %s278 = sphi 0, %s277
      %s292 = sphi 0, %s278
      %s296 = sphi 0, %s296
      %s298 = sphi 0, %s296
      %s299 = sphi 0, %s298
      %s313 = sphi 0, %s299
      %s317 = sphi 0, %s317
      %s319 = sphi 0, %s317
      %s320 = sphi 0, %s319
      %s334 = sphi 0, %s320
      %s338 = sphi 0, %s338
      %s340 = sphi 0, %s338
      %s341 = sphi 0, %s340
      %s355 = sphi 0, %s341
      %s359 = sphi 0, %s359
      %s361 = sphi 0, %s359
      %s362 = sphi 0, %s361
      %s376 = sphi 0, %s362
      %s380 = sphi 0, %s380
      %s382 = sphi 0, %s380
      %s383 = sphi 0, %s382
      %s397 = sphi 0, %s383
      %s401 = sphi 0, %s401
      %s403 = sphi 0, %s401
      %s404 = sphi 0, %s403
      %s418 = sphi 0, %s404
      %s422 = sphi 0, %s422
      %s424 = sphi 0, %s422
      %s425 = sphi 0, %s424
      %s439 = sphi 0, %s425
      %s443 = sphi 0, %s443
      %s445 = sphi 0, %s443
      %s446 = sphi 0, %s445
      %s460 = sphi 0, %s446
      %s464 = sphi 0, %s464
      %s466 = sphi 0, %s464
      %s467 = sphi 0, %s466
      %s481 = sphi 0, %s467
      %s487 = sphi 0, %s489
      %s490 = sphi 0, %s487
      %s491 = sphi 0, %s490
      %s507 = sphi 0, %s491
      %s513 = sphi 0, %s515
      %s516 = sphi 0, %s513
      %s517 = sphi 0, %s516
      %s533 = sphi 0, %s517
    $region4: #{fconv_forward.1} parent=1 // loop_header_branch
      %40 = sbr.rel (%p38) target = $region8
    $region5: #{fconv_forward.1} parent=1 // loop_body
      %s42 = ssub.s32 %s37, 1
      %s43 = ssub.s32 %s37, 2
      %s44 = sadd.s32 %s37, 1
      %s45 = ssub.s32 %s37, %s44
      %p46 = scmp.eq.s32.totalorder %s45, 0
      %s48 = sadd.s32 %s47, 1
      %s49 = scalar_select %p46, %s47, %s48
      %p52 = pneg %p46
      %p53 = scmp.eq.s32.totalorder %s37, 1
      %p54 = por %p52, %p53
      %p55 = scmp.ne.s32.totalorder %s47, %s50
      %p56 = scmp.eq.s32.totalorder %s37, 0
      %p57 = por %p55, %p56
      %p58 = scmp.ne.s32.totalorder %s47, %s50
      %p59 = scmp.eq.s32.totalorder %s42, 1
      %p60 = por %p58, %p59
      %p61 = scmp.ne.s32.totalorder %s50, %s51
      %p62 = scmp.eq.s32.totalorder %s42, 0
      %p63 = por %p61, %p62
      %p64 = scmp.ne.s32.totalorder %s50, %s51
      %p65 = scmp.eq.s32.totalorder %s43, 1
      %p66 = por %p64, %p65
      %p68 = scmp.ne.s32.totalorder %s51, %s67
      %p69 = scmp.eq.s32.totalorder %s43, 0
      %p70 = por %p68, %p69
      %s71 = ssub.s32 %s37, %s44
      %p72 = scmp.eq.s32.totalorder %s71, 0
      %s74 = sadd.s32 %s73, 1
      %s75 = scalar_select %p72, %s73, %s74
      %p78 = pneg %p72
      %p79 = scmp.eq.s32.totalorder %s37, 1
      %p80 = por %p78, %p79
      %p81 = scmp.ne.s32.totalorder %s73, %s76
      %p82 = scmp.eq.s32.totalorder %s37, 0
      %p83 = por %p81, %p82
      %p84 = scmp.ne.s32.totalorder %s73, %s76
      %p85 = scmp.eq.s32.totalorder %s42, 1
      %p86 = por %p84, %p85
      %p87 = scmp.ne.s32.totalorder %s76, %s77
      %p88 = scmp.eq.s32.totalorder %s42, 0
      %p89 = por %p87, %p88
      %p90 = scmp.ne.s32.totalorder %s76, %s77
      %p91 = scmp.eq.s32.totalorder %s43, 1
      %p92 = por %p90, %p91
      %p94 = scmp.ne.s32.totalorder %s77, %s93
      %p95 = scmp.eq.s32.totalorder %s43, 0
      %p96 = por %p94, %p95
      %s97 = ssub.s32 %s37, %s44
      %p98 = scmp.eq.s32.totalorder %s97, 0
      %s100 = sadd.s32 %s99, 1
      %s101 = scalar_select %p98, %s99, %s100
      %p104 = pneg %p98
      %p105 = scmp.eq.s32.totalorder %s37, 1
      %p106 = por %p104, %p105
      %p107 = scmp.ne.s32.totalorder %s99, %s102
      %p108 = scmp.eq.s32.totalorder %s37, 0
      %p109 = por %p107, %p108
      %p110 = scmp.ne.s32.totalorder %s99, %s102
      %p111 = scmp.eq.s32.totalorder %s42, 1
      %p112 = por %p110, %p111
      %p113 = scmp.ne.s32.totalorder %s102, %s103
      %p114 = scmp.eq.s32.totalorder %s42, 0
      %p115 = por %p113, %p114
      %p116 = scmp.ne.s32.totalorder %s102, %s103
      %p117 = scmp.eq.s32.totalorder %s43, 1
      %p118 = por %p116, %p117
      %p120 = scmp.ne.s32.totalorder %s103, %s119
      %p121 = scmp.eq.s32.totalorder %s43, 0
      %p122 = por %p120, %p121
      %s123 = ssub.s32 %s37, %s44
      %p124 = scmp.eq.s32.totalorder %s123, 0
      %s126 = sadd.s32 %s125, 1
      %s127 = scalar_select %p124, %s125, %s126
      %p130 = pneg %p124
      %p131 = scmp.eq.s32.totalorder %s37, 1
      %p132 = por %p130, %p131
      %p133 = scmp.ne.s32.totalorder %s125, %s128
      %p134 = scmp.eq.s32.totalorder %s37, 0
      %p135 = por %p133, %p134
      %p136 = scmp.ne.s32.totalorder %s125, %s128
      %p137 = scmp.eq.s32.totalorder %s42, 1
      %p138 = por %p136, %p137
      %p139 = scmp.ne.s32.totalorder %s128, %s129
      %p140 = scmp.eq.s32.totalorder %s42, 0
      %p141 = por %p139, %p140
      %p142 = scmp.ne.s32.totalorder %s128, %s129
      %p143 = scmp.eq.s32.totalorder %s43, 1
      %p144 = por %p142, %p143
      %p146 = scmp.ne.s32.totalorder %s129, %s145
      %p147 = scmp.eq.s32.totalorder %s43, 0
      %p148 = por %p146, %p147
      %s150 = sadd.s32 %s149, 1
      %p153 = scmp.eq.s32.totalorder %s37, 1
      %p154 = scmp.ne.s32.totalorder %s149, %s151
      %p155 = scmp.eq.s32.totalorder %s37, 0
      %p156 = por %p154, %p155
      %p157 = scmp.ne.s32.totalorder %s149, %s151
      %p158 = scmp.eq.s32.totalorder %s42, 1
      %p159 = por %p157, %p158
      %p160 = scmp.ne.s32.totalorder %s151, %s152
      %p161 = scmp.eq.s32.totalorder %s42, 0
      %p162 = por %p160, %p161
      %p163 = scmp.ne.s32.totalorder %s151, %s152
      %p164 = scmp.eq.s32.totalorder %s43, 1
      %p165 = por %p163, %p164
      %p167 = scmp.ne.s32.totalorder %s152, %s166
      %p168 = scmp.eq.s32.totalorder %s43, 0
      %p169 = por %p167, %p168
      %s171 = sadd.s32 %s170, 1
      %p174 = scmp.eq.s32.totalorder %s37, 1
      %p175 = scmp.ne.s32.totalorder %s170, %s172
      %p176 = scmp.eq.s32.totalorder %s37, 0
      %p177 = por %p175, %p176
      %p178 = scmp.ne.s32.totalorder %s170, %s172
      %p179 = scmp.eq.s32.totalorder %s42, 1
      %p180 = por %p178, %p179
      %p181 = scmp.ne.s32.totalorder %s172, %s173
      %p182 = scmp.eq.s32.totalorder %s42, 0
      %p183 = por %p181, %p182
      %p184 = scmp.ne.s32.totalorder %s172, %s173
      %p185 = scmp.eq.s32.totalorder %s43, 1
      %p186 = por %p184, %p185
      %p188 = scmp.ne.s32.totalorder %s173, %s187
      %p189 = scmp.eq.s32.totalorder %s43, 0
      %p190 = por %p188, %p189
      %s192 = sadd.s32 %s191, 1
      %p195 = scmp.eq.s32.totalorder %s37, 1
      %p196 = scmp.ne.s32.totalorder %s191, %s193
      %p197 = scmp.eq.s32.totalorder %s37, 0
      %p198 = por %p196, %p197
      %p199 = scmp.ne.s32.totalorder %s191, %s193
      %p200 = scmp.eq.s32.totalorder %s42, 1
      %p201 = por %p199, %p200
      %p202 = scmp.ne.s32.totalorder %s193, %s194
      %p203 = scmp.eq.s32.totalorder %s42, 0
      %p204 = por %p202, %p203
      %p205 = scmp.ne.s32.totalorder %s193, %s194
      %p206 = scmp.eq.s32.totalorder %s43, 1
      %p207 = por %p205, %p206
      %p209 = scmp.ne.s32.totalorder %s194, %s208
      %p210 = scmp.eq.s32.totalorder %s43, 0
      %p211 = por %p209, %p210
      %s213 = sadd.s32 %s212, 1
      %p216 = scmp.eq.s32.totalorder %s37, 1
      %p217 = scmp.ne.s32.totalorder %s212, %s214
      %p218 = scmp.eq.s32.totalorder %s37, 0
      %p219 = por %p217, %p218
      %p220 = scmp.ne.s32.totalorder %s212, %s214
      %p221 = scmp.eq.s32.totalorder %s42, 1
      %p222 = por %p220, %p221
      %p223 = scmp.ne.s32.totalorder %s214, %s215
      %p224 = scmp.eq.s32.totalorder %s42, 0
      %p225 = por %p223, %p224
      %p226 = scmp.ne.s32.totalorder %s214, %s215
      %p227 = scmp.eq.s32.totalorder %s43, 1
      %p228 = por %p226, %p227
      %p230 = scmp.ne.s32.totalorder %s215, %s229
      %p231 = scmp.eq.s32.totalorder %s43, 0
      %p232 = por %p230, %p231
      %s234 = sadd.s32 %s233, 1
      %p237 = scmp.eq.s32.totalorder %s37, 1
      %p238 = scmp.ne.s32.totalorder %s233, %s235
      %p239 = scmp.eq.s32.totalorder %s37, 0
      %p240 = por %p238, %p239
      %p241 = scmp.ne.s32.totalorder %s233, %s235
      %p242 = scmp.eq.s32.totalorder %s42, 1
      %p243 = por %p241, %p242
      %p244 = scmp.ne.s32.totalorder %s235, %s236
      %p245 = scmp.eq.s32.totalorder %s42, 0
      %p246 = por %p244, %p245
      %p247 = scmp.ne.s32.totalorder %s235, %s236
      %p248 = scmp.eq.s32.totalorder %s43, 1
      %p249 = por %p247, %p248
      %p251 = scmp.ne.s32.totalorder %s236, %s250
      %p252 = scmp.eq.s32.totalorder %s43, 0
      %p253 = por %p251, %p252
      %s255 = sadd.s32 %s254, 1
      %p258 = scmp.eq.s32.totalorder %s37, 1
      %p259 = scmp.ne.s32.totalorder %s254, %s256
      %p260 = scmp.eq.s32.totalorder %s37, 0
      %p261 = por %p259, %p260
      %p262 = scmp.ne.s32.totalorder %s254, %s256
      %p263 = scmp.eq.s32.totalorder %s42, 1
      %p264 = por %p262, %p263
      %p265 = scmp.ne.s32.totalorder %s256, %s257
      %p266 = scmp.eq.s32.totalorder %s42, 0
      %p267 = por %p265, %p266
      %p268 = scmp.ne.s32.totalorder %s256, %s257
      %p269 = scmp.eq.s32.totalorder %s43, 1
      %p270 = por %p268, %p269
      %p272 = scmp.ne.s32.totalorder %s257, %s271
      %p273 = scmp.eq.s32.totalorder %s43, 0
      %p274 = por %p272, %p273
      %s276 = sadd.s32 %s275, 1
      %p279 = scmp.eq.s32.totalorder %s37, 1
      %p280 = scmp.ne.s32.totalorder %s275, %s277
      %p281 = scmp.eq.s32.totalorder %s37, 0
      %p282 = por %p280, %p281
      %p283 = scmp.ne.s32.totalorder %s275, %s277
      %p284 = scmp.eq.s32.totalorder %s42, 1
      %p285 = por %p283, %p284
      %p286 = scmp.ne.s32.totalorder %s277, %s278
      %p287 = scmp.eq.s32.totalorder %s42, 0
      %p288 = por %p286, %p287
      %p289 = scmp.ne.s32.totalorder %s277, %s278
      %p290 = scmp.eq.s32.totalorder %s43, 1
      %p291 = por %p289, %p290
      %p293 = scmp.ne.s32.totalorder %s278, %s292
      %p294 = scmp.eq.s32.totalorder %s43, 0
      %p295 = por %p293, %p294
      %s297 = sadd.s32 %s296, 1
      %p300 = scmp.eq.s32.totalorder %s37, 1
      %p301 = scmp.ne.s32.totalorder %s296, %s298
      %p302 = scmp.eq.s32.totalorder %s37, 0
      %p303 = por %p301, %p302
      %p304 = scmp.ne.s32.totalorder %s296, %s298
      %p305 = scmp.eq.s32.totalorder %s42, 1
      %p306 = por %p304, %p305
      %p307 = scmp.ne.s32.totalorder %s298, %s299
      %p308 = scmp.eq.s32.totalorder %s42, 0
      %p309 = por %p307, %p308
      %p310 = scmp.ne.s32.totalorder %s298, %s299
      %p311 = scmp.eq.s32.totalorder %s43, 1
      %p312 = por %p310, %p311
      %p314 = scmp.ne.s32.totalorder %s299, %s313
      %p315 = scmp.eq.s32.totalorder %s43, 0
      %p316 = por %p314, %p315
      %s318 = sadd.s32 %s317, 1
      %p321 = scmp.eq.s32.totalorder %s37, 1
      %p322 = scmp.ne.s32.totalorder %s317, %s319
      %p323 = scmp.eq.s32.totalorder %s37, 0
      %p324 = por %p322, %p323
      %p325 = scmp.ne.s32.totalorder %s317, %s319
      %p326 = scmp.eq.s32.totalorder %s42, 1
      %p327 = por %p325, %p326
      %p328 = scmp.ne.s32.totalorder %s319, %s320
      %p329 = scmp.eq.s32.totalorder %s42, 0
      %p330 = por %p328, %p329
      %p331 = scmp.ne.s32.totalorder %s319, %s320
      %p332 = scmp.eq.s32.totalorder %s43, 1
      %p333 = por %p331, %p332
      %p335 = scmp.ne.s32.totalorder %s320, %s334
      %p336 = scmp.eq.s32.totalorder %s43, 0
      %p337 = por %p335, %p336
      %s339 = sadd.s32 %s338, 1
      %p342 = scmp.eq.s32.totalorder %s37, 1
      %p343 = scmp.ne.s32.totalorder %s338, %s340
      %p344 = scmp.eq.s32.totalorder %s37, 0
      %p345 = por %p343, %p344
      %p346 = scmp.ne.s32.totalorder %s338, %s340
      %p347 = scmp.eq.s32.totalorder %s42, 1
      %p348 = por %p346, %p347
      %p349 = scmp.ne.s32.totalorder %s340, %s341
      %p350 = scmp.eq.s32.totalorder %s42, 0
      %p351 = por %p349, %p350
      %p352 = scmp.ne.s32.totalorder %s340, %s341
      %p353 = scmp.eq.s32.totalorder %s43, 1
      %p354 = por %p352, %p353
      %p356 = scmp.ne.s32.totalorder %s341, %s355
      %p357 = scmp.eq.s32.totalorder %s43, 0
      %p358 = por %p356, %p357
      %s360 = sadd.s32 %s359, 1
      %p363 = scmp.eq.s32.totalorder %s37, 1
      %p364 = scmp.ne.s32.totalorder %s359, %s361
      %p365 = scmp.eq.s32.totalorder %s37, 0
      %p366 = por %p364, %p365
      %p367 = scmp.ne.s32.totalorder %s359, %s361
      %p368 = scmp.eq.s32.totalorder %s42, 1
      %p369 = por %p367, %p368
      %p370 = scmp.ne.s32.totalorder %s361, %s362
      %p371 = scmp.eq.s32.totalorder %s42, 0
      %p372 = por %p370, %p371
      %p373 = scmp.ne.s32.totalorder %s361, %s362
      %p374 = scmp.eq.s32.totalorder %s43, 1
      %p375 = por %p373, %p374
      %p377 = scmp.ne.s32.totalorder %s362, %s376
      %p378 = scmp.eq.s32.totalorder %s43, 0
      %p379 = por %p377, %p378
      %s381 = sadd.s32 %s380, 1
      %p384 = scmp.eq.s32.totalorder %s37, 1
      %p385 = scmp.ne.s32.totalorder %s380, %s382
      %p386 = scmp.eq.s32.totalorder %s37, 0
      %p387 = por %p385, %p386
      %p388 = scmp.ne.s32.totalorder %s380, %s382
      %p389 = scmp.eq.s32.totalorder %s42, 1
      %p390 = por %p388, %p389
      %p391 = scmp.ne.s32.totalorder %s382, %s383
      %p392 = scmp.eq.s32.totalorder %s42, 0
      %p393 = por %p391, %p392
      %p394 = scmp.ne.s32.totalorder %s382, %s383
      %p395 = scmp.eq.s32.totalorder %s43, 1
      %p396 = por %p394, %p395
      %p398 = scmp.ne.s32.totalorder %s383, %s397
      %p399 = scmp.eq.s32.totalorder %s43, 0
      %p400 = por %p398, %p399
      %s402 = sadd.s32 %s401, 1
      %p405 = scmp.eq.s32.totalorder %s37, 1
      %p406 = scmp.ne.s32.totalorder %s401, %s403
      %p407 = scmp.eq.s32.totalorder %s37, 0
      %p408 = por %p406, %p407
      %p409 = scmp.ne.s32.totalorder %s401, %s403
      %p410 = scmp.eq.s32.totalorder %s42, 1
      %p411 = por %p409, %p410
      %p412 = scmp.ne.s32.totalorder %s403, %s404
      %p413 = scmp.eq.s32.totalorder %s42, 0
      %p414 = por %p412, %p413
      %p415 = scmp.ne.s32.totalorder %s403, %s404
      %p416 = scmp.eq.s32.totalorder %s43, 1
      %p417 = por %p415, %p416
      %p419 = scmp.ne.s32.totalorder %s404, %s418
      %p420 = scmp.eq.s32.totalorder %s43, 0
      %p421 = por %p419, %p420
      %s423 = sadd.s32 %s422, 1
      %p426 = scmp.eq.s32.totalorder %s37, 1
      %p427 = scmp.ne.s32.totalorder %s422, %s424
      %p428 = scmp.eq.s32.totalorder %s37, 0
      %p429 = por %p427, %p428
      %p430 = scmp.ne.s32.totalorder %s422, %s424
      %p431 = scmp.eq.s32.totalorder %s42, 1
      %p432 = por %p430, %p431
      %p433 = scmp.ne.s32.totalorder %s424, %s425
      %p434 = scmp.eq.s32.totalorder %s42, 0
      %p435 = por %p433, %p434
      %p436 = scmp.ne.s32.totalorder %s424, %s425
      %p437 = scmp.eq.s32.totalorder %s43, 1
      %p438 = por %p436, %p437
      %p440 = scmp.ne.s32.totalorder %s425, %s439
      %p441 = scmp.eq.s32.totalorder %s43, 0
      %p442 = por %p440, %p441
      %s444 = sadd.s32 %s443, 1
      %p447 = scmp.eq.s32.totalorder %s37, 1
      %p448 = scmp.ne.s32.totalorder %s443, %s445
      %p449 = scmp.eq.s32.totalorder %s37, 0
      %p450 = por %p448, %p449
      %p451 = scmp.ne.s32.totalorder %s443, %s445
      %p452 = scmp.eq.s32.totalorder %s42, 1
      %p453 = por %p451, %p452
      %p454 = scmp.ne.s32.totalorder %s445, %s446
      %p455 = scmp.eq.s32.totalorder %s42, 0
      %p456 = por %p454, %p455
      %p457 = scmp.ne.s32.totalorder %s445, %s446
      %p458 = scmp.eq.s32.totalorder %s43, 1
      %p459 = por %p457, %p458
      %p461 = scmp.ne.s32.totalorder %s446, %s460
      %p462 = scmp.eq.s32.totalorder %s43, 0
      %p463 = por %p461, %p462
      %s465 = sadd.s32 %s464, 1
      %p468 = scmp.eq.s32.totalorder %s37, 1
      %p469 = scmp.ne.s32.totalorder %s464, %s466
      %p470 = scmp.eq.s32.totalorder %s37, 0
      %p471 = por %p469, %p470
      %p472 = scmp.ne.s32.totalorder %s464, %s466
      %p473 = scmp.eq.s32.totalorder %s42, 1
      %p474 = por %p472, %p473
      %p475 = scmp.ne.s32.totalorder %s466, %s467
      %p476 = scmp.eq.s32.totalorder %s42, 0
      %p477 = por %p475, %p476
      %p478 = scmp.ne.s32.totalorder %s466, %s467
      %p479 = scmp.eq.s32.totalorder %s43, 1
      %p480 = por %p478, %p479
      %p482 = scmp.ne.s32.totalorder %s467, %s481
      %p483 = scmp.eq.s32.totalorder %s43, 0
      %p484 = por %p482, %p483
      %s485 = ssub.s32 %s37, %s44
      %p486 = scmp.eq.s32.totalorder %s485, 0
      %s488 = sadd.s32 %s487, 1
      %s489 = scalar_select %p486, %s487, %s488
      %p492 = pneg %p486
      %p493 = scmp.eq.s32.totalorder %s37, 1
      %p494 = por %p492, %p493
      %p495 = scmp.ne.s32.totalorder %s487, %s490
      %p496 = scmp.eq.s32.totalorder %s37, 0
      %p497 = por %p495, %p496
      %p498 = scmp.ne.s32.totalorder %s487, %s490
      %p499 = scmp.eq.s32.totalorder %s42, 1
      %p500 = por %p498, %p499
      %p501 = scmp.ne.s32.totalorder %s490, %s491
      %p502 = scmp.eq.s32.totalorder %s42, 0
      %p503 = por %p501, %p502
      %p504 = scmp.ne.s32.totalorder %s490, %s491
      %p505 = scmp.eq.s32.totalorder %s43, 1
      %p506 = por %p504, %p505
      %p508 = scmp.ne.s32.totalorder %s491, %s507
      %p509 = scmp.eq.s32.totalorder %s43, 0
      %p510 = por %p508, %p509
      %s511 = ssub.s32 %s37, %s44
      %p512 = scmp.eq.s32.totalorder %s511, 0
      %s514 = sadd.s32 %s513, 1
      %s515 = scalar_select %p512, %s513, %s514
      %p518 = pneg %p512
      %p519 = scmp.eq.s32.totalorder %s37, 1
      %p520 = por %p518, %p519
      %p521 = scmp.ne.s32.totalorder %s513, %s516
      %p522 = scmp.eq.s32.totalorder %s37, 0
      %p523 = por %p521, %p522
      %p524 = scmp.ne.s32.totalorder %s513, %s516
      %p525 = scmp.eq.s32.totalorder %s42, 1
      %p526 = por %p524, %p525
      %p527 = scmp.ne.s32.totalorder %s516, %s517
      %p528 = scmp.eq.s32.totalorder %s42, 0
      %p529 = por %p527, %p528
      %p530 = scmp.ne.s32.totalorder %s516, %s517
      %p531 = scmp.eq.s32.totalorder %s43, 1
      %p532 = por %p530, %p531
      %p534 = scmp.ne.s32.totalorder %s517, %s533
      %p535 = scmp.eq.s32.totalorder %s43, 0
      %p536 = por %p534, %p535
      %p537 = scmp.le.s32.totalorder 1, %s37
      %p538 = scmp.lt.s32.totalorder %s37, 3
      %p539 = pnand %p537, %p538
      %p540 = pneg %p539
      // Predicated region
      $region9: #{fconv_forward.1} parent=5 // pred_check
        _
      $region10: #{fconv_forward.1} parent=5 // pred_check_branch
        %542 = sbr.rel (%p539) target = $region12
      $region11: #{fconv_forward.1} parent=5 // pred_region
        %s543 = ssub.s32 %s37, 1
        // Predicated region
        $region13: #{fconv_forward.1} parent=11 // pred_check
          %p544 = pneg %p162
        $region14: #{fconv_forward.1} parent=11 // pred_check_branch
          %546 = sbr.rel (%p544) target = $region16
        $region15: #{fconv_forward.1} parent=11 // pred_region
          _
        $region16: #{fconv_forward.1} parent=11 // pred_fallthru
          _
        // Predicated region
        $region17: #{fconv_forward.1} parent=11 // pred_check
          %p547 = pneg %p183
        $region18: #{fconv_forward.1} parent=11 // pred_check_branch
          %549 = sbr.rel (%p547) target = $region20
        $region19: #{fconv_forward.1} parent=11 // pred_region
          _
        $region20: #{fconv_forward.1} parent=11 // pred_fallthru
          _
        // Predicated region
        $region21: #{fconv_forward.1} parent=11 // pred_check
          %p550 = pneg %p204
        $region22: #{fconv_forward.1} parent=11 // pred_check_branch
          %552 = sbr.rel (%p550) target = $region24
        $region23: #{fconv_forward.1} parent=11 // pred_region
          %s554 = ssub.s32 12288, 12288
          %555 = vsyncadd [#allocation7], %s554
          %s556 = sshll.u32 [#allocation6], 4
          %s557 = int_to_ptr.vmem [resolvable:$true] %s556
          %562 = dma.hbm_to_vmem [thread:$0]  %s6, 12288, %s557, [#allocation7], 128, 128, 8
        $region24: #{fconv_forward.1} parent=11 // pred_fallthru
          _
        // Predicated region
        $region25: #{fconv_forward.1} parent=11 // pred_check
          %p563 = pneg %p225
        $region26: #{fconv_forward.1} parent=11 // pred_check_branch
          %565 = sbr.rel (%p563) target = $region28
        $region27: #{fconv_forward.1} parent=11 // pred_region
          _
        $region28: #{fconv_forward.1} parent=11 // pred_fallthru
          _
        // Predicated region
        $region29: #{fconv_forward.1} parent=11 // pred_check
          %p566 = pneg %p246
        $region30: #{fconv_forward.1} parent=11 // pred_check_branch
          %568 = sbr.rel (%p566) target = $region32
        $region31: #{fconv_forward.1} parent=11 // pred_region
          _
        $region32: #{fconv_forward.1} parent=11 // pred_fallthru
          _
        // Predicated region
        $region33: #{fconv_forward.1} parent=11 // pred_check
          %p569 = pneg %p267
        $region34: #{fconv_forward.1} parent=11 // pred_check_branch
          %571 = sbr.rel (%p569) target = $region36
        $region35: #{fconv_forward.1} parent=11 // pred_region
          _
        $region36: #{fconv_forward.1} parent=11 // pred_fallthru
          _
        // Predicated region
        $region37: #{fconv_forward.1} parent=11 // pred_check
          %p572 = pneg %p288
        $region38: #{fconv_forward.1} parent=11 // pred_check_branch
          %574 = sbr.rel (%p572) target = $region40
        $region39: #{fconv_forward.1} parent=11 // pred_region
          %s576 = ssub.s32 1024, 1024
          %577 = vsyncadd [#allocation10], %s576
          %s578 = sshll.u32 [#allocation9], 4
          %s579 = int_to_ptr.vmem [resolvable:$true] %s578
          %584 = dma.hbm_to_vmem [thread:$0]  %s10, 1024, %s579, [#allocation10], 64, 64, 4
        $region40: #{fconv_forward.1} parent=11 // pred_fallthru
          _
        // Predicated region
        $region41: #{fconv_forward.1} parent=11 // pred_check
          %p585 = pneg %p309
        $region42: #{fconv_forward.1} parent=11 // pred_check_branch
          %587 = sbr.rel (%p585) target = $region44
        $region43: #{fconv_forward.1} parent=11 // pred_region
          _
        $region44: #{fconv_forward.1} parent=11 // pred_fallthru
          _
        // Predicated region
        $region45: #{fconv_forward.1} parent=11 // pred_check
          %p588 = pneg %p330
        $region46: #{fconv_forward.1} parent=11 // pred_check_branch
          %590 = sbr.rel (%p588) target = $region48
        $region47: #{fconv_forward.1} parent=11 // pred_region
          %s592 = ssub.s32 12288, 12288
          %593 = vsyncadd [#allocation10], %s592
          %s594 = sshll.u32 [#allocation11], 4
          %s595 = int_to_ptr.vmem [resolvable:$true] %s594
          %600 = dma.hbm_to_vmem [thread:$0]  %s12, 12288, %s595, [#allocation10], 128, 128, 8
        $region48: #{fconv_forward.1} parent=11 // pred_fallthru
          _
        // Predicated region
        $region49: #{fconv_forward.1} parent=11 // pred_check
          %p601 = pneg %p351
        $region50: #{fconv_forward.1} parent=11 // pred_check_branch
          %603 = sbr.rel (%p601) target = $region52
        $region51: #{fconv_forward.1} parent=11 // pred_region
          _
        $region52: #{fconv_forward.1} parent=11 // pred_fallthru
          _
        // Predicated region
        $region53: #{fconv_forward.1} parent=11 // pred_check
          %p604 = pneg %p372
        $region54: #{fconv_forward.1} parent=11 // pred_check_branch
          %606 = sbr.rel (%p604) target = $region56
        $region55: #{fconv_forward.1} parent=11 // pred_region
          _
        $region56: #{fconv_forward.1} parent=11 // pred_fallthru
          _
        // Predicated region
        $region57: #{fconv_forward.1} parent=11 // pred_check
          %p607 = pneg %p393
        $region58: #{fconv_forward.1} parent=11 // pred_check_branch
          %609 = sbr.rel (%p607) target = $region60
        $region59: #{fconv_forward.1} parent=11 // pred_region
          _
        $region60: #{fconv_forward.1} parent=11 // pred_fallthru
          _
        // Predicated region
        $region61: #{fconv_forward.1} parent=11 // pred_check
          %p610 = pneg %p414
        $region62: #{fconv_forward.1} parent=11 // pred_check_branch
          %612 = sbr.rel (%p610) target = $region64
        $region63: #{fconv_forward.1} parent=11 // pred_region
          _
        $region64: #{fconv_forward.1} parent=11 // pred_fallthru
          _
        // Predicated region
        $region65: #{fconv_forward.1} parent=11 // pred_check
          %p613 = pneg %p435
        $region66: #{fconv_forward.1} parent=11 // pred_check_branch
          %615 = sbr.rel (%p613) target = $region68
        $region67: #{fconv_forward.1} parent=11 // pred_region
          %s617 = ssub.s32 32, 32
          %618 = vsyncadd [#allocation13], %s617
          %s619 = sshll.u32 [#allocation12], 4
          %s620 = int_to_ptr.vmem [resolvable:$true] %s619
          %625 = dma.hbm_to_vmem [thread:$0]  %s17, 32, %s620, [#allocation13], 16, 16, 1
        $region68: #{fconv_forward.1} parent=11 // pred_fallthru
          _
        // Predicated region
        $region69: #{fconv_forward.1} parent=11 // pred_check
          %p626 = pneg %p456
        $region70: #{fconv_forward.1} parent=11 // pred_check_branch
          %628 = sbr.rel (%p626) target = $region72
        $region71: #{fconv_forward.1} parent=11 // pred_region
          %s630 = ssub.s32 1024, 1024
          %631 = vsyncadd [#allocation13], %s630
          %s632 = sshll.u32 [#allocation14], 4
          %s633 = int_to_ptr.vmem [resolvable:$true] %s632
          %638 = dma.hbm_to_vmem [thread:$0]  %s18, 1024, %s633, [#allocation13], 64, 64, 4
        $region72: #{fconv_forward.1} parent=11 // pred_fallthru
          _
        // Predicated region
        $region73: #{fconv_forward.1} parent=11 // pred_check
          %p639 = pneg %p477
        $region74: #{fconv_forward.1} parent=11 // pred_check_branch
          %641 = sbr.rel (%p639) target = $region76
        $region75: #{fconv_forward.1} parent=11 // pred_region
          _
        $region76: #{fconv_forward.1} parent=11 // pred_fallthru
          _
      $region12: #{fconv_forward.1} parent=5 // pred_fallthru
        _
      %p642 = scmp.lt.s32.totalorder %s37, 2
      // Predicated region
      $region77: #{fconv_forward.1} parent=5 // pred_check
        %p643 = pneg %p642
      $region78: #{fconv_forward.1} parent=5 // pred_check_branch
        %645 = sbr.rel (%p643) target = $region80
      $region79: #{fconv_forward.1} parent=5 // pred_region
        // Predicated region
        $region81: #{fconv_forward.1} parent=79 // pred_check
          %p646 = pneg %p57
        $region82: #{fconv_forward.1} parent=79 // pred_check_branch
          %648 = sbr.rel (%p646) target = $region84
        $region83: #{fconv_forward.1} parent=79 // pred_region
          %p649 = scmp.lt.s32.totalorder %s37, 1
          %s650 = scalar_select %p649, %s37, 1
          %s651 = smul.addr %s650, 8
          %s652 = scalar_lea.vmem %s0, %s651
        $region84: #{fconv_forward.1} parent=79 // pred_fallthru
          _
        // Predicated region
        $region85: #{fconv_forward.1} parent=79 // pred_check
          %p653 = pneg %p83
        $region86: #{fconv_forward.1} parent=79 // pred_check_branch
          %655 = sbr.rel (%p653) target = $region88
        $region87: #{fconv_forward.1} parent=79 // pred_region
          %p656 = scmp.lt.s32.totalorder %s37, 1
          %s657 = scalar_select %p656, %s37, 1
          %s658 = smul.addr %s657, 8
          %s659 = scalar_lea.vmem %s1, %s658
        $region88: #{fconv_forward.1} parent=79 // pred_fallthru
          _
        // Predicated region
        $region89: #{fconv_forward.1} parent=79 // pred_check
          %p660 = pneg %p109
        $region90: #{fconv_forward.1} parent=79 // pred_check_branch
          %662 = sbr.rel (%p660) target = $region92
        $region91: #{fconv_forward.1} parent=79 // pred_region
          %p663 = scmp.lt.s32.totalorder %s37, 1
          %s664 = scalar_select %p663, %s37, 1
          %s665 = scalar_lea.vmem %s2, %s664
        $region92: #{fconv_forward.1} parent=79 // pred_fallthru
          _
        // Predicated region
        $region93: #{fconv_forward.1} parent=79 // pred_check
          %p666 = pneg %p135
        $region94: #{fconv_forward.1} parent=79 // pred_check_branch
          %668 = sbr.rel (%p666) target = $region96
        $region95: #{fconv_forward.1} parent=79 // pred_region
          %p669 = scmp.lt.s32.totalorder %s37, 1
          %s670 = scalar_select %p669, %s37, 1
          %s671 = smul.addr %s670, 8
          %s672 = scalar_lea.vmem %s3, %s671
        $region96: #{fconv_forward.1} parent=79 // pred_fallthru
          _
      $region80: #{fconv_forward.1} parent=5 // pred_fallthru
        _
      %p673 = scmp.le.s32.totalorder 1, %s37
      %p674 = scmp.lt.s32.totalorder %s37, 3
      %p675 = pnand %p673, %p674
      %p676 = pneg %p675
      // Predicated region
      $region97: #{fconv_forward.1} parent=5 // pred_check
        _
      $region98: #{fconv_forward.1} parent=5 // pred_check_branch
        %678 = sbr.rel (%p675) target = $region100
      $region99: #{fconv_forward.1} parent=5 // pred_region
        %s679 = ssub.s32 %s37, 1
        // Predicated region
        $region101: #{fconv_forward.1} parent=99 // pred_check
          %p680 = pneg %p204
        $region102: #{fconv_forward.1} parent=99 // pred_check_branch
          %682 = sbr.rel (%p680) target = $region104
        $region103: #{fconv_forward.1} parent=99 // pred_region
          %683 = dma.done [#allocation7], 12288
        $region104: #{fconv_forward.1} parent=99 // pred_fallthru
          _
        // Predicated region
        $region105: #{fconv_forward.1} parent=99 // pred_check
          %p684 = pneg %p288
        $region106: #{fconv_forward.1} parent=99 // pred_check_branch
          %686 = sbr.rel (%p684) target = $region108
        $region107: #{fconv_forward.1} parent=99 // pred_region
          %687 = dma.done [#allocation10], 1024
        $region108: #{fconv_forward.1} parent=99 // pred_fallthru
          _
        // Predicated region
        $region109: #{fconv_forward.1} parent=99 // pred_check
          %p688 = pneg %p330
        $region110: #{fconv_forward.1} parent=99 // pred_check_branch
          %690 = sbr.rel (%p688) target = $region112
        $region111: #{fconv_forward.1} parent=99 // pred_region
          %691 = dma.done [#allocation10], 12288
        $region112: #{fconv_forward.1} parent=99 // pred_fallthru
          _
        // Predicated region
        $region113: #{fconv_forward.1} parent=99 // pred_check
          %p692 = pneg %p435
        $region114: #{fconv_forward.1} parent=99 // pred_check_branch
          %694 = sbr.rel (%p692) target = $region116
        $region115: #{fconv_forward.1} parent=99 // pred_region
          %695 = dma.done [#allocation13], 32
        $region116: #{fconv_forward.1} parent=99 // pred_fallthru
          _
        // Predicated region
        $region117: #{fconv_forward.1} parent=99 // pred_check
          %p696 = pneg %p456
        $region118: #{fconv_forward.1} parent=99 // pred_check_branch
          %698 = sbr.rel (%p696) target = $region120
        $region119: #{fconv_forward.1} parent=99 // pred_region
          %699 = dma.done [#allocation13], 1024
        $region120: #{fconv_forward.1} parent=99 // pred_fallthru
          _
        %p700 = scmp.lt.s32.totalorder %s42, 1
        %s701 = scalar_select %p700, %s42, 1
        %s702 = smul.addr %s701, 8
        %s703 = scalar_lea.vmem %s0, %s702
        %p704 = pneg %p63
        %p705 = pneg %p60
        %p706 = scmp.lt.s32.totalorder %s42, 1
        %s707 = scalar_select %p706, %s42, 1
        %s708 = smul.addr %s707, 8
        %s709 = scalar_lea.vmem %s1, %s708
        %p710 = pneg %p89
        %p711 = pneg %p86
        %p712 = scmp.lt.s32.totalorder %s42, 1
        %s713 = scalar_select %p712, %s42, 1
        %s714 = scalar_lea.vmem %s2, %s713
        %p715 = pneg %p115
        %p716 = pneg %p112
        %p717 = scmp.lt.s32.totalorder %s42, 1
        %s718 = scalar_select %p717, %s42, 1
        %s719 = smul.addr %s718, 8
        %s720 = scalar_lea.vmem %s3, %s719
        %p721 = pneg %p141
        %p722 = pneg %p138
        %p723 = pneg %p162
        %p724 = pneg %p159
        %p725 = pneg %p183
        %p726 = pneg %p180
        %p727 = pneg %p204
        %p728 = pneg %p201
        %p729 = pneg %p225
        %p730 = pneg %p222
        %p731 = pneg %p246
        %p732 = pneg %p243
        %p733 = pneg %p267
        %p734 = pneg %p264
        %p735 = pneg %p288
        %p736 = pneg %p285
        %p737 = pneg %p309
        %p738 = pneg %p306
        %p739 = pneg %p330
        %p740 = pneg %p327
        %p741 = pneg %p351
        %p742 = pneg %p348
        %p743 = pneg %p372
        %p744 = pneg %p369
        %p745 = pneg %p393
        %p746 = pneg %p390
        %p747 = pneg %p414
        %p748 = pneg %p411
        %p749 = pneg %p435
        %p750 = pneg %p432
        %p751 = pneg %p456
        %p752 = pneg %p453
        %p753 = pneg %p477
        %p754 = pneg %p474
        %p755 = pneg %p503
        %p756 = pneg %p500
        %s757 = sand.u32 %s490, 1
        %s758 = scalar_lea.sflag [#allocation8], %s757
        %s759 = sand.u32 %s490, 1
        %s760 = smul.addr %s759, 8
        %s761 = scalar_lea.vmem [#allocation15], %s760
        %p762 = pneg %p529
        %p763 = pneg %p526
        %s764 = sand.u32 %s516, 1
        %s765 = scalar_lea.sflag [#allocation17], %s764
        %s766 = sand.u32 %s516, 1
        %s767 = smul.addr %s766, 8
        %s768 = scalar_lea.vmem [#allocation16], %s767
        %p769 = scmp.lt.s32.totalorder %s42, 1
        %s770 = scalar_select %p769, %s42, 1
        %s771 = smul.addr %s770, 8
        %s772 = scalar_lea.vmem %s0, %s771
        %p773 = scmp.lt.s32.totalorder %s42, 1
        %s774 = scalar_select %p773, %s42, 1
        %s775 = smul.addr %s774, 8
        %s776 = scalar_lea.vmem %s1, %s775
        %p777 = scmp.lt.s32.totalorder %s42, 1
        %s778 = scalar_select %p777, %s42, 1
        %s779 = scalar_lea.vmem %s2, %s778
        %p780 = scmp.lt.s32.totalorder %s42, 1
        %s781 = scalar_select %p780, %s42, 1
        %s782 = smul.addr %s781, 8
        %s783 = scalar_lea.vmem %s3, %s782
        %v785 = vld [vmem:[%s772] sm:$0xff]
        %v786 = vld [vmem:[%s776] sm:$0xff]
        %v787 = vld [vmem:[%s4] sm:$0xf]
        %v788 = vld [vmem:[%s4 + $0x4] sm:$0xf]
        %v789 = vld [vmem:[%s4 + $0x8] sm:$0xf]
        %v790 = vld [vmem:[%s4 + $0xc] sm:$0xf]
        %v791 = vld [vmem:[%s4 + $0x10] sm:$0xf]
        %v792 = vld [vmem:[%s4 + $0x14] sm:$0xf]
        %v793 = vld [vmem:[%s4 + $0x18] sm:$0xf]
        %v794 = vld [vmem:[%s4 + $0x1c] sm:$0xf]
        %v795 = vld [vmem:[%s4 + $0x20] sm:$0xf]
        %v796 = vld [vmem:[%s4 + $0x24] sm:$0xf]
        %v797 = vld [vmem:[%s4 + $0x28] sm:$0xf]
        %v798 = vld [vmem:[%s4 + $0x2c] sm:$0xf]
        %v799 = vld [vmem:[%s4 + $0x30] sm:$0xf]
        %v800 = vld [vmem:[%s4 + $0x34] sm:$0xf]
        %v801 = vld [vmem:[%s4 + $0x38] sm:$0xf]
        %v802 = vld [vmem:[%s4 + $0x3c] sm:$0xf]
        %v803 = vpack.c.bf16 %v785, %v785
        %v804 = vld [vmem:[%s5] sm:$0x1]
        %v806 = vlaneseq
        %v807 = vshrl.u32 %v806, 7
        %v808 = vsub.s32 0, %v807
        %v809 = vrot.slane %v804, %v808
        %v827 = vunpack.c.l.b16 %v787
        %v828 = vunpack.c.l.b16 %v788
        %v829 = vunpack.c.l.b16 %v789
        %v830 = vunpack.c.l.b16 %v790
        %v831 = vunpack.c.l.b16 %v791
        %v832 = vunpack.c.l.b16 %v792
        %v833 = vunpack.c.l.b16 %v793
        %v834 = vunpack.c.l.b16 %v794
        %v835 = vunpack.c.l.b16 %v795
        %v836 = vunpack.c.l.b16 %v796
        %v837 = vunpack.c.l.b16 %v797
        %v838 = vunpack.c.l.b16 %v798
        %v839 = vunpack.c.l.b16 %v799
        %v840 = vunpack.c.l.b16 %v800
        %v841 = vunpack.c.l.b16 %v801
        %v842 = vunpack.c.l.b16 %v802
        %v843 = vpack.c.b16 %v828, %v827
        %v844 = vpack.c.b16 %v830, %v829
        %v845 = vpack.c.b16 %v832, %v831
        %v846 = vpack.c.b16 %v834, %v833
        %v847 = vpack.c.b16 %v836, %v835
        %v848 = vpack.c.b16 %v838, %v837
        %v849 = vpack.c.b16 %v840, %v839
        %v850 = vpack.c.b16 %v842, %v841
        %859 = vmatprep.subr.bf16.mxu0 0
        %860 = vmatpush1.bf16.msra.mxu0 %v843
        %861 = vmatprep.subr.bf16.mxu0 0
        %862 = vmatpush1.bf16.msra.mxu0 %v844
        %863 = vmatprep.subr.bf16.mxu0 0
        %864 = vmatpush1.bf16.msra.mxu0 %v845
        %865 = vmatprep.subr.bf16.mxu0 0
        %866 = vmatpush1.bf16.msra.mxu0 %v846
        %867 = vmatprep.subr.bf16.mxu0 0
        %868 = vmatpush1.bf16.msra.mxu0 %v847
        %869 = vmatprep.subr.bf16.mxu0 0
        %870 = vmatpush1.bf16.msra.mxu0 %v848
        %871 = vmatprep.subr.bf16.mxu0 0
        %872 = vmatpush1.bf16.msra.mxu0 %v849
        %873 = vmatprep.subr.bf16.mxu0 0
        %874 = vmatpush1.bf16.msra.mxu0 %v850
        %875 = vmatprep.subr.bf16.mxu0 0
        %876 = vmatpush1.bf16.msra.mxu0 0
        %877 = vmatprep.subr.bf16.mxu0 0
        %878 = vmatpush1.bf16.msra.mxu0 0
        %879 = vmatprep.subr.bf16.mxu0 0
        %880 = vmatpush1.bf16.msra.mxu0 0
        %881 = vmatprep.subr.bf16.mxu0 0
        %882 = vmatpush1.bf16.msra.mxu0 0
        %883 = vmatprep.subr.bf16.mxu0 0
        %884 = vmatpush1.bf16.msra.mxu0 0
        %885 = vmatprep.subr.bf16.mxu0 0
        %886 = vmatpush1.bf16.msra.mxu0 0
        %887 = vmatprep.subr.bf16.mxu0 0
        %888 = vmatpush1.bf16.msra.mxu0 0
        %889 = vmatprep.subr.bf16.mxu0 0
        %890 = vmatpush1.bf16.msra.mxu0 0
        %891 = vmatprep.mubr.bf16.mxu0 0
        %892 = vmatmul.mubr.bf16.gmra.mrb[0].mxu0 %v803
        %v893 = vpop.f32.mrb[0].mxu0
        %v894 = vadd.f32 %v809, %v893
        %v895 = vpop.f32.mrb[0].mxu0
        %v896 = vpop.f32.mrb[0].mxu0
        %v897 = vpop.f32.mrb[0].mxu0
        %898 = vdwg.mxu0
        %899 = vst [vmem:[#allocation2] sm:$0xff] 0.0
        %900 = vst [vmem:[#allocation2 + $0x8] sm:$0x3] 0.0
        %v901 = vmul.f32 %v894, %v786
        %902 = vst [vmem:[#allocation2 + $0x1] sm:$0xff] %v901
        %v903 = vld [vmem:[#allocation2] sm:$0xff]
        %904 = vst [vmem:[#allocation3] sm:$0xff] %v903
        %v905 = vld [vmem:[#allocation2 + $0x1] sm:$0xff]
        %906 = vst [vmem:[#allocation3 + $0x8] sm:$0xff] %v905
        %v907 = vld [vmem:[#allocation2 + $0x2] sm:$0xff]
        %908 = vst [vmem:[#allocation3 + $0x10] sm:$0xff] %v907
        %v909 = vld [vmem:[#allocation3] sm:$0xff]
        %v910 = vld [vmem:[#allocation3 + $0x8] sm:$0xff]
        %v911 = vld [vmem:[#allocation3 + $0x10] sm:$0xff]
        %v912 = vld [vmem:[#allocation6] sm:$0xff]
        %v913 = vld [vmem:[#allocation6 + $0x8] sm:$0xff]
        %v914 = vld [vmem:[#allocation6 + $0x10] sm:$0xff]
        %v915 = vld [vmem:[#allocation6 + $0x18] sm:$0xff]
        %v916 = vld [vmem:[#allocation6 + $0x20] sm:$0xff]
        %v917 = vld [vmem:[#allocation6 + $0x28] sm:$0xff]
        %v918 = vld [vmem:[#allocation6 + $0x30] sm:$0xff]
        %v919 = vld [vmem:[#allocation6 + $0x38] sm:$0xff]
        %v920 = vld [vmem:[#allocation6 + $0x40] sm:$0xff]
        %v921 = vld [vmem:[#allocation6 + $0x48] sm:$0xff]
        %v922 = vld [vmem:[#allocation6 + $0x50] sm:$0xff]
        %v923 = vld [vmem:[#allocation6 + $0x58] sm:$0xff]
        %v924 = vld [vmem:[#allocation6 + $0x60] sm:$0xff]
        %v925 = vld [vmem:[#allocation6 + $0x68] sm:$0xff]
        %v926 = vld [vmem:[#allocation6 + $0x70] sm:$0xff]
        %v927 = vld [vmem:[#allocation6 + $0x78] sm:$0xff]
        %v928 = vld [vmem:[#allocation6 + $0x80] sm:$0xff]
        %v929 = vld [vmem:[#allocation6 + $0x88] sm:$0xff]
        %v930 = vld [vmem:[#allocation6 + $0x90] sm:$0xff]
        %v931 = vld [vmem:[#allocation6 + $0x98] sm:$0xff]
        %v932 = vld [vmem:[#allocation6 + $0xa0] sm:$0xff]
        %v933 = vld [vmem:[#allocation6 + $0xa8] sm:$0xff]
        %v934 = vld [vmem:[#allocation6 + $0xb0] sm:$0xff]
        %v935 = vld [vmem:[#allocation6 + $0xb8] sm:$0xff]
        %v936 = vld [vmem:[#allocation6 + $0xc0] sm:$0xff]
        %v937 = vld [vmem:[#allocation6 + $0xc8] sm:$0xff]
        %v938 = vld [vmem:[#allocation6 + $0xd0] sm:$0xff]
        %v939 = vld [vmem:[#allocation6 + $0xd8] sm:$0xff]
        %v940 = vld [vmem:[#allocation6 + $0xe0] sm:$0xff]
        %v941 = vld [vmem:[#allocation6 + $0xe8] sm:$0xff]
        %v942 = vld [vmem:[#allocation6 + $0xf0] sm:$0xff]
        %v943 = vld [vmem:[#allocation6 + $0xf8] sm:$0xff]
        %v944 = vld [vmem:[#allocation6 + $0x100] sm:$0xff]
        %v945 = vld [vmem:[#allocation6 + $0x108] sm:$0xff]
        %v946 = vld [vmem:[#allocation6 + $0x110] sm:$0xff]
        %v947 = vld [vmem:[#allocation6 + $0x118] sm:$0xff]
        %v948 = vld [vmem:[#allocation6 + $0x120] sm:$0xff]
        %v949 = vld [vmem:[#allocation6 + $0x128] sm:$0xff]
        %v950 = vld [vmem:[#allocation6 + $0x130] sm:$0xff]
        %v951 = vld [vmem:[#allocation6 + $0x138] sm:$0xff]
        %v952 = vld [vmem:[#allocation6 + $0x140] sm:$0xff]
        %v953 = vld [vmem:[#allocation6 + $0x148] sm:$0xff]
        %v954 = vld [vmem:[#allocation6 + $0x150] sm:$0xff]
        %v955 = vld [vmem:[#allocation6 + $0x158] sm:$0xff]
        %v956 = vld [vmem:[#allocation6 + $0x160] sm:$0xff]
        %v957 = vld [vmem:[#allocation6 + $0x168] sm:$0xff]
        %v958 = vld [vmem:[#allocation6 + $0x170] sm:$0xff]
        %v959 = vld [vmem:[#allocation6 + $0x178] sm:$0xff]
        %v960 = vpack.c.bf16 %v909, %v909
        %v961 = vpack.c.bf16 %v910, %v910
        %v962 = vpack.c.bf16 %v911, %v911
        %v963 = vld [vmem:[%s7] sm:$0x3]
        %v965 = vlaneseq
        %v966 = vshrl.u32 %v965, 7
        %v967 = vsub.s32 0, %v966
        %v968 = vrot.slane %v963, %v967
        %v969 = vlaneseq
        %v970 = vshrl.u32 %v969, 7
        %v971 = vsub.s32 1, %v970
        %v972 = vrot.slane %v963, %v971
        %v1023 = vunpack.c.l.b16 %v912
        %v1024 = vunpack.c.h.b16 %v912
        %v1025 = vunpack.c.l.b16 %v913
        %v1026 = vunpack.c.h.b16 %v913
        %v1027 = vunpack.c.l.b16 %v914
        %v1028 = vunpack.c.h.b16 %v914
        %v1029 = vunpack.c.l.b16 %v915
        %v1030 = vunpack.c.h.b16 %v915
        %v1031 = vunpack.c.l.b16 %v916
        %v1032 = vunpack.c.h.b16 %v916
        %v1033 = vunpack.c.l.b16 %v917
        %v1034 = vunpack.c.h.b16 %v917
        %v1035 = vunpack.c.l.b16 %v918
        %v1036 = vunpack.c.h.b16 %v918
        %v1037 = vunpack.c.l.b16 %v919
        %v1038 = vunpack.c.h.b16 %v919
        %v1039 = vunpack.c.l.b16 %v920
        %v1040 = vunpack.c.h.b16 %v920
        %v1041 = vunpack.c.l.b16 %v921
        %v1042 = vunpack.c.h.b16 %v921
        %v1043 = vunpack.c.l.b16 %v922
        %v1044 = vunpack.c.h.b16 %v922
        %v1045 = vunpack.c.l.b16 %v923
        %v1046 = vunpack.c.h.b16 %v923
        %v1047 = vunpack.c.l.b16 %v924
        %v1048 = vunpack.c.h.b16 %v924
        %v1049 = vunpack.c.l.b16 %v925
        %v1050 = vunpack.c.h.b16 %v925
        %v1051 = vunpack.c.l.b16 %v926
        %v1052 = vunpack.c.h.b16 %v926
        %v1053 = vunpack.c.l.b16 %v927
        %v1054 = vunpack.c.h.b16 %v927
        %v1055 = vunpack.c.l.b16 %v928
        %v1056 = vunpack.c.h.b16 %v928
        %v1057 = vunpack.c.l.b16 %v929
        %v1058 = vunpack.c.h.b16 %v929
        %v1059 = vunpack.c.l.b16 %v930
        %v1060 = vunpack.c.h.b16 %v930
        %v1061 = vunpack.c.l.b16 %v931
        %v1062 = vunpack.c.h.b16 %v931
        %v1063 = vunpack.c.l.b16 %v932
        %v1064 = vunpack.c.h.b16 %v932
        %v1065 = vunpack.c.l.b16 %v933
        %v1066 = vunpack.c.h.b16 %v933
        %v1067 = vunpack.c.l.b16 %v934
        %v1068 = vunpack.c.h.b16 %v934
        %v1069 = vunpack.c.l.b16 %v935
        %v1070 = vunpack.c.h.b16 %v935
        %v1071 = vunpack.c.l.b16 %v936
        %v1072 = vunpack.c.h.b16 %v936
        %v1073 = vunpack.c.l.b16 %v937
        %v1074 = vunpack.c.h.b16 %v937
        %v1075 = vunpack.c.l.b16 %v938
        %v1076 = vunpack.c.h.b16 %v938
        %v1077 = vunpack.c.l.b16 %v939
        %v1078 = vunpack.c.h.b16 %v939
        %v1079 = vunpack.c.l.b16 %v940
        %v1080 = vunpack.c.h.b16 %v940
        %v1081 = vunpack.c.l.b16 %v941
        %v1082 = vunpack.c.h.b16 %v941
        %v1083 = vunpack.c.l.b16 %v942
        %v1084 = vunpack.c.h.b16 %v942
        %v1085 = vunpack.c.l.b16 %v943
        %v1086 = vunpack.c.h.b16 %v943
        %v1087 = vunpack.c.l.b16 %v944
        %v1088 = vunpack.c.h.b16 %v944
        %v1089 = vunpack.c.l.b16 %v945
        %v1090 = vunpack.c.h.b16 %v945
        %v1091 = vunpack.c.l.b16 %v946
        %v1092 = vunpack.c.h.b16 %v946
        %v1093 = vunpack.c.l.b16 %v947
        %v1094 = vunpack.c.h.b16 %v947
        %v1095 = vunpack.c.l.b16 %v948
        %v1096 = vunpack.c.h.b16 %v948
        %v1097 = vunpack.c.l.b16 %v949
        %v1098 = vunpack.c.h.b16 %v949
        %v1099 = vunpack.c.l.b16 %v950
        %v1100 = vunpack.c.h.b16 %v950
        %v1101 = vunpack.c.l.b16 %v951
        %v1102 = vunpack.c.h.b16 %v951
        %v1103 = vunpack.c.l.b16 %v952
        %v1104 = vunpack.c.h.b16 %v952
        %v1105 = vunpack.c.l.b16 %v953
        %v1106 = vunpack.c.h.b16 %v953
        %v1107 = vunpack.c.l.b16 %v954
        %v1108 = vunpack.c.h.b16 %v954
        %v1109 = vunpack.c.l.b16 %v955
        %v1110 = vunpack.c.h.b16 %v955
        %v1111 = vunpack.c.l.b16 %v956
        %v1112 = vunpack.c.h.b16 %v956
        %v1113 = vunpack.c.l.b16 %v957
        %v1114 = vunpack.c.h.b16 %v957
        %v1115 = vunpack.c.l.b16 %v958
        %v1116 = vunpack.c.h.b16 %v958
        %v1117 = vunpack.c.l.b16 %v959
        %v1118 = vunpack.c.h.b16 %v959
        %v1119 = vpack.c.b16 %v1025, %v1023
        %v1120 = vpack.c.b16 %v1026, %v1024
        %v1121 = vpack.c.b16 %v1029, %v1027
        %v1122 = vpack.c.b16 %v1030, %v1028
        %v1123 = vpack.c.b16 %v1033, %v1031
        %v1124 = vpack.c.b16 %v1034, %v1032
        %v1125 = vpack.c.b16 %v1037, %v1035
        %v1126 = vpack.c.b16 %v1038, %v1036
        %v1127 = vpack.c.b16 %v1041, %v1039
        %v1128 = vpack.c.b16 %v1042, %v1040
        %v1129 = vpack.c.b16 %v1045, %v1043
        %v1130 = vpack.c.b16 %v1046, %v1044
        %v1131 = vpack.c.b16 %v1049, %v1047
        %v1132 = vpack.c.b16 %v1050, %v1048
        %v1133 = vpack.c.b16 %v1053, %v1051
        %v1134 = vpack.c.b16 %v1054, %v1052
        %v1135 = vpack.c.b16 %v1057, %v1055
        %v1136 = vpack.c.b16 %v1058, %v1056
        %v1137 = vpack.c.b16 %v1061, %v1059
        %v1138 = vpack.c.b16 %v1062, %v1060
        %v1139 = vpack.c.b16 %v1065, %v1063
        %v1140 = vpack.c.b16 %v1066, %v1064
        %v1141 = vpack.c.b16 %v1069, %v1067
        %v1142 = vpack.c.b16 %v1070, %v1068
        %v1143 = vpack.c.b16 %v1073, %v1071
        %v1144 = vpack.c.b16 %v1074, %v1072
        %v1145 = vpack.c.b16 %v1077, %v1075
        %v1146 = vpack.c.b16 %v1078, %v1076
        %v1147 = vpack.c.b16 %v1081, %v1079
        %v1148 = vpack.c.b16 %v1082, %v1080
        %v1149 = vpack.c.b16 %v1085, %v1083
        %v1150 = vpack.c.b16 %v1086, %v1084
        %v1151 = vpack.c.b16 %v1089, %v1087
        %v1152 = vpack.c.b16 %v1090, %v1088
        %v1153 = vpack.c.b16 %v1093, %v1091
        %v1154 = vpack.c.b16 %v1094, %v1092
        %v1155 = vpack.c.b16 %v1097, %v1095
        %v1156 = vpack.c.b16 %v1098, %v1096
        %v1157 = vpack.c.b16 %v1101, %v1099
        %v1158 = vpack.c.b16 %v1102, %v1100
        %v1159 = vpack.c.b16 %v1105, %v1103
        %v1160 = vpack.c.b16 %v1106, %v1104
        %v1161 = vpack.c.b16 %v1109, %v1107
        %v1162 = vpack.c.b16 %v1110, %v1108
        %v1163 = vpack.c.b16 %v1113, %v1111
        %v1164 = vpack.c.b16 %v1114, %v1112
        %v1165 = vpack.c.b16 %v1117, %v1115
        %v1166 = vpack.c.b16 %v1118, %v1116
        %1215 = vmatprep.subr.bf16.mxu0 %v1120
        %1216 = vmatpush1.bf16.msra.mxu0 %v1119
        %1217 = vmatprep.subr.bf16.mxu0 %v1122
        %1218 = vmatpush1.bf16.msra.mxu0 %v1121
        %1219 = vmatprep.subr.bf16.mxu0 %v1124
        %1220 = vmatpush1.bf16.msra.mxu0 %v1123
        %1221 = vmatprep.subr.bf16.mxu0 %v1126
        %1222 = vmatpush1.bf16.msra.mxu0 %v1125
        %1223 = vmatprep.subr.bf16.mxu0 %v1128
        %1224 = vmatpush1.bf16.msra.mxu0 %v1127
        %1225 = vmatprep.subr.bf16.mxu0 %v1130
        %1226 = vmatpush1.bf16.msra.mxu0 %v1129
        %1227 = vmatprep.subr.bf16.mxu0 %v1132
        %1228 = vmatpush1.bf16.msra.mxu0 %v1131
        %1229 = vmatprep.subr.bf16.mxu0 %v1134
        %1230 = vmatpush1.bf16.msra.mxu0 %v1133
        %1231 = vmatprep.subr.bf16.mxu0 %v1136
        %1232 = vmatpush1.bf16.msra.mxu0 %v1135
        %1233 = vmatprep.subr.bf16.mxu0 %v1138
        %1234 = vmatpush1.bf16.msra.mxu0 %v1137
        %1235 = vmatprep.subr.bf16.mxu0 %v1140
        %1236 = vmatpush1.bf16.msra.mxu0 %v1139
        %1237 = vmatprep.subr.bf16.mxu0 %v1142
        %1238 = vmatpush1.bf16.msra.mxu0 %v1141
        %1239 = vmatprep.subr.bf16.mxu0 %v1144
        %1240 = vmatpush1.bf16.msra.mxu0 %v1143
        %1241 = vmatprep.subr.bf16.mxu0 %v1146
        %1242 = vmatpush1.bf16.msra.mxu0 %v1145
        %1243 = vmatprep.subr.bf16.mxu0 %v1148
        %1244 = vmatpush1.bf16.msra.mxu0 %v1147
        %1245 = vmatprep.subr.bf16.mxu0 %v1150
        %1246 = vmatpush1.bf16.msra.mxu0 %v1149
        %1247 = vmatprep.mubr.bf16.mxu0 %v961
        %1248 = vmatmul.mubr.bf16.gmra.mrb[0].mxu0 %v960
        %v1249 = vpop.f32.mrb[0].mxu0
        %v1250 = vadd.f32 %v968, %v1249
        %v1251 = vpop.f32.mrb[0].mxu0
        %v1252 = vadd.f32 %v972, %v1251
        %v1253 = vpop.f32.mrb[0].mxu0
        %v1254 = vpop.f32.mrb[0].mxu0
        %1255 = vdwg.mxu0
        %1256 = vmatprep.subr.bf16.mxu0 %v1152
        %1257 = vmatpush1.bf16.msra.mxu0 %v1151
        %1258 = vmatprep.subr.bf16.mxu0 %v1154
        %1259 = vmatpush1.bf16.msra.mxu0 %v1153
        %1260 = vmatprep.subr.bf16.mxu0 %v1156
        %1261 = vmatpush1.bf16.msra.mxu0 %v1155
        %1262 = vmatprep.subr.bf16.mxu0 %v1158
        %1263 = vmatpush1.bf16.msra.mxu0 %v1157
        %1264 = vmatprep.subr.bf16.mxu0 %v1160
        %1265 = vmatpush1.bf16.msra.mxu0 %v1159
        %1266 = vmatprep.subr.bf16.mxu0 %v1162
        %1267 = vmatpush1.bf16.msra.mxu0 %v1161
        %1268 = vmatprep.subr.bf16.mxu0 %v1164
        %1269 = vmatpush1.bf16.msra.mxu0 %v1163
        %1270 = vmatprep.subr.bf16.mxu0 %v1166
        %1271 = vmatpush1.bf16.msra.mxu0 %v1165
        %1272 = vmatprep.subr.bf16.mxu0 0
        %1273 = vmatpush1.bf16.msra.mxu0 0
        %1274 = vmatprep.subr.bf16.mxu0 0
        %1275 = vmatpush1.bf16.msra.mxu0 0
        %1276 = vmatprep.subr.bf16.mxu0 0
        %1277 = vmatpush1.bf16.msra.mxu0 0
        %1278 = vmatprep.subr.bf16.mxu0 0
        %1279 = vmatpush1.bf16.msra.mxu0 0
        %1280 = vmatprep.subr.bf16.mxu0 0
        %1281 = vmatpush1.bf16.msra.mxu0 0
        %1282 = vmatprep.subr.bf16.mxu0 0
        %1283 = vmatpush1.bf16.msra.mxu0 0
        %1284 = vmatprep.subr.bf16.mxu0 0
        %1285 = vmatpush1.bf16.msra.mxu0 0
        %1286 = vmatprep.subr.bf16.mxu0 0
        %1287 = vmatpush1.bf16.msra.mxu0 0
        %1288 = vmatprep.mubr.bf16.mxu0 0
        %1289 = vmatmul.mubr.bf16.gmra.mrb[0].mxu0 %v962
        %v1290 = vpop.f32.mrb[0].mxu0
        %v1291 = vadd.f32 %v1250, %v1290
        %v1292 = vpop.f32.mrb[0].mxu0
        %v1293 = vadd.f32 %v1252, %v1292
        %v1294 = vpop.f32.mrb[0].mxu0
        %v1295 = vpop.f32.mrb[0].mxu0
        %1296 = vdwg.mxu0
        %v1297 = vsub.f32 0.0, %v1293
        %v1298 = vmul.f32 %v1297, 1.442695
        %v1299 = vpow.pop %v1298
        %v1300 = vadd.f32 %v1299, 1.0
        %v1301 = vrcp.pop %v1300
        %v1302 = vmul.f32 %v1291, %v1301
        %v1303 = vadd.f32 %v1302, %v894
        %v1304 = vmul.f32 %v1303, 0.70710677
        %v1305 = vmul.f32 %v1304, %v786
        %1306 = vst [vmem:[#allocation2 + $0x1] sm:$0xff] %v1305
        %v1307 = vld [vmem:[#allocation2] sm:$0xff]
        %1308 = vst [vmem:[#allocation3] sm:$0xff] %v1307
        %v1309 = vld [vmem:[#allocation2 + $0x1] sm:$0xff]
        %1310 = vst [vmem:[#allocation3 + $0x8] sm:$0xff] %v1309
        %v1311 = vld [vmem:[#allocation2 + $0x2] sm:$0xff]
        %1312 = vst [vmem:[#allocation3 + $0x10] sm:$0xff] %v1311
        %v1313 = vld [vmem:[#allocation3] sm:$0xff]
        %v1314 = vld [vmem:[#allocation3 + $0x8] sm:$0xff]
        %v1315 = vld [vmem:[#allocation3 + $0x10] sm:$0xff]
        %s1316 = scalar_lea.vmem [#allocation6], 384
        %v1317 = vld [vmem:[%s1316] sm:$0xff]
        %v1318 = vld [vmem:[%s1316 + $0x8] sm:$0xff]
        %v1319 = vld [vmem:[%s1316 + $0x10] sm:$0xff]
        %v1320 = vld [vmem:[%s1316 + $0x18] sm:$0xff]
        %v1321 = vld [vmem:[%s1316 + $0x20] sm:$0xff]
        %v1322 = vld [vmem:[%s1316 + $0x28] sm:$0xff]
        %v1323 = vld [vmem:[%s1316 + $0x30] sm:$0xff]
        %v1324 = vld [vmem:[%s1316 + $0x38] sm:$0xff]
        %v1325 = vld [vmem:[%s1316 + $0x40] sm:$0xff]
        %v1326 = vld [vmem:[%s1316 + $0x48] sm:$0xff]
        %v1327 = vld [vmem:[%s1316 + $0x50] sm:$0xff]
        %v1328 = vld [vmem:[%s1316 + $0x58] sm:$0xff]
        %v1329 = vld [vmem:[%s1316 + $0x60] sm:$0xff]
        %v1330 = vld [vmem:[%s1316 + $0x68] sm:$0xff]
        %v1331 = vld [vmem:[%s1316 + $0x70] sm:$0xff]
        %v1332 = vld [vmem:[%s1316 + $0x78] sm:$0xff]
        %v1333 = vld [vmem:[%s1316 + $0x80] sm:$0xff]
        %v1334 = vld [vmem:[%s1316 + $0x88] sm:$0xff]
        %v1335 = vld [vmem:[%s1316 + $0x90] sm:$0xff]
        %v1336 = vld [vmem:[%s1316 + $0x98] sm:$0xff]
        %v1337 = vld [vmem:[%s1316 + $0xa0] sm:$0xff]
        %v1338 = vld [vmem:[%s1316 + $0xa8] sm:$0xff]
        %v1339 = vld [vmem:[%s1316 + $0xb0] sm:$0xff]
        %v1340 = vld [vmem:[%s1316 + $0xb8] sm:$0xff]
        %v1341 = vld [vmem:[%s1316 + $0xc0] sm:$0xff]
        %v1342 = vld [vmem:[%s1316 + $0xc8] sm:$0xff]
        %v1343 = vld [vmem:[%s1316 + $0xd0] sm:$0xff]
        %v1344 = vld [vmem:[%s1316 + $0xd8] sm:$0xff]
        %v1345 = vld [vmem:[%s1316 + $0xe0] sm:$0xff]
        %v1346 = vld [vmem:[%s1316 + $0xe8] sm:$0xff]
        %v1347 = vld [vmem:[%s1316 + $0xf0] sm:$0xff]
        %v1348 = vld [vmem:[%s1316 + $0xf8] sm:$0xff]
        %v1349 = vld [vmem:[%s1316 + $0x100] sm:$0xff]
        %v1350 = vld [vmem:[%s1316 + $0x108] sm:$0xff]
        %v1351 = vld [vmem:[%s1316 + $0x110] sm:$0xff]
        %v1352 = vld [vmem:[%s1316 + $0x118] sm:$0xff]
        %v1353 = vld [vmem:[%s1316 + $0x120] sm:$0xff]
        %v1354 = vld [vmem:[%s1316 + $0x128] sm:$0xff]
        %v1355 = vld [vmem:[%s1316 + $0x130] sm:$0xff]
        %v1356 = vld [vmem:[%s1316 + $0x138] sm:$0xff]
        %v1357 = vld [vmem:[%s1316 + $0x140] sm:$0xff]
        %v1358 = vld [vmem:[%s1316 + $0x148] sm:$0xff]
        %v1359 = vld [vmem:[%s1316 + $0x150] sm:$0xff]
        %v1360 = vld [vmem:[%s1316 + $0x158] sm:$0xff]
        %v1361 = vld [vmem:[%s1316 + $0x160] sm:$0xff]
        %v1362 = vld [vmem:[%s1316 + $0x168] sm:$0xff]
        %v1363 = vld [vmem:[%s1316 + $0x170] sm:$0xff]
        %v1364 = vld [vmem:[%s1316 + $0x178] sm:$0xff]
        %v1365 = vpack.c.bf16 %v1313, %v1313
        %v1366 = vpack.c.bf16 %v1314, %v1314
        %v1367 = vpack.c.bf16 %v1315, %v1315
        %s1368 = scalar_lea.vmem %s7, 2
        %v1369 = vld [vmem:[%s1368] sm:$0x3]
        %v1371 = vlaneseq
        %v1372 = vshrl.u32 %v1371, 7
        %v1373 = vsub.s32 0, %v1372
        %v1374 = vrot.slane %v1369, %v1373
        %v1375 = vlaneseq
        %v1376 = vshrl.u32 %v1375, 7
        %v1377 = vsub.s32 1, %v1376
        %v1378 = vrot.slane %v1369, %v1377
        %v1429 = vunpack.c.l.b16 %v1317
        %v1430 = vunpack.c.h.b16 %v1317
        %v1431 = vunpack.c.l.b16 %v1318
        %v1432 = vunpack.c.h.b16 %v1318
        %v1433 = vunpack.c.l.b16 %v1319
        %v1434 = vunpack.c.h.b16 %v1319
        %v1435 = vunpack.c.l.b16 %v1320
        %v1436 = vunpack.c.h.b16 %v1320
        %v1437 = vunpack.c.l.b16 %v1321
        %v1438 = vunpack.c.h.b16 %v1321
        %v1439 = vunpack.c.l.b16 %v1322
        %v1440 = vunpack.c.h.b16 %v1322
        %v1441 = vunpack.c.l.b16 %v1323
        %v1442 = vunpack.c.h.b16 %v1323
        %v1443 = vunpack.c.l.b16 %v1324
        %v1444 = vunpack.c.h.b16 %v1324
        %v1445 = vunpack.c.l.b16 %v1325
        %v1446 = vunpack.c.h.b16 %v1325
        %v1447 = vunpack.c.l.b16 %v1326
        %v1448 = vunpack.c.h.b16 %v1326
        %v1449 = vunpack.c.l.b16 %v1327
        %v1450 = vunpack.c.h.b16 %v1327
        %v1451 = vunpack.c.l.b16 %v1328
        %v1452 = vunpack.c.h.b16 %v1328
        %v1453 = vunpack.c.l.b16 %v1329
        %v1454 = vunpack.c.h.b16 %v1329
        %v1455 = vunpack.c.l.b16 %v1330
        %v1456 = vunpack.c.h.b16 %v1330
        %v1457 = vunpack.c.l.b16 %v1331
        %v1458 = vunpack.c.h.b16 %v1331
        %v1459 = vunpack.c.l.b16 %v1332
        %v1460 = vunpack.c.h.b16 %v1332
        %v1461 = vunpack.c.l.b16 %v1333
        %v1462 = vunpack.c.h.b16 %v1333
        %v1463 = vunpack.c.l.b16 %v1334
        %v1464 = vunpack.c.h.b16 %v1334
        %v1465 = vunpack.c.l.b16 %v1335
        %v1466 = vunpack.c.h.b16 %v1335
        %v1467 = vunpack.c.l.b16 %v1336
        %v1468 = vunpack.c.h.b16 %v1336
        %v1469 = vunpack.c.l.b16 %v1337
        %v1470 = vunpack.c.h.b16 %v1337
        %v1471 = vunpack.c.l.b16 %v1338
        %v1472 = vunpack.c.h.b16 %v1338
        %v1473 = vunpack.c.l.b16 %v1339
        %v1474 = vunpack.c.h.b16 %v1339
        %v1475 = vunpack.c.l.b16 %v1340
        %v1476 = vunpack.c.h.b16 %v1340
        %v1477 = vunpack.c.l.b16 %v1341
        %v1478 = vunpack.c.h.b16 %v1341
        %v1479 = vunpack.c.l.b16 %v1342
        %v1480 = vunpack.c.h.b16 %v1342
        %v1481 = vunpack.c.l.b16 %v1343
        %v1482 = vunpack.c.h.b16 %v1343
        %v1483 = vunpack.c.l.b16 %v1344
        %v1484 = vunpack.c.h.b16 %v1344
        %v1485 = vunpack.c.l.b16 %v1345
        %v1486 = vunpack.c.h.b16 %v1345
        %v1487 = vunpack.c.l.b16 %v1346
        %v1488 = vunpack.c.h.b16 %v1346
        %v1489 = vunpack.c.l.b16 %v1347
        %v1490 = vunpack.c.h.b16 %v1347
        %v1491 = vunpack.c.l.b16 %v1348
        %v1492 = vunpack.c.h.b16 %v1348
        %v1493 = vunpack.c.l.b16 %v1349
        %v1494 = vunpack.c.h.b16 %v1349
        %v1495 = vunpack.c.l.b16 %v1350
        %v1496 = vunpack.c.h.b16 %v1350
        %v1497 = vunpack.c.l.b16 %v1351
        %v1498 = vunpack.c.h.b16 %v1351
        %v1499 = vunpack.c.l.b16 %v1352
        %v1500 = vunpack.c.h.b16 %v1352
        %v1501 = vunpack.c.l.b16 %v1353
        %v1502 = vunpack.c.h.b16 %v1353
        %v1503 = vunpack.c.l.b16 %v1354
        %v1504 = vunpack.c.h.b16 %v1354
        %v1505 = vunpack.c.l.b16 %v1355
        %v1506 = vunpack.c.h.b16 %v1355
        %v1507 = vunpack.c.l.b16 %v1356
        %v1508 = vunpack.c.h.b16 %v1356
        %v1509 = vunpack.c.l.b16 %v1357
        %v1510 = vunpack.c.h.b16 %v1357
        %v1511 = vunpack.c.l.b16 %v1358
        %v1512 = vunpack.c.h.b16 %v1358
        %v1513 = vunpack.c.l.b16 %v1359
        %v1514 = vunpack.c.h.b16 %v1359
        %v1515 = vunpack.c.l.b16 %v1360
        %v1516 = vunpack.c.h.b16 %v1360
        %v1517 = vunpack.c.l.b16 %v1361
        %v1518 = vunpack.c.h.b16 %v1361
        %v1519 = vunpack.c.l.b16 %v1362
        %v1520 = vunpack.c.h.b16 %v1362
        %v1521 = vunpack.c.l.b16 %v1363
        %v1522 = vunpack.c.h.b16 %v1363
        %v1523 = vunpack.c.l.b16 %v1364
        %v1524 = vunpack.c.h.b16 %v1364
        %v1525 = vpack.c.b16 %v1431, %v1429
        %v1526 = vpack.c.b16 %v1432, %v1430
        %v1527 = vpack.c.b16 %v1435, %v1433
        %v1528 = vpack.c.b16 %v1436, %v1434
        %v1529 = vpack.c.b16 %v1439, %v1437
        %v1530 = vpack.c.b16 %v1440, %v1438
        %v1531 = vpack.c.b16 %v1443, %v1441
        %v1532 = vpack.c.b16 %v1444, %v1442
        %v1533 = vpack.c.b16 %v1447, %v1445
        %v1534 = vpack.c.b16 %v1448, %v1446
        %v1535 = vpack.c.b16 %v1451, %v1449
        %v1536 = vpack.c.b16 %v1452, %v1450
        %v1537 = vpack.c.b16 %v1455, %v1453
        %v1538 = vpack.c.b16 %v1456, %v1454
        %v1539 = vpack.c.b16 %v1459, %v1457
        %v1540 = vpack.c.b16 %v1460, %v1458
        %v1541 = vpack.c.b16 %v1463, %v1461
        %v1542 = vpack.c.b16 %v1464, %v1462
        %v1543 = vpack.c.b16 %v1467, %v1465
        %v1544 = vpack.c.b16 %v1468, %v1466
        %v1545 = vpack.c.b16 %v1471, %v1469
        %v1546 = vpack.c.b16 %v1472, %v1470
        %v1547 = vpack.c.b16 %v1475, %v1473
        %v1548 = vpack.c.b16 %v1476, %v1474
        %v1549 = vpack.c.b16 %v1479, %v1477
        %v1550 = vpack.c.b16 %v1480, %v1478
        %v1551 = vpack.c.b16 %v1483, %v1481
        %v1552 = vpack.c.b16 %v1484, %v1482
        %v1553 = vpack.c.b16 %v1487, %v1485
        %v1554 = vpack.c.b16 %v1488, %v1486
        %v1555 = vpack.c.b16 %v1491, %v1489
        %v1556 = vpack.c.b16 %v1492, %v1490
        %v1557 = vpack.c.b16 %v1495, %v1493
        %v1558 = vpack.c.b16 %v1496, %v1494
        %v1559 = vpack.c.b16 %v1499, %v1497
        %v1560 = vpack.c.b16 %v1500, %v1498
        %v1561 = vpack.c.b16 %v1503, %v1501
        %v1562 = vpack.c.b16 %v1504, %v1502
        %v1563 = vpack.c.b16 %v1507, %v1505
        %v1564 = vpack.c.b16 %v1508, %v1506
        %v1565 = vpack.c.b16 %v1511, %v1509
        %v1566 = vpack.c.b16 %v1512, %v1510
        %v1567 = vpack.c.b16 %v1515, %v1513
        %v1568 = vpack.c.b16 %v1516, %v1514
        %v1569 = vpack.c.b16 %v1519, %v1517
        %v1570 = vpack.c.b16 %v1520, %v1518
        %v1571 = vpack.c.b16 %v1523, %v1521
        %v1572 = vpack.c.b16 %v1524, %v1522
        %1621 = vmatprep.subr.bf16.mxu0 %v1526
        %1622 = vmatpush1.bf16.msra.mxu0 %v1525
        %1623 = vmatprep.subr.bf16.mxu0 %v1528
        %1624 = vmatpush1.bf16.msra.mxu0 %v1527
        %1625 = vmatprep.subr.bf16.mxu0 %v1530
        %1626 = vmatpush1.bf16.msra.mxu0 %v1529
        %1627 = vmatprep.subr.bf16.mxu0 %v1532
        %1628 = vmatpush1.bf16.msra.mxu0 %v1531
        %1629 = vmatprep.subr.bf16.mxu0 %v1534
        %1630 = vmatpush1.bf16.msra.mxu0 %v1533
        %1631 = vmatprep.subr.bf16.mxu0 %v1536
        %1632 = vmatpush1.bf16.msra.mxu0 %v1535
        %1633 = vmatprep.subr.bf16.mxu0 %v1538
        %1634 = vmatpush1.bf16.msra.mxu0 %v1537
        %1635 = vmatprep.subr.bf16.mxu0 %v1540
        %1636 = vmatpush1.bf16.msra.mxu0 %v1539
        %1637 = vmatprep.subr.bf16.mxu0 %v1542
        %1638 = vmatpush1.bf16.msra.mxu0 %v1541
        %1639 = vmatprep.subr.bf16.mxu0 %v1544
        %1640 = vmatpush1.bf16.msra.mxu0 %v1543
        %1641 = vmatprep.subr.bf16.mxu0 %v1546
        %1642 = vmatpush1.bf16.msra.mxu0 %v1545
        %1643 = vmatprep.subr.bf16.mxu0 %v1548
        %1644 = vmatpush1.bf16.msra.mxu0 %v1547
        %1645 = vmatprep.subr.bf16.mxu0 %v1550
        %1646 = vmatpush1.bf16.msra.mxu0 %v1549
        %1647 = vmatprep.subr.bf16.mxu0 %v1552
        %1648 = vmatpush1.bf16.msra.mxu0 %v1551
        %1649 = vmatprep.subr.bf16.mxu0 %v1554
        %1650 = vmatpush1.bf16.msra.mxu0 %v1553
        %1651 = vmatprep.subr.bf16.mxu0 %v1556
        %1652 = vmatpush1.bf16.msra.mxu0 %v1555
        %1653 = vmatprep.mubr.bf16.mxu0 %v1366
        %1654 = vmatmul.mubr.bf16.gmra.mrb[0].mxu0 %v1365
        %v1655 = vpop.f32.mrb[0].mxu0
        %v1656 = vadd.f32 %v1374, %v1655
        %v1657 = vpop.f32.mrb[0].mxu0
        %v1658 = vadd.f32 %v1378, %v1657
        %v1659 = vpop.f32.mrb[0].mxu0
        %v1660 = vpop.f32.mrb[0].mxu0
        %1661 = vdwg.mxu0
        %1662 = vmatprep.subr.bf16.mxu0 %v1558
        %1663 = vmatpush1.bf16.msra.mxu0 %v1557
        %1664 = vmatprep.subr.bf16.mxu0 %v1560
        %1665 = vmatpush1.bf16.msra.mxu0 %v1559
        %1666 = vmatprep.subr.bf16.mxu0 %v1562
        %1667 = vmatpush1.bf16.msra.mxu0 %v1561
        %1668 = vmatprep.subr.bf16.mxu0 %v1564
        %1669 = vmatpush1.bf16.msra.mxu0 %v1563
        %1670 = vmatprep.subr.bf16.mxu0 %v1566
        %1671 = vmatpush1.bf16.msra.mxu0 %v1565
        %1672 = vmatprep.subr.bf16.mxu0 %v1568
        %1673 = vmatpush1.bf16.msra.mxu0 %v1567
        %1674 = vmatprep.subr.bf16.mxu0 %v1570
        %1675 = vmatpush1.bf16.msra.mxu0 %v1569
        %1676 = vmatprep.subr.bf16.mxu0 %v1572
        %1677 = vmatpush1.bf16.msra.mxu0 %v1571
        %1678 = vmatprep.subr.bf16.mxu0 0
        %1679 = vmatpush1.bf16.msra.mxu0 0
        %1680 = vmatprep.subr.bf16.mxu0 0
        %1681 = vmatpush1.bf16.msra.mxu0 0
        %1682 = vmatprep.subr.bf16.mxu0 0
        %1683 = vmatpush1.bf16.msra.mxu0 0
        %1684 = vmatprep.subr.bf16.mxu0 0
        %1685 = vmatpush1.bf16.msra.mxu0 0
        %1686 = vmatprep.subr.bf16.mxu0 0
        %1687 = vmatpush1.bf16.msra.mxu0 0
        %1688 = vmatprep.subr.bf16.mxu0 0
        %1689 = vmatpush1.bf16.msra.mxu0 0
        %1690 = vmatprep.subr.bf16.mxu0 0
        %1691 = vmatpush1.bf16.msra.mxu0 0
        %1692 = vmatprep.subr.bf16.mxu0 0
        %1693 = vmatpush1.bf16.msra.mxu0 0
        %1694 = vmatprep.mubr.bf16.mxu0 0
        %1695 = vmatmul.mubr.bf16.gmra.mrb[0].mxu0 %v1367
        %v1696 = vpop.f32.mrb[0].mxu0
        %v1697 = vadd.f32 %v1656, %v1696
        %v1698 = vpop.f32.mrb[0].mxu0
        %v1699 = vadd.f32 %v1658, %v1698
        %v1700 = vpop.f32.mrb[0].mxu0
        %v1701 = vpop.f32.mrb[0].mxu0
        %1702 = vdwg.mxu0
        %v1703 = vsub.f32 0.0, %v1699
        %v1704 = vmul.f32 %v1703, 1.442695
        %v1705 = vpow.pop %v1704
        %v1706 = vadd.f32 %v1705, 1.0
        %v1707 = vrcp.pop %v1706
        %v1708 = vmul.f32 %v1697, %v1707
        %v1709 = vadd.f32 %v1708, %v1304
        %v1710 = vmul.f32 %v1709, 0.70710677
        %v1711 = vld [vmem:[%s8] sm:$0xf]
        %v1712 = vld [vmem:[%s8 + $0x4] sm:$0xf]
        %v1713 = vld [vmem:[%s8 + $0x8] sm:$0xf]
        %v1714 = vld [vmem:[%s8 + $0xc] sm:$0xf]
        %v1715 = vld [vmem:[%s8 + $0x10] sm:$0xf]
        %v1716 = vld [vmem:[%s8 + $0x14] sm:$0xf]
        %v1717 = vld [vmem:[%s8 + $0x18] sm:$0xf]
        %v1718 = vld [vmem:[%s8 + $0x1c] sm:$0xf]
        %v1719 = vld [vmem:[%s8 + $0x20] sm:$0xf]
        %v1720 = vld [vmem:[%s8 + $0x24] sm:$0xf]
        %v1721 = vld [vmem:[%s8 + $0x28] sm:$0xf]
        %v1722 = vld [vmem:[%s8 + $0x2c] sm:$0xf]
        %v1723 = vld [vmem:[%s8 + $0x30] sm:$0xf]
        %v1724 = vld [vmem:[%s8 + $0x34] sm:$0xf]
        %v1725 = vld [vmem:[%s8 + $0x38] sm:$0xf]
        %v1726 = vld [vmem:[%s8 + $0x3c] sm:$0xf]
        %v1727 = vpack.c.bf16 %v1710, %v1710
        %v1728 = vld [vmem:[%s9] sm:$0x1]
        %v1730 = vlaneseq
        %v1731 = vshrl.u32 %v1730, 7
        %v1732 = vsub.s32 0, %v1731
        %v1733 = vrot.slane %v1728, %v1732
        %v1751 = vunpack.c.l.b16 %v1711
        %v1752 = vunpack.c.l.b16 %v1712
        %v1753 = vunpack.c.l.b16 %v1713
        %v1754 = vunpack.c.l.b16 %v1714
        %v1755 = vunpack.c.l.b16 %v1715
        %v1756 = vunpack.c.l.b16 %v1716
        %v1757 = vunpack.c.l.b16 %v1717
        %v1758 = vunpack.c.l.b16 %v1718
        %v1759 = vunpack.c.l.b16 %v1719
        %v1760 = vunpack.c.l.b16 %v1720
        %v1761 = vunpack.c.l.b16 %v1721
        %v1762 = vunpack.c.l.b16 %v1722
        %v1763 = vunpack.c.l.b16 %v1723
        %v1764 = vunpack.c.l.b16 %v1724
        %v1765 = vunpack.c.l.b16 %v1725
        %v1766 = vunpack.c.l.b16 %v1726
        %v1767 = vpack.c.b16 %v1752, %v1751
        %v1768 = vpack.c.b16 %v1754, %v1753
        %v1769 = vpack.c.b16 %v1756, %v1755
        %v1770 = vpack.c.b16 %v1758, %v1757
        %v1771 = vpack.c.b16 %v1760, %v1759
        %v1772 = vpack.c.b16 %v1762, %v1761
        %v1773 = vpack.c.b16 %v1764, %v1763
        %v1774 = vpack.c.b16 %v1766, %v1765
        %1783 = vmatprep.subr.bf16.mxu0 0
        %1784 = vmatpush1.bf16.msra.mxu0 %v1767
        %1785 = vmatprep.subr.bf16.mxu0 0
        %1786 = vmatpush1.bf16.msra.mxu0 %v1768
        %1787 = vmatprep.subr.bf16.mxu0 0
        %1788 = vmatpush1.bf16.msra.mxu0 %v1769
        %1789 = vmatprep.subr.bf16.mxu0 0
        %1790 = vmatpush1.bf16.msra.mxu0 %v1770
        %1791 = vmatprep.subr.bf16.mxu0 0
        %1792 = vmatpush1.bf16.msra.mxu0 %v1771
        %1793 = vmatprep.subr.bf16.mxu0 0
        %1794 = vmatpush1.bf16.msra.mxu0 %v1772
        %1795 = vmatprep.subr.bf16.mxu0 0
        %1796 = vmatpush1.bf16.msra.mxu0 %v1773
        %1797 = vmatprep.subr.bf16.mxu0 0
        %1798 = vmatpush1.bf16.msra.mxu0 %v1774
        %1799 = vmatprep.subr.bf16.mxu0 0
        %1800 = vmatpush1.bf16.msra.mxu0 0
        %1801 = vmatprep.subr.bf16.mxu0 0
        %1802 = vmatpush1.bf16.msra.mxu0 0
        %1803 = vmatprep.subr.bf16.mxu0 0
        %1804 = vmatpush1.bf16.msra.mxu0 0
        %1805 = vmatprep.subr.bf16.mxu0 0
        %1806 = vmatpush1.bf16.msra.mxu0 0
        %1807 = vmatprep.subr.bf16.mxu0 0
        %1808 = vmatpush1.bf16.msra.mxu0 0
        %1809 = vmatprep.subr.bf16.mxu0 0
        %1810 = vmatpush1.bf16.msra.mxu0 0
        %1811 = vmatprep.subr.bf16.mxu0 0
        %1812 = vmatpush1.bf16.msra.mxu0 0
        %1813 = vmatprep.subr.bf16.mxu0 0
        %1814 = vmatpush1.bf16.msra.mxu0 0
        %1815 = vmatprep.mubr.bf16.mxu0 0
        %1816 = vmatmul.mubr.bf16.gmra.mrb[0].mxu0 %v1727
        %v1817 = vpop.f32.mrb[0].mxu0
        %v1818 = vadd.f32 %v1733, %v1817
        %v1819 = vpop.f32.mrb[0].mxu0
        %v1820 = vpop.f32.mrb[0].mxu0
        %v1821 = vpop.f32.mrb[0].mxu0
        %1822 = vdwg.mxu0
        %v1823 = vmul.f32 %v1818, %v786
        %v1824 = vadd.f32 %v1823, %v785
        %v1825 = vmul.f32 %v1824, 0.70710677
        %v1826 = vmul.f32 %v1825, %v786
        %v1827 = vpack.c.bf16 %v1823, %v1823
        %v1828 = vpack.c.bf16 %v1826, %v1826
        %v1829 = vld [vmem:[%s779] sm:$0x1]
        %vm1830 = vcmask 57344
        %v1831 = vsel %vm1830, %v1829, 0.0
        %1832 = vadd.xlane.f32.xlu0 %v1831
        %v1833 = vpop.xlane.xlu0 %1832
        %v1834 = vrot.slane %v1833, 4
        %v1835 = vadd.f32 %v1833, %v1834
        %v1836 = vrot.slane %v1835, 2
        %v1837 = vadd.f32 %v1835, %v1836
        %v1838 = vrot.slane %v1837, 1
        %v1839 = vadd.f32 %v1837, %v1838
        %s1840 = vtos %v1839
        %s1841 = smax.f32 %s1840, 1.0
        %v1842 = vstv %s1841
        %v1843 = vrsqrt.pop %v1842
        %s1844 = vtos %v1843
        %s1845 = smul.f32 %s1840, %s1844
        %v1846 = vld [vmem:[%s783] sm:$0xff]
        %v1847 = vld [vmem:[#allocation9] sm:$0xf]
        %v1848 = vld [vmem:[#allocation9 + $0x4] sm:$0xf]
        %v1849 = vld [vmem:[#allocation9 + $0x8] sm:$0xf]
        %v1850 = vld [vmem:[#allocation9 + $0xc] sm:$0xf]
        %v1851 = vld [vmem:[#allocation9 + $0x10] sm:$0xf]
        %v1852 = vld [vmem:[#allocation9 + $0x14] sm:$0xf]
        %v1853 = vld [vmem:[#allocation9 + $0x18] sm:$0xf]
        %v1854 = vld [vmem:[#allocation9 + $0x1c] sm:$0xf]
        %v1855 = vld [vmem:[#allocation9 + $0x20] sm:$0xf]
        %v1856 = vld [vmem:[#allocation9 + $0x24] sm:$0xf]
        %v1857 = vld [vmem:[#allocation9 + $0x28] sm:$0xf]
        %v1858 = vld [vmem:[#allocation9 + $0x2c] sm:$0xf]
        %v1859 = vld [vmem:[#allocation9 + $0x30] sm:$0xf]
        %v1860 = vld [vmem:[#allocation9 + $0x34] sm:$0xf]
        %v1861 = vld [vmem:[#allocation9 + $0x38] sm:$0xf]
        %v1862 = vld [vmem:[#allocation9 + $0x3c] sm:$0xf]
        %v1863 = vpack.c.bf16 %v1846, %v1846
        %v1864 = vld [vmem:[%s11] sm:$0x1]
        %v1866 = vlaneseq
        %v1867 = vshrl.u32 %v1866, 7
        %v1868 = vsub.s32 0, %v1867
        %v1869 = vrot.slane %v1864, %v1868
        %v1887 = vunpack.c.l.b16 %v1847
        %v1888 = vunpack.c.l.b16 %v1848
        %v1889 = vunpack.c.l.b16 %v1849
        %v1890 = vunpack.c.l.b16 %v1850
        %v1891 = vunpack.c.l.b16 %v1851
        %v1892 = vunpack.c.l.b16 %v1852
        %v1893 = vunpack.c.l.b16 %v1853
        %v1894 = vunpack.c.l.b16 %v1854
        %v1895 = vunpack.c.l.b16 %v1855
        %v1896 = vunpack.c.l.b16 %v1856
        %v1897 = vunpack.c.l.b16 %v1857
        %v1898 = vunpack.c.l.b16 %v1858
        %v1899 = vunpack.c.l.b16 %v1859
        %v1900 = vunpack.c.l.b16 %v1860
        %v1901 = vunpack.c.l.b16 %v1861
        %v1902 = vunpack.c.l.b16 %v1862
        %v1903 = vpack.c.b16 %v1888, %v1887
        %v1904 = vpack.c.b16 %v1890, %v1889
        %v1905 = vpack.c.b16 %v1892, %v1891
        %v1906 = vpack.c.b16 %v1894, %v1893
        %v1907 = vpack.c.b16 %v1896, %v1895
        %v1908 = vpack.c.b16 %v1898, %v1897
        %v1909 = vpack.c.b16 %v1900, %v1899
        %v1910 = vpack.c.b16 %v1902, %v1901
        %1919 = vmatprep.subr.bf16.mxu0 0
        %1920 = vmatpush1.bf16.msra.mxu0 %v1903
        %1921 = vmatprep.subr.bf16.mxu0 0
        %1922 = vmatpush1.bf16.msra.mxu0 %v1904
        %1923 = vmatprep.subr.bf16.mxu0 0
        %1924 = vmatpush1.bf16.msra.mxu0 %v1905
        %1925 = vmatprep.subr.bf16.mxu0 0
        %1926 = vmatpush1.bf16.msra.mxu0 %v1906
        %1927 = vmatprep.subr.bf16.mxu0 0
        %1928 = vmatpush1.bf16.msra.mxu0 %v1907
        %1929 = vmatprep.subr.bf16.mxu0 0
        %1930 = vmatpush1.bf16.msra.mxu0 %v1908
        %1931 = vmatprep.subr.bf16.mxu0 0
        %1932 = vmatpush1.bf16.msra.mxu0 %v1909
        %1933 = vmatprep.subr.bf16.mxu0 0
        %1934 = vmatpush1.bf16.msra.mxu0 %v1910
        %1935 = vmatprep.subr.bf16.mxu0 0
        %1936 = vmatpush1.bf16.msra.mxu0 0
        %1937 = vmatprep.subr.bf16.mxu0 0
        %1938 = vmatpush1.bf16.msra.mxu0 0
        %1939 = vmatprep.subr.bf16.mxu0 0
        %1940 = vmatpush1.bf16.msra.mxu0 0
        %1941 = vmatprep.subr.bf16.mxu0 0
        %1942 = vmatpush1.bf16.msra.mxu0 0
        %1943 = vmatprep.subr.bf16.mxu0 0
        %1944 = vmatpush1.bf16.msra.mxu0 0
        %1945 = vmatprep.subr.bf16.mxu0 0
        %1946 = vmatpush1.bf16.msra.mxu0 0
        %1947 = vmatprep.subr.bf16.mxu0 0
        %1948 = vmatpush1.bf16.msra.mxu0 0
        %1949 = vmatprep.subr.bf16.mxu0 0
        %1950 = vmatpush1.bf16.msra.mxu0 0
        %1951 = vmatprep.mubr.bf16.mxu0 0
        %1952 = vmatmul.mubr.bf16.gmra.mrb[0].mxu0 %v1863
        %v1953 = vpop.f32.mrb[0].mxu0
        %v1954 = vadd.f32 %v1869, %v1953
        %v1955 = vpop.f32.mrb[0].mxu0
        %v1956 = vpop.f32.mrb[0].mxu0
        %v1957 = vpop.f32.mrb[0].mxu0
        %1958 = vdwg.mxu0
        %1959 = vst [vmem:[#allocation4] sm:$0xff] 0.0
        %1960 = vst [vmem:[#allocation4 + $0x8] sm:$0x3] 0.0
        %1961 = vst [vmem:[#allocation4 + $0x2] sm:$0xff] %v1954
        %v1962 = vld [vmem:[#allocation4] sm:$0xff]
        %1963 = vst [vmem:[#allocation5] sm:$0xff] %v1962
        %v1964 = vld [vmem:[#allocation4 + $0x1] sm:$0xff]
        %1965 = vst [vmem:[#allocation5 + $0x8] sm:$0xff] %v1964
        %v1966 = vld [vmem:[#allocation4 + $0x2] sm:$0xff]
        %1967 = vst [vmem:[#allocation5 + $0x10] sm:$0xff] %v1966
        %v1968 = vld [vmem:[#allocation5] sm:$0xff]
        %v1969 = vld [vmem:[#allocation5 + $0x8] sm:$0xff]
        %v1970 = vld [vmem:[#allocation5 + $0x10] sm:$0xff]
        %v1971 = vld [vmem:[#allocation11] sm:$0xff]
        %v1972 = vld [vmem:[#allocation11 + $0x8] sm:$0xff]
        %v1973 = vld [vmem:[#allocation11 + $0x10] sm:$0xff]
        %v1974 = vld [vmem:[#allocation11 + $0x18] sm:$0xff]
        %v1975 = vld [vmem:[#allocation11 + $0x20] sm:$0xff]
        %v1976 = vld [vmem:[#allocation11 + $0x28] sm:$0xff]
        %v1977 = vld [vmem:[#allocation11 + $0x30] sm:$0xff]
        %v1978 = vld [vmem:[#allocation11 + $0x38] sm:$0xff]
        %v1979 = vld [vmem:[#allocation11 + $0x40] sm:$0xff]
        %v1980 = vld [vmem:[#allocation11 + $0x48] sm:$0xff]
        %v1981 = vld [vmem:[#allocation11 + $0x50] sm:$0xff]
        %v1982 = vld [vmem:[#allocation11 + $0x58] sm:$0xff]
        %v1983 = vld [vmem:[#allocation11 + $0x60] sm:$0xff]
        %v1984 = vld [vmem:[#allocation11 + $0x68] sm:$0xff]
        %v1985 = vld [vmem:[#allocation11 + $0x70] sm:$0xff]
        %v1986 = vld [vmem:[#allocation11 + $0x78] sm:$0xff]
        %v1987 = vld [vmem:[#allocation11 + $0x80] sm:$0xff]
        %v1988 = vld [vmem:[#allocation11 + $0x88] sm:$0xff]
        %v1989 = vld [vmem:[#allocation11 + $0x90] sm:$0xff]
        %v1990 = vld [vmem:[#allocation11 + $0x98] sm:$0xff]
        %v1991 = vld [vmem:[#allocation11 + $0xa0] sm:$0xff]
        %v1992 = vld [vmem:[#allocation11 + $0xa8] sm:$0xff]
        %v1993 = vld [vmem:[#allocation11 + $0xb0] sm:$0xff]
        %v1994 = vld [vmem:[#allocation11 + $0xb8] sm:$0xff]
        %v1995 = vld [vmem:[#allocation11 + $0xc0] sm:$0xff]
        %v1996 = vld [vmem:[#allocation11 + $0xc8] sm:$0xff]
        %v1997 = vld [vmem:[#allocation11 + $0xd0] sm:$0xff]
        %v1998 = vld [vmem:[#allocation11 + $0xd8] sm:$0xff]
        %v1999 = vld [vmem:[#allocation11 + $0xe0] sm:$0xff]
        %v2000 = vld [vmem:[#allocation11 + $0xe8] sm:$0xff]
        %v2001 = vld [vmem:[#allocation11 + $0xf0] sm:$0xff]
        %v2002 = vld [vmem:[#allocation11 + $0xf8] sm:$0xff]
        %v2003 = vld [vmem:[#allocation11 + $0x100] sm:$0xff]
        %v2004 = vld [vmem:[#allocation11 + $0x108] sm:$0xff]
        %v2005 = vld [vmem:[#allocation11 + $0x110] sm:$0xff]
        %v2006 = vld [vmem:[#allocation11 + $0x118] sm:$0xff]
        %v2007 = vld [vmem:[#allocation11 + $0x120] sm:$0xff]
        %v2008 = vld [vmem:[#allocation11 + $0x128] sm:$0xff]
        %v2009 = vld [vmem:[#allocation11 + $0x130] sm:$0xff]
        %v2010 = vld [vmem:[#allocation11 + $0x138] sm:$0xff]
        %v2011 = vld [vmem:[#allocation11 + $0x140] sm:$0xff]
        %v2012 = vld [vmem:[#allocation11 + $0x148] sm:$0xff]
        %v2013 = vld [vmem:[#allocation11 + $0x150] sm:$0xff]
        %v2014 = vld [vmem:[#allocation11 + $0x158] sm:$0xff]
        %v2015 = vld [vmem:[#allocation11 + $0x160] sm:$0xff]
        %v2016 = vld [vmem:[#allocation11 + $0x168] sm:$0xff]
        %v2017 = vld [vmem:[#allocation11 + $0x170] sm:$0xff]
        %v2018 = vld [vmem:[#allocation11 + $0x178] sm:$0xff]
        %v2019 = vpack.c.bf16 %v1968, %v1968
        %v2020 = vpack.c.bf16 %v1969, %v1969
        %v2021 = vpack.c.bf16 %v1970, %v1970
        %v2022 = vld [vmem:[%s13] sm:$0x3]
        %v2024 = vlaneseq
        %v2025 = vshrl.u32 %v2024, 7
        %v2026 = vsub.s32 0, %v2025
        %v2027 = vrot.slane %v2022, %v2026
        %v2028 = vlaneseq
        %v2029 = vshrl.u32 %v2028, 7
        %v2030 = vsub.s32 1, %v2029
        %v2031 = vrot.slane %v2022, %v2030
        %v2082 = vunpack.c.l.b16 %v1971
        %v2083 = vunpack.c.h.b16 %v1971
        %v2084 = vunpack.c.l.b16 %v1972
        %v2085 = vunpack.c.h.b16 %v1972
        %v2086 = vunpack.c.l.b16 %v1973
        %v2087 = vunpack.c.h.b16 %v1973
        %v2088 = vunpack.c.l.b16 %v1974
        %v2089 = vunpack.c.h.b16 %v1974
        %v2090 = vunpack.c.l.b16 %v1975
        %v2091 = vunpack.c.h.b16 %v1975
        %v2092 = vunpack.c.l.b16 %v1976
        %v2093 = vunpack.c.h.b16 %v1976
        %v2094 = vunpack.c.l.b16 %v1977
        %v2095 = vunpack.c.h.b16 %v1977
        %v2096 = vunpack.c.l.b16 %v1978
        %v2097 = vunpack.c.h.b16 %v1978
        %v2098 = vunpack.c.l.b16 %v1979
        %v2099 = vunpack.c.h.b16 %v1979
        %v2100 = vunpack.c.l.b16 %v1980
        %v2101 = vunpack.c.h.b16 %v1980
        %v2102 = vunpack.c.l.b16 %v1981
        %v2103 = vunpack.c.h.b16 %v1981
        %v2104 = vunpack.c.l.b16 %v1982
        %v2105 = vunpack.c.h.b16 %v1982
        %v2106 = vunpack.c.l.b16 %v1983
        %v2107 = vunpack.c.h.b16 %v1983
        %v2108 = vunpack.c.l.b16 %v1984
        %v2109 = vunpack.c.h.b16 %v1984
        %v2110 = vunpack.c.l.b16 %v1985
        %v2111 = vunpack.c.h.b16 %v1985
        %v2112 = vunpack.c.l.b16 %v1986
        %v2113 = vunpack.c.h.b16 %v1986
        %v2114 = vunpack.c.l.b16 %v1987
        %v2115 = vunpack.c.h.b16 %v1987
        %v2116 = vunpack.c.l.b16 %v1988
        %v2117 = vunpack.c.h.b16 %v1988
        %v2118 = vunpack.c.l.b16 %v1989
        %v2119 = vunpack.c.h.b16 %v1989
        %v2120 = vunpack.c.l.b16 %v1990
        %v2121 = vunpack.c.h.b16 %v1990
        %v2122 = vunpack.c.l.b16 %v1991
        %v2123 = vunpack.c.h.b16 %v1991
        %v2124 = vunpack.c.l.b16 %v1992
        %v2125 = vunpack.c.h.b16 %v1992
        %v2126 = vunpack.c.l.b16 %v1993
        %v2127 = vunpack.c.h.b16 %v1993
        %v2128 = vunpack.c.l.b16 %v1994
        %v2129 = vunpack.c.h.b16 %v1994
        %v2130 = vunpack.c.l.b16 %v1995
        %v2131 = vunpack.c.h.b16 %v1995
        %v2132 = vunpack.c.l.b16 %v1996
        %v2133 = vunpack.c.h.b16 %v1996
        %v2134 = vunpack.c.l.b16 %v1997
        %v2135 = vunpack.c.h.b16 %v1997
        %v2136 = vunpack.c.l.b16 %v1998
        %v2137 = vunpack.c.h.b16 %v1998
        %v2138 = vunpack.c.l.b16 %v1999
        %v2139 = vunpack.c.h.b16 %v1999
        %v2140 = vunpack.c.l.b16 %v2000
        %v2141 = vunpack.c.h.b16 %v2000
        %v2142 = vunpack.c.l.b16 %v2001
        %v2143 = vunpack.c.h.b16 %v2001
        %v2144 = vunpack.c.l.b16 %v2002
        %v2145 = vunpack.c.h.b16 %v2002
        %v2146 = vunpack.c.l.b16 %v2003
        %v2147 = vunpack.c.h.b16 %v2003
        %v2148 = vunpack.c.l.b16 %v2004
        %v2149 = vunpack.c.h.b16 %v2004
        %v2150 = vunpack.c.l.b16 %v2005
        %v2151 = vunpack.c.h.b16 %v2005
        %v2152 = vunpack.c.l.b16 %v2006
        %v2153 = vunpack.c.h.b16 %v2006
        %v2154 = vunpack.c.l.b16 %v2007
        %v2155 = vunpack.c.h.b16 %v2007
        %v2156 = vunpack.c.l.b16 %v2008
        %v2157 = vunpack.c.h.b16 %v2008
        %v2158 = vunpack.c.l.b16 %v2009
        %v2159 = vunpack.c.h.b16 %v2009
        %v2160 = vunpack.c.l.b16 %v2010
        %v2161 = vunpack.c.h.b16 %v2010
        %v2162 = vunpack.c.l.b16 %v2011
        %v2163 = vunpack.c.h.b16 %v2011
        %v2164 = vunpack.c.l.b16 %v2012
        %v2165 = vunpack.c.h.b16 %v2012
        %v2166 = vunpack.c.l.b16 %v2013
        %v2167 = vunpack.c.h.b16 %v2013
        %v2168 = vunpack.c.l.b16 %v2014
        %v2169 = vunpack.c.h.b16 %v2014
        %v2170 = vunpack.c.l.b16 %v2015
        %v2171 = vunpack.c.h.b16 %v2015
        %v2172 = vunpack.c.l.b16 %v2016
        %v2173 = vunpack.c.h.b16 %v2016
        %v2174 = vunpack.c.l.b16 %v2017
        %v2175 = vunpack.c.h.b16 %v2017
        %v2176 = vunpack.c.l.b16 %v2018
        %v2177 = vunpack.c.h.b16 %v2018
        %v2178 = vpack.c.b16 %v2084, %v2082
        %v2179 = vpack.c.b16 %v2085, %v2083
        %v2180 = vpack.c.b16 %v2088, %v2086
        %v2181 = vpack.c.b16 %v2089, %v2087
        %v2182 = vpack.c.b16 %v2092, %v2090
        %v2183 = vpack.c.b16 %v2093, %v2091
        %v2184 = vpack.c.b16 %v2096, %v2094
        %v2185 = vpack.c.b16 %v2097, %v2095
        %v2186 = vpack.c.b16 %v2100, %v2098
        %v2187 = vpack.c.b16 %v2101, %v2099
        %v2188 = vpack.c.b16 %v2104, %v2102
        %v2189 = vpack.c.b16 %v2105, %v2103
        %v2190 = vpack.c.b16 %v2108, %v2106
        %v2191 = vpack.c.b16 %v2109, %v2107
        %v2192 = vpack.c.b16 %v2112, %v2110
        %v2193 = vpack.c.b16 %v2113, %v2111
        %v2194 = vpack.c.b16 %v2116, %v2114
        %v2195 = vpack.c.b16 %v2117, %v2115
        %v2196 = vpack.c.b16 %v2120, %v2118
        %v2197 = vpack.c.b16 %v2121, %v2119
        %v2198 = vpack.c.b16 %v2124, %v2122
        %v2199 = vpack.c.b16 %v2125, %v2123
        %v2200 = vpack.c.b16 %v2128, %v2126
        %v2201 = vpack.c.b16 %v2129, %v2127
        %v2202 = vpack.c.b16 %v2132, %v2130
        %v2203 = vpack.c.b16 %v2133, %v2131
        %v2204 = vpack.c.b16 %v2136, %v2134
        %v2205 = vpack.c.b16 %v2137, %v2135
        %v2206 = vpack.c.b16 %v2140, %v2138
        %v2207 = vpack.c.b16 %v2141, %v2139
        %v2208 = vpack.c.b16 %v2144, %v2142
        %v2209 = vpack.c.b16 %v2145, %v2143
        %v2210 = vpack.c.b16 %v2148, %v2146
        %v2211 = vpack.c.b16 %v2149, %v2147
        %v2212 = vpack.c.b16 %v2152, %v2150
        %v2213 = vpack.c.b16 %v2153, %v2151
        %v2214 = vpack.c.b16 %v2156, %v2154
        %v2215 = vpack.c.b16 %v2157, %v2155
        %v2216 = vpack.c.b16 %v2160, %v2158
        %v2217 = vpack.c.b16 %v2161, %v2159
        %v2218 = vpack.c.b16 %v2164, %v2162
        %v2219 = vpack.c.b16 %v2165, %v2163
        %v2220 = vpack.c.b16 %v2168, %v2166
        %v2221 = vpack.c.b16 %v2169, %v2167
        %v2222 = vpack.c.b16 %v2172, %v2170
        %v2223 = vpack.c.b16 %v2173, %v2171
        %v2224 = vpack.c.b16 %v2176, %v2174
        %v2225 = vpack.c.b16 %v2177, %v2175
        %2274 = vmatprep.subr.bf16.mxu0 %v2179
        %2275 = vmatpush1.bf16.msra.mxu0 %v2178
        %2276 = vmatprep.subr.bf16.mxu0 %v2181
        %2277 = vmatpush1.bf16.msra.mxu0 %v2180
        %2278 = vmatprep.subr.bf16.mxu0 %v2183
        %2279 = vmatpush1.bf16.msra.mxu0 %v2182
        %2280 = vmatprep.subr.bf16.mxu0 %v2185
        %2281 = vmatpush1.bf16.msra.mxu0 %v2184
        %2282 = vmatprep.subr.bf16.mxu0 %v2187
        %2283 = vmatpush1.bf16.msra.mxu0 %v2186
        %2284 = vmatprep.subr.bf16.mxu0 %v2189
        %2285 = vmatpush1.bf16.msra.mxu0 %v2188
        %2286 = vmatprep.subr.bf16.mxu0 %v2191
        %2287 = vmatpush1.bf16.msra.mxu0 %v2190
        %2288 = vmatprep.subr.bf16.mxu0 %v2193
        %2289 = vmatpush1.bf16.msra.mxu0 %v2192
        %2290 = vmatprep.subr.bf16.mxu0 %v2195
        %2291 = vmatpush1.bf16.msra.mxu0 %v2194
        %2292 = vmatprep.subr.bf16.mxu0 %v2197
        %2293 = vmatpush1.bf16.msra.mxu0 %v2196
        %2294 = vmatprep.subr.bf16.mxu0 %v2199
        %2295 = vmatpush1.bf16.msra.mxu0 %v2198
        %2296 = vmatprep.subr.bf16.mxu0 %v2201
        %2297 = vmatpush1.bf16.msra.mxu0 %v2200
        %2298 = vmatprep.subr.bf16.mxu0 %v2203
        %2299 = vmatpush1.bf16.msra.mxu0 %v2202
        %2300 = vmatprep.subr.bf16.mxu0 %v2205
        %2301 = vmatpush1.bf16.msra.mxu0 %v2204
        %2302 = vmatprep.subr.bf16.mxu0 %v2207
        %2303 = vmatpush1.bf16.msra.mxu0 %v2206
        %2304 = vmatprep.subr.bf16.mxu0 %v2209
        %2305 = vmatpush1.bf16.msra.mxu0 %v2208
        %2306 = vmatprep.mubr.bf16.mxu0 %v2020
        %2307 = vmatmul.mubr.bf16.gmra.mrb[0].mxu0 %v2019
        %v2308 = vpop.f32.mrb[0].mxu0
        %v2309 = vadd.f32 %v2027, %v2308
        %v2310 = vpop.f32.mrb[0].mxu0
        %v2311 = vadd.f32 %v2031, %v2310
        %v2312 = vpop.f32.mrb[0].mxu0
        %v2313 = vpop.f32.mrb[0].mxu0
        %2314 = vdwg.mxu0
        %2315 = vmatprep.subr.bf16.mxu0 %v2211
        %2316 = vmatpush1.bf16.msra.mxu0 %v2210
        %2317 = vmatprep.subr.bf16.mxu0 %v2213
        %2318 = vmatpush1.bf16.msra.mxu0 %v2212
        %2319 = vmatprep.subr.bf16.mxu0 %v2215
        %2320 = vmatpush1.bf16.msra.mxu0 %v2214
        %2321 = vmatprep.subr.bf16.mxu0 %v2217
        %2322 = vmatpush1.bf16.msra.mxu0 %v2216
        %2323 = vmatprep.subr.bf16.mxu0 %v2219
        %2324 = vmatpush1.bf16.msra.mxu0 %v2218
        %2325 = vmatprep.subr.bf16.mxu0 %v2221
        %2326 = vmatpush1.bf16.msra.mxu0 %v2220
        %2327 = vmatprep.subr.bf16.mxu0 %v2223
        %2328 = vmatpush1.bf16.msra.mxu0 %v2222
        %2329 = vmatprep.subr.bf16.mxu0 %v2225
        %2330 = vmatpush1.bf16.msra.mxu0 %v2224
        %2331 = vmatprep.subr.bf16.mxu0 0
        %2332 = vmatpush1.bf16.msra.mxu0 0
        %2333 = vmatprep.subr.bf16.mxu0 0
        %2334 = vmatpush1.bf16.msra.mxu0 0
        %2335 = vmatprep.subr.bf16.mxu0 0
        %2336 = vmatpush1.bf16.msra.mxu0 0
        %2337 = vmatprep.subr.bf16.mxu0 0
        %2338 = vmatpush1.bf16.msra.mxu0 0
        %2339 = vmatprep.subr.bf16.mxu0 0
        %2340 = vmatpush1.bf16.msra.mxu0 0
        %2341 = vmatprep.subr.bf16.mxu0 0
        %2342 = vmatpush1.bf16.msra.mxu0 0
        %2343 = vmatprep.subr.bf16.mxu0 0
        %2344 = vmatpush1.bf16.msra.mxu0 0
        %2345 = vmatprep.subr.bf16.mxu0 0
        %2346 = vmatpush1.bf16.msra.mxu0 0
        %2347 = vmatprep.mubr.bf16.mxu0 0
        %2348 = vmatmul.mubr.bf16.gmra.mrb[0].mxu0 %v2021
        %v2349 = vpop.f32.mrb[0].mxu0
        %v2350 = vadd.f32 %v2309, %v2349
        %v2351 = vpop.f32.mrb[0].mxu0
        %v2352 = vadd.f32 %v2311, %v2351
        %v2353 = vpop.f32.mrb[0].mxu0
        %v2354 = vpop.f32.mrb[0].mxu0
        %2355 = vdwg.mxu0
        %v2356 = vsub.f32 0.0, %v2352
        %v2357 = vmul.f32 %v2356, 1.442695
        %v2358 = vpow.pop %v2357
        %v2359 = vadd.f32 %v2358, 1.0
        %v2360 = vrcp.pop %v2359
        %v2361 = vmul.f32 %v2350, %v2360
        %v2362 = vld [vmem:[%s14] sm:$0xf]
        %v2363 = vld [vmem:[%s14 + $0x4] sm:$0xf]
        %v2364 = vld [vmem:[%s14 + $0x8] sm:$0xf]
        %v2365 = vld [vmem:[%s14 + $0xc] sm:$0xf]
        %v2366 = vld [vmem:[%s14 + $0x10] sm:$0xf]
        %v2367 = vld [vmem:[%s14 + $0x14] sm:$0xf]
        %v2368 = vld [vmem:[%s14 + $0x18] sm:$0xf]
        %v2369 = vld [vmem:[%s14 + $0x1c] sm:$0xf]
        %v2370 = vld [vmem:[%s14 + $0x20] sm:$0xf]
        %v2371 = vld [vmem:[%s14 + $0x24] sm:$0xf]
        %v2372 = vld [vmem:[%s14 + $0x28] sm:$0xf]
        %v2373 = vld [vmem:[%s14 + $0x2c] sm:$0xf]
        %v2374 = vld [vmem:[%s14 + $0x30] sm:$0xf]
        %v2375 = vld [vmem:[%s14 + $0x34] sm:$0xf]
        %v2376 = vld [vmem:[%s14 + $0x38] sm:$0xf]
        %v2377 = vld [vmem:[%s14 + $0x3c] sm:$0xf]
        %v2378 = vpack.c.bf16 %v2361, %v2361
        %v2379 = vld [vmem:[%s15] sm:$0x1]
        %v2381 = vlaneseq
        %v2382 = vshrl.u32 %v2381, 7
        %v2383 = vsub.s32 0, %v2382
        %v2384 = vrot.slane %v2379, %v2383
        %v2402 = vunpack.c.l.b16 %v2362
        %v2403 = vunpack.c.l.b16 %v2363
        %v2404 = vunpack.c.l.b16 %v2364
        %v2405 = vunpack.c.l.b16 %v2365
        %v2406 = vunpack.c.l.b16 %v2366
        %v2407 = vunpack.c.l.b16 %v2367
        %v2408 = vunpack.c.l.b16 %v2368
        %v2409 = vunpack.c.l.b16 %v2369
        %v2410 = vunpack.c.l.b16 %v2370
        %v2411 = vunpack.c.l.b16 %v2371
        %v2412 = vunpack.c.l.b16 %v2372
        %v2413 = vunpack.c.l.b16 %v2373
        %v2414 = vunpack.c.l.b16 %v2374
        %v2415 = vunpack.c.l.b16 %v2375
        %v2416 = vunpack.c.l.b16 %v2376
        %v2417 = vunpack.c.l.b16 %v2377
        %v2418 = vpack.c.b16 %v2403, %v2402
        %v2419 = vpack.c.b16 %v2405, %v2404
        %v2420 = vpack.c.b16 %v2407, %v2406
        %v2421 = vpack.c.b16 %v2409, %v2408
        %v2422 = vpack.c.b16 %v2411, %v2410
        %v2423 = vpack.c.b16 %v2413, %v2412
        %v2424 = vpack.c.b16 %v2415, %v2414
        %v2425 = vpack.c.b16 %v2417, %v2416
        %2434 = vmatprep.subr.bf16.mxu0 0
        %2435 = vmatpush1.bf16.msra.mxu0 %v2418
        %2436 = vmatprep.subr.bf16.mxu0 0
        %2437 = vmatpush1.bf16.msra.mxu0 %v2419
        %2438 = vmatprep.subr.bf16.mxu0 0
        %2439 = vmatpush1.bf16.msra.mxu0 %v2420
        %2440 = vmatprep.subr.bf16.mxu0 0
        %2441 = vmatpush1.bf16.msra.mxu0 %v2421
        %2442 = vmatprep.subr.bf16.mxu0 0
        %2443 = vmatpush1.bf16.msra.mxu0 %v2422
        %2444 = vmatprep.subr.bf16.mxu0 0
        %2445 = vmatpush1.bf16.msra.mxu0 %v2423
        %2446 = vmatprep.subr.bf16.mxu0 0
        %2447 = vmatpush1.bf16.msra.mxu0 %v2424
        %2448 = vmatprep.subr.bf16.mxu0 0
        %2449 = vmatpush1.bf16.msra.mxu0 %v2425
        %2450 = vmatprep.subr.bf16.mxu0 0
        %2451 = vmatpush1.bf16.msra.mxu0 0
        %2452 = vmatprep.subr.bf16.mxu0 0
        %2453 = vmatpush1.bf16.msra.mxu0 0
        %2454 = vmatprep.subr.bf16.mxu0 0
        %2455 = vmatpush1.bf16.msra.mxu0 0
        %2456 = vmatprep.subr.bf16.mxu0 0
        %2457 = vmatpush1.bf16.msra.mxu0 0
        %2458 = vmatprep.subr.bf16.mxu0 0
        %2459 = vmatpush1.bf16.msra.mxu0 0
        %2460 = vmatprep.subr.bf16.mxu0 0
        %2461 = vmatpush1.bf16.msra.mxu0 0
        %2462 = vmatprep.subr.bf16.mxu0 0
        %2463 = vmatpush1.bf16.msra.mxu0 0
        %2464 = vmatprep.subr.bf16.mxu0 0
        %2465 = vmatpush1.bf16.msra.mxu0 0
        %2466 = vmatprep.mubr.bf16.mxu0 0
        %2467 = vmatmul.mubr.bf16.gmra.mrb[0].mxu0 %v2378
        %v2468 = vpop.f32.mrb[0].mxu0
        %v2469 = vadd.f32 %v2384, %v2468
        %v2470 = vpop.f32.mrb[0].mxu0
        %v2471 = vpop.f32.mrb[0].mxu0
        %v2472 = vpop.f32.mrb[0].mxu0
        %2473 = vdwg.mxu0
        %v2474 = vadd.f32 %v2469, %v1846
        %v2475 = vmul.f32 %v2474, 0.70710677
        %v2476 = vpack.c.bf16 %v2475, %v2475
        %2477 = vmatprep.subr.bf16.mxu0 0
        %2478 = vmatpush1.bf16.xpose.msra.mxu0 %v1827
        %2479 = vmatprep.subr.bf16.mxu0 0
        %2480 = vmatpush1.bf16.xpose.msra.mxu0 0
        %2481 = vmatprep.subr.bf16.mxu0 0
        %2482 = vmatpush1.bf16.xpose.msra.mxu0 0
        %2483 = vmatprep.subr.bf16.mxu0 0
        %2484 = vmatpush1.bf16.xpose.msra.mxu0 0
        %2485 = vmatprep.subr.bf16.mxu0 0
        %2486 = vmatpush1.bf16.xpose.msra.mxu0 0
        %2487 = vmatprep.subr.bf16.mxu0 0
        %2488 = vmatpush1.bf16.xpose.msra.mxu0 0
        %2489 = vmatprep.subr.bf16.mxu0 0
        %2490 = vmatpush1.bf16.xpose.msra.mxu0 0
        %2491 = vmatprep.subr.bf16.mxu0 0
        %2492 = vmatpush1.bf16.xpose.msra.mxu0 0
        %2493 = vmatprep.subr.bf16.mxu0 0
        %2494 = vmatpush1.bf16.xpose.msra.mxu0 0
        %2495 = vmatprep.subr.bf16.mxu0 0
        %2496 = vmatpush1.bf16.xpose.msra.mxu0 0
        %2497 = vmatprep.subr.bf16.mxu0 0
        %2498 = vmatpush1.bf16.xpose.msra.mxu0 0
        %2499 = vmatprep.subr.bf16.mxu0 0
        %2500 = vmatpush1.bf16.xpose.msra.mxu0 0
        %2501 = vmatprep.subr.bf16.mxu0 0
        %2502 = vmatpush1.bf16.xpose.msra.mxu0 0
        %2503 = vmatprep.subr.bf16.mxu0 0
        %2504 = vmatpush1.bf16.xpose.msra.mxu0 0
        %2505 = vmatprep.subr.bf16.mxu0 0
        %2506 = vmatpush1.bf16.xpose.msra.mxu0 0
        %2507 = vmatprep.subr.bf16.mxu0 0
        %2508 = vmatpush1.bf16.xpose.msra.mxu0 0
        %2509 = vmatprep.mubr.bf16.mxu0 0
        %2510 = vmatmul.mubr.bf16.gmra.mrb[0].mxu0 %v2476
        %v2511 = vpop.f32.mrb[0].mxu0
        %v2512 = vadd.f32 0.0, %v2511
        %v2513 = vpop.f32.mrb[0].mxu0
        %v2514 = vpop.f32.mrb[0].mxu0
        %v2515 = vpop.f32.mrb[0].mxu0
        %2516 = vdwg.mxu0
        %vm2517 = vcmp.gt.f32.partialorder %v1829, 0.5
        %v2518 = vsel %vm2517, 1, 0
        %v2519 = vlaneseq
        %v2520 = vshrl.u32 %v2519, 7
        %v2521 = vsub.s32 0, %v2520
        %v2522 = vrot.slane %v2518, %v2521
        %vm2523 = vcmp.eq.s32.totalorder %v2522, 1
        %v2524 = vsel %vm2523, %v2512, -1e+30
        %vm2525 = vcmask 64512
        %v2526 = vsel %vm2525, %v2524, -inf
        %2527 = vmax.xlane.f32.xlu0 %v2526
        %v2528 = vpop.xlane.xlu0 %2527
        %v2529 = vsub.f32 %v2524, %v2528
        %v2530 = vmul.f32 %v2529, 1.442695
        %v2531 = vpow.pop %v2530
        %v2532 = vsel %vm2525, %v2531, 0.0
        %2533 = vadd.xlane.f32.xlu0 %v2532
        %v2534 = vpop.xlane.xlu0 %2533
        %v2535 = vrcp.pop %v2534
        %v2536 = vmul.f32 %v2531, %v2535
        %v2537 = vadd.f32 %v2536, 0.0
        %v2538 = vpack.c.bf16 %v2536, %v2536
        %v2540 = vsel %vm2525, %v2538, 0
        %vm2542 = vcmask 1043456
        %v2544 = vsel %vm2542, %v1828, 0
        %2546 = vmatprep.subr.bf16.mxu0 0
        %2547 = vmatpush1.bf16.msra.mxu0 %v2544
        %2548 = vmatprep.subr.bf16.mxu0 0
        %2549 = vmatpush1.bf16.msra.mxu0 0
        %2550 = vmatprep.subr.bf16.mxu0 0
        %2551 = vmatpush1.bf16.msra.mxu0 0
        %2552 = vmatprep.subr.bf16.mxu0 0
        %2553 = vmatpush1.bf16.msra.mxu0 0
        %2554 = vmatprep.subr.bf16.mxu0 0
        %2555 = vmatpush1.bf16.msra.mxu0 0
        %2556 = vmatprep.subr.bf16.mxu0 0
        %2557 = vmatpush1.bf16.msra.mxu0 0
        %2558 = vmatprep.subr.bf16.mxu0 0
        %2559 = vmatpush1.bf16.msra.mxu0 0
        %2560 = vmatprep.subr.bf16.mxu0 0
        %2561 = vmatpush1.bf16.msra.mxu0 0
        %2562 = vmatprep.subr.bf16.mxu0 0
        %2563 = vmatpush1.bf16.msra.mxu0 0
        %2564 = vmatprep.subr.bf16.mxu0 0
        %2565 = vmatpush1.bf16.msra.mxu0 0
        %2566 = vmatprep.subr.bf16.mxu0 0
        %2567 = vmatpush1.bf16.msra.mxu0 0
        %2568 = vmatprep.subr.bf16.mxu0 0
        %2569 = vmatpush1.bf16.msra.mxu0 0
        %2570 = vmatprep.subr.bf16.mxu0 0
        %2571 = vmatpush1.bf16.msra.mxu0 0
        %2572 = vmatprep.subr.bf16.mxu0 0
        %2573 = vmatpush1.bf16.msra.mxu0 0
        %2574 = vmatprep.subr.bf16.mxu0 0
        %2575 = vmatpush1.bf16.msra.mxu0 0
        %2576 = vmatprep.subr.bf16.mxu0 0
        %2577 = vmatpush1.bf16.msra.mxu0 0
        %2578 = vmatprep.mubr.bf16.mxu0 0
        %2579 = vmatmul.mubr.bf16.gmra.mrb[0].mxu0 %v2540
        %v2580 = vpop.f32.mrb[0].mxu0
        %v2581 = vadd.f32 0.0, %v2580
        %v2582 = vpop.f32.mrb[0].mxu0
        %v2583 = vpop.f32.mrb[0].mxu0
        %v2584 = vpop.f32.mrb[0].mxu0
        %2585 = vdwg.mxu0
        %v2586 = vstv %s1845
        %v2587 = vmul.f32 %v2581, %v2586
        %v2588 = vld [vmem:[%s16] sm:$0xf]
        %v2589 = vld [vmem:[%s16 + $0x4] sm:$0xf]
        %v2590 = vld [vmem:[%s16 + $0x8] sm:$0xf]
        %v2591 = vld [vmem:[%s16 + $0xc] sm:$0xf]
        %v2592 = vld [vmem:[%s16 + $0x10] sm:$0xf]
        %v2593 = vld [vmem:[%s16 + $0x14] sm:$0xf]
        %v2594 = vld [vmem:[%s16 + $0x18] sm:$0xf]
        %v2595 = vld [vmem:[%s16 + $0x1c] sm:$0xf]
        %v2596 = vld [vmem:[%s16 + $0x20] sm:$0xf]
        %v2597 = vld [vmem:[%s16 + $0x24] sm:$0xf]
        %v2598 = vld [vmem:[%s16 + $0x28] sm:$0xf]
        %v2599 = vld [vmem:[%s16 + $0x2c] sm:$0xf]
        %v2600 = vld [vmem:[%s16 + $0x30] sm:$0xf]
        %v2601 = vld [vmem:[%s16 + $0x34] sm:$0xf]
        %v2602 = vld [vmem:[%s16 + $0x38] sm:$0xf]
        %v2603 = vld [vmem:[%s16 + $0x3c] sm:$0xf]
        %v2604 = vpack.c.bf16 %v2587, %v2587
        %v2605 = vld [vmem:[#allocation12] sm:$0x1]
        %v2607 = vlaneseq
        %v2608 = vshrl.u32 %v2607, 7
        %v2609 = vsub.s32 0, %v2608
        %v2610 = vrot.slane %v2605, %v2609
        %v2628 = vunpack.c.l.b16 %v2588
        %v2629 = vunpack.c.l.b16 %v2589
        %v2630 = vunpack.c.l.b16 %v2590
        %v2631 = vunpack.c.l.b16 %v2591
        %v2632 = vunpack.c.l.b16 %v2592
        %v2633 = vunpack.c.l.b16 %v2593
        %v2634 = vunpack.c.l.b16 %v2594
        %v2635 = vunpack.c.l.b16 %v2595
        %v2636 = vunpack.c.l.b16 %v2596
        %v2637 = vunpack.c.l.b16 %v2597
        %v2638 = vunpack.c.l.b16 %v2598
        %v2639 = vunpack.c.l.b16 %v2599
        %v2640 = vunpack.c.l.b16 %v2600
        %v2641 = vunpack.c.l.b16 %v2601
        %v2642 = vunpack.c.l.b16 %v2602
        %v2643 = vunpack.c.l.b16 %v2603
        %v2644 = vpack.c.b16 %v2629, %v2628
        %v2645 = vpack.c.b16 %v2631, %v2630
        %v2646 = vpack.c.b16 %v2633, %v2632
        %v2647 = vpack.c.b16 %v2635, %v2634
        %v2648 = vpack.c.b16 %v2637, %v2636
        %v2649 = vpack.c.b16 %v2639, %v2638
        %v2650 = vpack.c.b16 %v2641, %v2640
        %v2651 = vpack.c.b16 %v2643, %v2642
        %2660 = vmatprep.subr.bf16.mxu0 0
        %2661 = vmatpush1.bf16.msra.mxu0 %v2644
        %2662 = vmatprep.subr.bf16.mxu0 0
        %2663 = vmatpush1.bf16.msra.mxu0 %v2645
        %2664 = vmatprep.subr.bf16.mxu0 0
        %2665 = vmatpush1.bf16.msra.mxu0 %v2646
        %2666 = vmatprep.subr.bf16.mxu0 0
        %2667 = vmatpush1.bf16.msra.mxu0 %v2647
        %2668 = vmatprep.subr.bf16.mxu0 0
        %2669 = vmatpush1.bf16.msra.mxu0 %v2648
        %2670 = vmatprep.subr.bf16.mxu0 0
        %2671 = vmatpush1.bf16.msra.mxu0 %v2649
        %2672 = vmatprep.subr.bf16.mxu0 0
        %2673 = vmatpush1.bf16.msra.mxu0 %v2650
        %2674 = vmatprep.subr.bf16.mxu0 0
        %2675 = vmatpush1.bf16.msra.mxu0 %v2651
        %2676 = vmatprep.subr.bf16.mxu0 0
        %2677 = vmatpush1.bf16.msra.mxu0 0
        %2678 = vmatprep.subr.bf16.mxu0 0
        %2679 = vmatpush1.bf16.msra.mxu0 0
        %2680 = vmatprep.subr.bf16.mxu0 0
        %2681 = vmatpush1.bf16.msra.mxu0 0
        %2682 = vmatprep.subr.bf16.mxu0 0
        %2683 = vmatpush1.bf16.msra.mxu0 0
        %2684 = vmatprep.subr.bf16.mxu0 0
        %2685 = vmatpush1.bf16.msra.mxu0 0
        %2686 = vmatprep.subr.bf16.mxu0 0
        %2687 = vmatpush1.bf16.msra.mxu0 0
        %2688 = vmatprep.subr.bf16.mxu0 0
        %2689 = vmatpush1.bf16.msra.mxu0 0
        %2690 = vmatprep.subr.bf16.mxu0 0
        %2691 = vmatpush1.bf16.msra.mxu0 0
        %2692 = vmatprep.mubr.bf16.mxu0 0
        %2693 = vmatmul.mubr.bf16.gmra.mrb[0].mxu0 %v2604
        %v2694 = vpop.f32.mrb[0].mxu0
        %v2695 = vadd.f32 %v2610, %v2694
        %v2696 = vpop.f32.mrb[0].mxu0
        %v2697 = vpop.f32.mrb[0].mxu0
        %v2698 = vpop.f32.mrb[0].mxu0
        %2699 = vdwg.mxu0
        %v2700 = vadd.f32 %v2695, %v2361
        %v2701 = vmul.f32 %v2700, 0.70710677
        %v2702 = vadd.f32 %v2701, %v1954
        %v2703 = vmul.f32 %v2702, 0.70710677
        %2704 = vst [vmem:[#allocation4 + $0x2] sm:$0xff] %v2703
        %v2705 = vld [vmem:[#allocation4] sm:$0xff]
        %2706 = vst [vmem:[#allocation5] sm:$0xff] %v2705
        %v2707 = vld [vmem:[#allocation4 + $0x1] sm:$0xff]
        %2708 = vst [vmem:[#allocation5 + $0x8] sm:$0xff] %v2707
        %v2709 = vld [vmem:[#allocation4 + $0x2] sm:$0xff]
        %2710 = vst [vmem:[#allocation5 + $0x10] sm:$0xff] %v2709
        %v2711 = vld [vmem:[#allocation5] sm:$0xff]
        %v2712 = vld [vmem:[#allocation5 + $0x8] sm:$0xff]
        %v2713 = vld [vmem:[#allocation5 + $0x10] sm:$0xff]
        %s2714 = scalar_lea.vmem [#allocation11], 384
        %v2715 = vld [vmem:[%s2714] sm:$0xff]
        %v2716 = vld [vmem:[%s2714 + $0x8] sm:$0xff]
        %v2717 = vld [vmem:[%s2714 + $0x10] sm:$0xff]
        %v2718 = vld [vmem:[%s2714 + $0x18] sm:$0xff]
        %v2719 = vld [vmem:[%s2714 + $0x20] sm:$0xff]
        %v2720 = vld [vmem:[%s2714 + $0x28] sm:$0xff]
        %v2721 = vld [vmem:[%s2714 + $0x30] sm:$0xff]
        %v2722 = vld [vmem:[%s2714 + $0x38] sm:$0xff]
        %v2723 = vld [vmem:[%s2714 + $0x40] sm:$0xff]
        %v2724 = vld [vmem:[%s2714 + $0x48] sm:$0xff]
        %v2725 = vld [vmem:[%s2714 + $0x50] sm:$0xff]
        %v2726 = vld [vmem:[%s2714 + $0x58] sm:$0xff]
        %v2727 = vld [vmem:[%s2714 + $0x60] sm:$0xff]
        %v2728 = vld [vmem:[%s2714 + $0x68] sm:$0xff]
        %v2729 = vld [vmem:[%s2714 + $0x70] sm:$0xff]
        %v2730 = vld [vmem:[%s2714 + $0x78] sm:$0xff]
        %v2731 = vld [vmem:[%s2714 + $0x80] sm:$0xff]
        %v2732 = vld [vmem:[%s2714 + $0x88] sm:$0xff]
        %v2733 = vld [vmem:[%s2714 + $0x90] sm:$0xff]
        %v2734 = vld [vmem:[%s2714 + $0x98] sm:$0xff]
        %v2735 = vld [vmem:[%s2714 + $0xa0] sm:$0xff]
        %v2736 = vld [vmem:[%s2714 + $0xa8] sm:$0xff]
        %v2737 = vld [vmem:[%s2714 + $0xb0] sm:$0xff]
        %v2738 = vld [vmem:[%s2714 + $0xb8] sm:$0xff]
        %v2739 = vld [vmem:[%s2714 + $0xc0] sm:$0xff]
        %v2740 = vld [vmem:[%s2714 + $0xc8] sm:$0xff]
        %v2741 = vld [vmem:[%s2714 + $0xd0] sm:$0xff]
        %v2742 = vld [vmem:[%s2714 + $0xd8] sm:$0xff]
        %v2743 = vld [vmem:[%s2714 + $0xe0] sm:$0xff]
        %v2744 = vld [vmem:[%s2714 + $0xe8] sm:$0xff]
        %v2745 = vld [vmem:[%s2714 + $0xf0] sm:$0xff]
        %v2746 = vld [vmem:[%s2714 + $0xf8] sm:$0xff]
        %v2747 = vld [vmem:[%s2714 + $0x100] sm:$0xff]
        %v2748 = vld [vmem:[%s2714 + $0x108] sm:$0xff]
        %v2749 = vld [vmem:[%s2714 + $0x110] sm:$0xff]
        %v2750 = vld [vmem:[%s2714 + $0x118] sm:$0xff]
        %v2751 = vld [vmem:[%s2714 + $0x120] sm:$0xff]
        %v2752 = vld [vmem:[%s2714 + $0x128] sm:$0xff]
        %v2753 = vld [vmem:[%s2714 + $0x130] sm:$0xff]
        %v2754 = vld [vmem:[%s2714 + $0x138] sm:$0xff]
        %v2755 = vld [vmem:[%s2714 + $0x140] sm:$0xff]
        %v2756 = vld [vmem:[%s2714 + $0x148] sm:$0xff]
        %v2757 = vld [vmem:[%s2714 + $0x150] sm:$0xff]
        %v2758 = vld [vmem:[%s2714 + $0x158] sm:$0xff]
        %v2759 = vld [vmem:[%s2714 + $0x160] sm:$0xff]
        %v2760 = vld [vmem:[%s2714 + $0x168] sm:$0xff]
        %v2761 = vld [vmem:[%s2714 + $0x170] sm:$0xff]
        %v2762 = vld [vmem:[%s2714 + $0x178] sm:$0xff]
        %v2763 = vpack.c.bf16 %v2711, %v2711
        %v2764 = vpack.c.bf16 %v2712, %v2712
        %v2765 = vpack.c.bf16 %v2713, %v2713
        %s2766 = scalar_lea.vmem %s13, 2
        %v2767 = vld [vmem:[%s2766] sm:$0x3]
        %v2769 = vlaneseq
        %v2770 = vshrl.u32 %v2769, 7
        %v2771 = vsub.s32 0, %v2770
        %v2772 = vrot.slane %v2767, %v2771
        %v2773 = vlaneseq
        %v2774 = vshrl.u32 %v2773, 7
        %v2775 = vsub.s32 1, %v2774
        %v2776 = vrot.slane %v2767, %v2775
        %v2827 = vunpack.c.l.b16 %v2715
        %v2828 = vunpack.c.h.b16 %v2715
        %v2829 = vunpack.c.l.b16 %v2716
        %v2830 = vunpack.c.h.b16 %v2716
        %v2831 = vunpack.c.l.b16 %v2717
        %v2832 = vunpack.c.h.b16 %v2717
        %v2833 = vunpack.c.l.b16 %v2718
        %v2834 = vunpack.c.h.b16 %v2718
        %v2835 = vunpack.c.l.b16 %v2719
        %v2836 = vunpack.c.h.b16 %v2719
        %v2837 = vunpack.c.l.b16 %v2720
        %v2838 = vunpack.c.h.b16 %v2720
        %v2839 = vunpack.c.l.b16 %v2721
        %v2840 = vunpack.c.h.b16 %v2721
        %v2841 = vunpack.c.l.b16 %v2722
        %v2842 = vunpack.c.h.b16 %v2722
        %v2843 = vunpack.c.l.b16 %v2723
        %v2844 = vunpack.c.h.b16 %v2723
        %v2845 = vunpack.c.l.b16 %v2724
        %v2846 = vunpack.c.h.b16 %v2724
        %v2847 = vunpack.c.l.b16 %v2725
        %v2848 = vunpack.c.h.b16 %v2725
        %v2849 = vunpack.c.l.b16 %v2726
        %v2850 = vunpack.c.h.b16 %v2726
        %v2851 = vunpack.c.l.b16 %v2727
        %v2852 = vunpack.c.h.b16 %v2727
        %v2853 = vunpack.c.l.b16 %v2728
        %v2854 = vunpack.c.h.b16 %v2728
        %v2855 = vunpack.c.l.b16 %v2729
        %v2856 = vunpack.c.h.b16 %v2729
        %v2857 = vunpack.c.l.b16 %v2730
        %v2858 = vunpack.c.h.b16 %v2730
        %v2859 = vunpack.c.l.b16 %v2731
        %v2860 = vunpack.c.h.b16 %v2731
        %v2861 = vunpack.c.l.b16 %v2732
        %v2862 = vunpack.c.h.b16 %v2732
        %v2863 = vunpack.c.l.b16 %v2733
        %v2864 = vunpack.c.h.b16 %v2733
        %v2865 = vunpack.c.l.b16 %v2734
        %v2866 = vunpack.c.h.b16 %v2734
        %v2867 = vunpack.c.l.b16 %v2735
        %v2868 = vunpack.c.h.b16 %v2735
        %v2869 = vunpack.c.l.b16 %v2736
        %v2870 = vunpack.c.h.b16 %v2736
        %v2871 = vunpack.c.l.b16 %v2737
        %v2872 = vunpack.c.h.b16 %v2737
        %v2873 = vunpack.c.l.b16 %v2738
        %v2874 = vunpack.c.h.b16 %v2738
        %v2875 = vunpack.c.l.b16 %v2739
        %v2876 = vunpack.c.h.b16 %v2739
        %v2877 = vunpack.c.l.b16 %v2740
        %v2878 = vunpack.c.h.b16 %v2740
        %v2879 = vunpack.c.l.b16 %v2741
        %v2880 = vunpack.c.h.b16 %v2741
        %v2881 = vunpack.c.l.b16 %v2742
        %v2882 = vunpack.c.h.b16 %v2742
        %v2883 = vunpack.c.l.b16 %v2743
        %v2884 = vunpack.c.h.b16 %v2743
        %v2885 = vunpack.c.l.b16 %v2744
        %v2886 = vunpack.c.h.b16 %v2744
        %v2887 = vunpack.c.l.b16 %v2745
        %v2888 = vunpack.c.h.b16 %v2745
        %v2889 = vunpack.c.l.b16 %v2746
        %v2890 = vunpack.c.h.b16 %v2746
        %v2891 = vunpack.c.l.b16 %v2747
        %v2892 = vunpack.c.h.b16 %v2747
        %v2893 = vunpack.c.l.b16 %v2748
        %v2894 = vunpack.c.h.b16 %v2748
        %v2895 = vunpack.c.l.b16 %v2749
        %v2896 = vunpack.c.h.b16 %v2749
        %v2897 = vunpack.c.l.b16 %v2750
        %v2898 = vunpack.c.h.b16 %v2750
        %v2899 = vunpack.c.l.b16 %v2751
        %v2900 = vunpack.c.h.b16 %v2751
        %v2901 = vunpack.c.l.b16 %v2752
        %v2902 = vunpack.c.h.b16 %v2752
        %v2903 = vunpack.c.l.b16 %v2753
        %v2904 = vunpack.c.h.b16 %v2753
        %v2905 = vunpack.c.l.b16 %v2754
        %v2906 = vunpack.c.h.b16 %v2754
        %v2907 = vunpack.c.l.b16 %v2755
        %v2908 = vunpack.c.h.b16 %v2755
        %v2909 = vunpack.c.l.b16 %v2756
        %v2910 = vunpack.c.h.b16 %v2756
        %v2911 = vunpack.c.l.b16 %v2757
        %v2912 = vunpack.c.h.b16 %v2757
        %v2913 = vunpack.c.l.b16 %v2758
        %v2914 = vunpack.c.h.b16 %v2758
        %v2915 = vunpack.c.l.b16 %v2759
        %v2916 = vunpack.c.h.b16 %v2759
        %v2917 = vunpack.c.l.b16 %v2760
        %v2918 = vunpack.c.h.b16 %v2760
        %v2919 = vunpack.c.l.b16 %v2761
        %v2920 = vunpack.c.h.b16 %v2761
        %v2921 = vunpack.c.l.b16 %v2762
        %v2922 = vunpack.c.h.b16 %v2762
        %v2923 = vpack.c.b16 %v2829, %v2827
        %v2924 = vpack.c.b16 %v2830, %v2828
        %v2925 = vpack.c.b16 %v2833, %v2831
        %v2926 = vpack.c.b16 %v2834, %v2832
        %v2927 = vpack.c.b16 %v2837, %v2835
        %v2928 = vpack.c.b16 %v2838, %v2836
        %v2929 = vpack.c.b16 %v2841, %v2839
        %v2930 = vpack.c.b16 %v2842, %v2840
        %v2931 = vpack.c.b16 %v2845, %v2843
        %v2932 = vpack.c.b16 %v2846, %v2844
        %v2933 = vpack.c.b16 %v2849, %v2847
        %v2934 = vpack.c.b16 %v2850, %v2848
        %v2935 = vpack.c.b16 %v2853, %v2851
        %v2936 = vpack.c.b16 %v2854, %v2852
        %v2937 = vpack.c.b16 %v2857, %v2855
        %v2938 = vpack.c.b16 %v2858, %v2856
        %v2939 = vpack.c.b16 %v2861, %v2859
        %v2940 = vpack.c.b16 %v2862, %v2860
        %v2941 = vpack.c.b16 %v2865, %v2863
        %v2942 = vpack.c.b16 %v2866, %v2864
        %v2943 = vpack.c.b16 %v2869, %v2867
        %v2944 = vpack.c.b16 %v2870, %v2868
        %v2945 = vpack.c.b16 %v2873, %v2871
        %v2946 = vpack.c.b16 %v2874, %v2872
        %v2947 = vpack.c.b16 %v2877, %v2875
        %v2948 = vpack.c.b16 %v2878, %v2876
        %v2949 = vpack.c.b16 %v2881, %v2879
        %v2950 = vpack.c.b16 %v2882, %v2880
        %v2951 = vpack.c.b16 %v2885, %v2883
        %v2952 = vpack.c.b16 %v2886, %v2884
        %v2953 = vpack.c.b16 %v2889, %v2887
        %v2954 = vpack.c.b16 %v2890, %v2888
        %v2955 = vpack.c.b16 %v2893, %v2891
        %v2956 = vpack.c.b16 %v2894, %v2892
        %v2957 = vpack.c.b16 %v2897, %v2895
        %v2958 = vpack.c.b16 %v2898, %v2896
        %v2959 = vpack.c.b16 %v2901, %v2899
        %v2960 = vpack.c.b16 %v2902, %v2900
        %v2961 = vpack.c.b16 %v2905, %v2903
        %v2962 = vpack.c.b16 %v2906, %v2904
        %v2963 = vpack.c.b16 %v2909, %v2907
        %v2964 = vpack.c.b16 %v2910, %v2908
        %v2965 = vpack.c.b16 %v2913, %v2911
        %v2966 = vpack.c.b16 %v2914, %v2912
        %v2967 = vpack.c.b16 %v2917, %v2915
        %v2968 = vpack.c.b16 %v2918, %v2916
        %v2969 = vpack.c.b16 %v2921, %v2919
        %v2970 = vpack.c.b16 %v2922, %v2920
        %3019 = vmatprep.subr.bf16.mxu0 %v2924
        %3020 = vmatpush1.bf16.msra.mxu0 %v2923
        %3021 = vmatprep.subr.bf16.mxu0 %v2926
        %3022 = vmatpush1.bf16.msra.mxu0 %v2925
        %3023 = vmatprep.subr.bf16.mxu0 %v2928
        %3024 = vmatpush1.bf16.msra.mxu0 %v2927
        %3025 = vmatprep.subr.bf16.mxu0 %v2930
        %3026 = vmatpush1.bf16.msra.mxu0 %v2929
        %3027 = vmatprep.subr.bf16.mxu0 %v2932
        %3028 = vmatpush1.bf16.msra.mxu0 %v2931
        %3029 = vmatprep.subr.bf16.mxu0 %v2934
        %3030 = vmatpush1.bf16.msra.mxu0 %v2933
        %3031 = vmatprep.subr.bf16.mxu0 %v2936
        %3032 = vmatpush1.bf16.msra.mxu0 %v2935
        %3033 = vmatprep.subr.bf16.mxu0 %v2938
        %3034 = vmatpush1.bf16.msra.mxu0 %v2937
        %3035 = vmatprep.subr.bf16.mxu0 %v2940
        %3036 = vmatpush1.bf16.msra.mxu0 %v2939
        %3037 = vmatprep.subr.bf16.mxu0 %v2942
        %3038 = vmatpush1.bf16.msra.mxu0 %v2941
        %3039 = vmatprep.subr.bf16.mxu0 %v2944
        %3040 = vmatpush1.bf16.msra.mxu0 %v2943
        %3041 = vmatprep.subr.bf16.mxu0 %v2946
        %3042 = vmatpush1.bf16.msra.mxu0 %v2945
        %3043 = vmatprep.subr.bf16.mxu0 %v2948
        %3044 = vmatpush1.bf16.msra.mxu0 %v2947
        %3045 = vmatprep.subr.bf16.mxu0 %v2950
        %3046 = vmatpush1.bf16.msra.mxu0 %v2949
        %3047 = vmatprep.subr.bf16.mxu0 %v2952
        %3048 = vmatpush1.bf16.msra.mxu0 %v2951
        %3049 = vmatprep.subr.bf16.mxu0 %v2954
        %3050 = vmatpush1.bf16.msra.mxu0 %v2953
        %3051 = vmatprep.mubr.bf16.mxu0 %v2764
        %3052 = vmatmul.mubr.bf16.gmra.mrb[0].mxu0 %v2763
        %v3053 = vpop.f32.mrb[0].mxu0
        %v3054 = vadd.f32 %v2772, %v3053
        %v3055 = vpop.f32.mrb[0].mxu0
        %v3056 = vadd.f32 %v2776, %v3055
        %v3057 = vpop.f32.mrb[0].mxu0
        %v3058 = vpop.f32.mrb[0].mxu0
        %3059 = vdwg.mxu0
        %3060 = vmatprep.subr.bf16.mxu0 %v2956
        %3061 = vmatpush1.bf16.msra.mxu0 %v2955
        %3062 = vmatprep.subr.bf16.mxu0 %v2958
        %3063 = vmatpush1.bf16.msra.mxu0 %v2957
        %3064 = vmatprep.subr.bf16.mxu0 %v2960
        %3065 = vmatpush1.bf16.msra.mxu0 %v2959
        %3066 = vmatprep.subr.bf16.mxu0 %v2962
        %3067 = vmatpush1.bf16.msra.mxu0 %v2961
        %3068 = vmatprep.subr.bf16.mxu0 %v2964
        %3069 = vmatpush1.bf16.msra.mxu0 %v2963
        %3070 = vmatprep.subr.bf16.mxu0 %v2966
        %3071 = vmatpush1.bf16.msra.mxu0 %v2965
        %3072 = vmatprep.subr.bf16.mxu0 %v2968
        %3073 = vmatpush1.bf16.msra.mxu0 %v2967
        %3074 = vmatprep.subr.bf16.mxu0 %v2970
        %3075 = vmatpush1.bf16.msra.mxu0 %v2969
        %3076 = vmatprep.subr.bf16.mxu0 0
        %3077 = vmatpush1.bf16.msra.mxu0 0
        %3078 = vmatprep.subr.bf16.mxu0 0
        %3079 = vmatpush1.bf16.msra.mxu0 0
        %3080 = vmatprep.subr.bf16.mxu0 0
        %3081 = vmatpush1.bf16.msra.mxu0 0
        %3082 = vmatprep.subr.bf16.mxu0 0
        %3083 = vmatpush1.bf16.msra.mxu0 0
        %3084 = vmatprep.subr.bf16.mxu0 0
        %3085 = vmatpush1.bf16.msra.mxu0 0
        %3086 = vmatprep.subr.bf16.mxu0 0
        %3087 = vmatpush1.bf16.msra.mxu0 0
        %3088 = vmatprep.subr.bf16.mxu0 0
        %3089 = vmatpush1.bf16.msra.mxu0 0
        %3090 = vmatprep.subr.bf16.mxu0 0
        %3091 = vmatpush1.bf16.msra.mxu0 0
        %3092 = vmatprep.mubr.bf16.mxu0 0
        %3093 = vmatmul.mubr.bf16.gmra.mrb[0].mxu0 %v2765
        %v3094 = vpop.f32.mrb[0].mxu0
        %v3095 = vadd.f32 %v3054, %v3094
        %v3096 = vpop.f32.mrb[0].mxu0
        %v3097 = vadd.f32 %v3056, %v3096
        %v3098 = vpop.f32.mrb[0].mxu0
        %v3099 = vpop.f32.mrb[0].mxu0
        %3100 = vdwg.mxu0
        %v3101 = vsub.f32 0.0, %v3097
        %v3102 = vmul.f32 %v3101, 1.442695
        %v3103 = vpow.pop %v3102
        %v3104 = vadd.f32 %v3103, 1.0
        %v3105 = vrcp.pop %v3104
        %v3106 = vmul.f32 %v3095, %v3105
        %s3107 = scalar_lea.vmem %s14, 64
        %v3108 = vld [vmem:[%s3107] sm:$0xf]
        %v3109 = vld [vmem:[%s3107 + $0x4] sm:$0xf]
        %v3110 = vld [vmem:[%s3107 + $0x8] sm:$0xf]
        %v3111 = vld [vmem:[%s3107 + $0xc] sm:$0xf]
        %v3112 = vld [vmem:[%s3107 + $0x10] sm:$0xf]
        %v3113 = vld [vmem:[%s3107 + $0x14] sm:$0xf]
        %v3114 = vld [vmem:[%s3107 + $0x18] sm:$0xf]
        %v3115 = vld [vmem:[%s3107 + $0x1c] sm:$0xf]
        %v3116 = vld [vmem:[%s3107 + $0x20] sm:$0xf]
        %v3117 = vld [vmem:[%s3107 + $0x24] sm:$0xf]
        %v3118 = vld [vmem:[%s3107 + $0x28] sm:$0xf]
        %v3119 = vld [vmem:[%s3107 + $0x2c] sm:$0xf]
        %v3120 = vld [vmem:[%s3107 + $0x30] sm:$0xf]
        %v3121 = vld [vmem:[%s3107 + $0x34] sm:$0xf]
        %v3122 = vld [vmem:[%s3107 + $0x38] sm:$0xf]
        %v3123 = vld [vmem:[%s3107 + $0x3c] sm:$0xf]
        %v3124 = vpack.c.bf16 %v3106, %v3106
        %s3125 = scalar_lea.vmem %s15, 1
        %v3126 = vld [vmem:[%s3125] sm:$0x1]
        %v3128 = vlaneseq
        %v3129 = vshrl.u32 %v3128, 7
        %v3130 = vsub.s32 0, %v3129
        %v3131 = vrot.slane %v3126, %v3130
        %v3149 = vunpack.c.l.b16 %v3108
        %v3150 = vunpack.c.l.b16 %v3109
        %v3151 = vunpack.c.l.b16 %v3110
        %v3152 = vunpack.c.l.b16 %v3111
        %v3153 = vunpack.c.l.b16 %v3112
        %v3154 = vunpack.c.l.b16 %v3113
        %v3155 = vunpack.c.l.b16 %v3114
        %v3156 = vunpack.c.l.b16 %v3115
        %v3157 = vunpack.c.l.b16 %v3116
        %v3158 = vunpack.c.l.b16 %v3117
        %v3159 = vunpack.c.l.b16 %v3118
        %v3160 = vunpack.c.l.b16 %v3119
        %v3161 = vunpack.c.l.b16 %v3120
        %v3162 = vunpack.c.l.b16 %v3121
        %v3163 = vunpack.c.l.b16 %v3122
        %v3164 = vunpack.c.l.b16 %v3123
        %v3165 = vpack.c.b16 %v3150, %v3149
        %v3166 = vpack.c.b16 %v3152, %v3151
        %v3167 = vpack.c.b16 %v3154, %v3153
        %v3168 = vpack.c.b16 %v3156, %v3155
        %v3169 = vpack.c.b16 %v3158, %v3157
        %v3170 = vpack.c.b16 %v3160, %v3159
        %v3171 = vpack.c.b16 %v3162, %v3161
        %v3172 = vpack.c.b16 %v3164, %v3163
        %3181 = vmatprep.subr.bf16.mxu0 0
        %3182 = vmatpush1.bf16.msra.mxu0 %v3165
        %3183 = vmatprep.subr.bf16.mxu0 0
        %3184 = vmatpush1.bf16.msra.mxu0 %v3166
        %3185 = vmatprep.subr.bf16.mxu0 0
        %3186 = vmatpush1.bf16.msra.mxu0 %v3167
        %3187 = vmatprep.subr.bf16.mxu0 0
        %3188 = vmatpush1.bf16.msra.mxu0 %v3168
        %3189 = vmatprep.subr.bf16.mxu0 0
        %3190 = vmatpush1.bf16.msra.mxu0 %v3169
        %3191 = vmatprep.subr.bf16.mxu0 0
        %3192 = vmatpush1.bf16.msra.mxu0 %v3170
        %3193 = vmatprep.subr.bf16.mxu0 0
        %3194 = vmatpush1.bf16.msra.mxu0 %v3171
        %3195 = vmatprep.subr.bf16.mxu0 0
        %3196 = vmatpush1.bf16.msra.mxu0 %v3172
        %3197 = vmatprep.subr.bf16.mxu0 0
        %3198 = vmatpush1.bf16.msra.mxu0 0
        %3199 = vmatprep.subr.bf16.mxu0 0
        %3200 = vmatpush1.bf16.msra.mxu0 0
        %3201 = vmatprep.subr.bf16.mxu0 0
        %3202 = vmatpush1.bf16.msra.mxu0 0
        %3203 = vmatprep.subr.bf16.mxu0 0
        %3204 = vmatpush1.bf16.msra.mxu0 0
        %3205 = vmatprep.subr.bf16.mxu0 0
        %3206 = vmatpush1.bf16.msra.mxu0 0
        %3207 = vmatprep.subr.bf16.mxu0 0
        %3208 = vmatpush1.bf16.msra.mxu0 0
        %3209 = vmatprep.subr.bf16.mxu0 0
        %3210 = vmatpush1.bf16.msra.mxu0 0
        %3211 = vmatprep.subr.bf16.mxu0 0
        %3212 = vmatpush1.bf16.msra.mxu0 0
        %3213 = vmatprep.mubr.bf16.mxu0 0
        %3214 = vmatmul.mubr.bf16.gmra.mrb[0].mxu0 %v3124
        %v3215 = vpop.f32.mrb[0].mxu0
        %v3216 = vadd.f32 %v3131, %v3215
        %v3217 = vpop.f32.mrb[0].mxu0
        %v3218 = vpop.f32.mrb[0].mxu0
        %v3219 = vpop.f32.mrb[0].mxu0
        %3220 = vdwg.mxu0
        %v3221 = vadd.f32 %v3216, %v1846
        %v3222 = vmul.f32 %v3221, 0.70710677
        %v3223 = vpack.c.bf16 %v3222, %v3222
        %3224 = vmatprep.subr.bf16.mxu0 0
        %3225 = vmatpush1.bf16.xpose.msra.mxu0 %v1827
        %3226 = vmatprep.subr.bf16.mxu0 0
        %3227 = vmatpush1.bf16.xpose.msra.mxu0 0
        %3228 = vmatprep.subr.bf16.mxu0 0
        %3229 = vmatpush1.bf16.xpose.msra.mxu0 0
        %3230 = vmatprep.subr.bf16.mxu0 0
        %3231 = vmatpush1.bf16.xpose.msra.mxu0 0
        %3232 = vmatprep.subr.bf16.mxu0 0
        %3233 = vmatpush1.bf16.xpose.msra.mxu0 0
        %3234 = vmatprep.subr.bf16.mxu0 0
        %3235 = vmatpush1.bf16.xpose.msra.mxu0 0
        %3236 = vmatprep.subr.bf16.mxu0 0
        %3237 = vmatpush1.bf16.xpose.msra.mxu0 0
        %3238 = vmatprep.subr.bf16.mxu0 0
        %3239 = vmatpush1.bf16.xpose.msra.mxu0 0
        %3240 = vmatprep.subr.bf16.mxu0 0
        %3241 = vmatpush1.bf16.xpose.msra.mxu0 0
        %3242 = vmatprep.subr.bf16.mxu0 0
        %3243 = vmatpush1.bf16.xpose.msra.mxu0 0
        %3244 = vmatprep.subr.bf16.mxu0 0
        %3245 = vmatpush1.bf16.xpose.msra.mxu0 0
        %3246 = vmatprep.subr.bf16.mxu0 0
        %3247 = vmatpush1.bf16.xpose.msra.mxu0 0
        %3248 = vmatprep.subr.bf16.mxu0 0
        %3249 = vmatpush1.bf16.xpose.msra.mxu0 0
        %3250 = vmatprep.subr.bf16.mxu0 0
        %3251 = vmatpush1.bf16.xpose.msra.mxu0 0
        %3252 = vmatprep.subr.bf16.mxu0 0
        %3253 = vmatpush1.bf16.xpose.msra.mxu0 0
        %3254 = vmatprep.subr.bf16.mxu0 0
        %3255 = vmatpush1.bf16.xpose.msra.mxu0 0
        %3256 = vmatprep.mubr.bf16.mxu0 0
        %3257 = vmatmul.mubr.bf16.gmra.mrb[0].mxu0 %v3223
        %v3258 = vpop.f32.mrb[0].mxu0
        %v3259 = vadd.f32 0.0, %v3258
        %v3260 = vpop.f32.mrb[0].mxu0
        %v3261 = vpop.f32.mrb[0].mxu0
        %v3262 = vpop.f32.mrb[0].mxu0
        %3263 = vdwg.mxu0
        %v3264 = vsel %vm2523, %v3259, -1e+30
        %v3265 = vsel %vm2525, %v3264, -inf
        %3266 = vmax.xlane.f32.xlu0 %v3265
        %v3267 = vpop.xlane.xlu0 %3266
        %v3268 = vsub.f32 %v3264, %v3267
        %v3269 = vmul.f32 %v3268, 1.442695
        %v3270 = vpow.pop %v3269
        %v3271 = vsel %vm2525, %v3270, 0.0
        %3272 = vadd.xlane.f32.xlu0 %v3271
        %v3273 = vpop.xlane.xlu0 %3272
        %v3274 = vrcp.pop %v3273
        %v3275 = vmul.f32 %v3270, %v3274
        %v3276 = vadd.f32 %v2537, %v3275
        %v3277 = vpack.c.bf16 %v3275, %v3275
        %v3279 = vsel %vm2525, %v3277, 0
        %3281 = vmatprep.subr.bf16.mxu0 0
        %3282 = vmatpush1.bf16.msra.mxu0 %v2544
        %3283 = vmatprep.subr.bf16.mxu0 0
        %3284 = vmatpush1.bf16.msra.mxu0 0
        %3285 = vmatprep.subr.bf16.mxu0 0
        %3286 = vmatpush1.bf16.msra.mxu0 0
        %3287 = vmatprep.subr.bf16.mxu0 0
        %3288 = vmatpush1.bf16.msra.mxu0 0
        %3289 = vmatprep.subr.bf16.mxu0 0
        %3290 = vmatpush1.bf16.msra.mxu0 0
        %3291 = vmatprep.subr.bf16.mxu0 0
        %3292 = vmatpush1.bf16.msra.mxu0 0
        %3293 = vmatprep.subr.bf16.mxu0 0
        %3294 = vmatpush1.bf16.msra.mxu0 0
        %3295 = vmatprep.subr.bf16.mxu0 0
        %3296 = vmatpush1.bf16.msra.mxu0 0
        %3297 = vmatprep.subr.bf16.mxu0 0
        %3298 = vmatpush1.bf16.msra.mxu0 0
        %3299 = vmatprep.subr.bf16.mxu0 0
        %3300 = vmatpush1.bf16.msra.mxu0 0
        %3301 = vmatprep.subr.bf16.mxu0 0
        %3302 = vmatpush1.bf16.msra.mxu0 0
        %3303 = vmatprep.subr.bf16.mxu0 0
        %3304 = vmatpush1.bf16.msra.mxu0 0
        %3305 = vmatprep.subr.bf16.mxu0 0
        %3306 = vmatpush1.bf16.msra.mxu0 0
        %3307 = vmatprep.subr.bf16.mxu0 0
        %3308 = vmatpush1.bf16.msra.mxu0 0
        %3309 = vmatprep.subr.bf16.mxu0 0
        %3310 = vmatpush1.bf16.msra.mxu0 0
        %3311 = vmatprep.subr.bf16.mxu0 0
        %3312 = vmatpush1.bf16.msra.mxu0 0
        %3313 = vmatprep.mubr.bf16.mxu0 0
        %3314 = vmatmul.mubr.bf16.gmra.mrb[0].mxu0 %v3279
        %v3315 = vpop.f32.mrb[0].mxu0
        %v3316 = vadd.f32 0.0, %v3315
        %v3317 = vpop.f32.mrb[0].mxu0
        %v3318 = vpop.f32.mrb[0].mxu0
        %v3319 = vpop.f32.mrb[0].mxu0
        %3320 = vdwg.mxu0
        %v3321 = vmul.f32 %v3316, %v2586
        %s3322 = scalar_lea.vmem %s16, 64
        %v3323 = vld [vmem:[%s3322] sm:$0xf]
        %v3324 = vld [vmem:[%s3322 + $0x4] sm:$0xf]
        %v3325 = vld [vmem:[%s3322 + $0x8] sm:$0xf]
        %v3326 = vld [vmem:[%s3322 + $0xc] sm:$0xf]
        %v3327 = vld [vmem:[%s3322 + $0x10] sm:$0xf]
        %v3328 = vld [vmem:[%s3322 + $0x14] sm:$0xf]
        %v3329 = vld [vmem:[%s3322 + $0x18] sm:$0xf]
        %v3330 = vld [vmem:[%s3322 + $0x1c] sm:$0xf]
        %v3331 = vld [vmem:[%s3322 + $0x20] sm:$0xf]
        %v3332 = vld [vmem:[%s3322 + $0x24] sm:$0xf]
        %v3333 = vld [vmem:[%s3322 + $0x28] sm:$0xf]
        %v3334 = vld [vmem:[%s3322 + $0x2c] sm:$0xf]
        %v3335 = vld [vmem:[%s3322 + $0x30] sm:$0xf]
        %v3336 = vld [vmem:[%s3322 + $0x34] sm:$0xf]
        %v3337 = vld [vmem:[%s3322 + $0x38] sm:$0xf]
        %v3338 = vld [vmem:[%s3322 + $0x3c] sm:$0xf]
        %v3339 = vpack.c.bf16 %v3321, %v3321
        %s3340 = scalar_lea.vmem [#allocation12], 1
        %v3341 = vld [vmem:[%s3340] sm:$0x1]
        %v3343 = vlaneseq
        %v3344 = vshrl.u32 %v3343, 7
        %v3345 = vsub.s32 0, %v3344
        %v3346 = vrot.slane %v3341, %v3345
        %v3364 = vunpack.c.l.b16 %v3323
        %v3365 = vunpack.c.l.b16 %v3324
        %v3366 = vunpack.c.l.b16 %v3325
        %v3367 = vunpack.c.l.b16 %v3326
        %v3368 = vunpack.c.l.b16 %v3327
        %v3369 = vunpack.c.l.b16 %v3328
        %v3370 = vunpack.c.l.b16 %v3329
        %v3371 = vunpack.c.l.b16 %v3330
        %v3372 = vunpack.c.l.b16 %v3331
        %v3373 = vunpack.c.l.b16 %v3332
        %v3374 = vunpack.c.l.b16 %v3333
        %v3375 = vunpack.c.l.b16 %v3334
        %v3376 = vunpack.c.l.b16 %v3335
        %v3377 = vunpack.c.l.b16 %v3336
        %v3378 = vunpack.c.l.b16 %v3337
        %v3379 = vunpack.c.l.b16 %v3338
        %v3380 = vpack.c.b16 %v3365, %v3364
        %v3381 = vpack.c.b16 %v3367, %v3366
        %v3382 = vpack.c.b16 %v3369, %v3368
        %v3383 = vpack.c.b16 %v3371, %v3370
        %v3384 = vpack.c.b16 %v3373, %v3372
        %v3385 = vpack.c.b16 %v3375, %v3374
        %v3386 = vpack.c.b16 %v3377, %v3376
        %v3387 = vpack.c.b16 %v3379, %v3378
        %3396 = vmatprep.subr.bf16.mxu0 0
        %3397 = vmatpush1.bf16.msra.mxu0 %v3380
        %3398 = vmatprep.subr.bf16.mxu0 0
        %3399 = vmatpush1.bf16.msra.mxu0 %v3381
        %3400 = vmatprep.subr.bf16.mxu0 0
        %3401 = vmatpush1.bf16.msra.mxu0 %v3382
        %3402 = vmatprep.subr.bf16.mxu0 0
        %3403 = vmatpush1.bf16.msra.mxu0 %v3383
        %3404 = vmatprep.subr.bf16.mxu0 0
        %3405 = vmatpush1.bf16.msra.mxu0 %v3384
        %3406 = vmatprep.subr.bf16.mxu0 0
        %3407 = vmatpush1.bf16.msra.mxu0 %v3385
        %3408 = vmatprep.subr.bf16.mxu0 0
        %3409 = vmatpush1.bf16.msra.mxu0 %v3386
        %3410 = vmatprep.subr.bf16.mxu0 0
        %3411 = vmatpush1.bf16.msra.mxu0 %v3387
        %3412 = vmatprep.subr.bf16.mxu0 0
        %3413 = vmatpush1.bf16.msra.mxu0 0
        %3414 = vmatprep.subr.bf16.mxu0 0
        %3415 = vmatpush1.bf16.msra.mxu0 0
        %3416 = vmatprep.subr.bf16.mxu0 0
        %3417 = vmatpush1.bf16.msra.mxu0 0
        %3418 = vmatprep.subr.bf16.mxu0 0
        %3419 = vmatpush1.bf16.msra.mxu0 0
        %3420 = vmatprep.subr.bf16.mxu0 0
        %3421 = vmatpush1.bf16.msra.mxu0 0
        %3422 = vmatprep.subr.bf16.mxu0 0
        %3423 = vmatpush1.bf16.msra.mxu0 0
        %3424 = vmatprep.subr.bf16.mxu0 0
        %3425 = vmatpush1.bf16.msra.mxu0 0
        %3426 = vmatprep.subr.bf16.mxu0 0
        %3427 = vmatpush1.bf16.msra.mxu0 0
        %3428 = vmatprep.mubr.bf16.mxu0 0
        %3429 = vmatmul.mubr.bf16.gmra.mrb[0].mxu0 %v3339
        %v3430 = vpop.f32.mrb[0].mxu0
        %v3431 = vadd.f32 %v3346, %v3430
        %v3432 = vpop.f32.mrb[0].mxu0
        %v3433 = vpop.f32.mrb[0].mxu0
        %v3434 = vpop.f32.mrb[0].mxu0
        %3435 = vdwg.mxu0
        %v3436 = vadd.f32 %v3431, %v3106
        %v3437 = vmul.f32 %v3436, 0.70710677
        %v3438 = vadd.f32 %v3437, %v2703
        %v3439 = vmul.f32 %v3438, 0.70710677
        %v3440 = vmul.f32 %v3276, 0.5
        %3441 = vst.msk [vmem:[%s768] sm:$0xff] %vm2525, %v3440
        %v3442 = vld [vmem:[#allocation14] sm:$0xf]
        %v3443 = vld [vmem:[#allocation14 + $0x4] sm:$0xf]
        %v3444 = vld [vmem:[#allocation14 + $0x8] sm:$0xf]
        %v3445 = vld [vmem:[#allocation14 + $0xc] sm:$0xf]
        %v3446 = vld [vmem:[#allocation14 + $0x10] sm:$0xf]
        %v3447 = vld [vmem:[#allocation14 + $0x14] sm:$0xf]
        %v3448 = vld [vmem:[#allocation14 + $0x18] sm:$0xf]
        %v3449 = vld [vmem:[#allocation14 + $0x1c] sm:$0xf]
        %v3450 = vld [vmem:[#allocation14 + $0x20] sm:$0xf]
        %v3451 = vld [vmem:[#allocation14 + $0x24] sm:$0xf]
        %v3452 = vld [vmem:[#allocation14 + $0x28] sm:$0xf]
        %v3453 = vld [vmem:[#allocation14 + $0x2c] sm:$0xf]
        %v3454 = vld [vmem:[#allocation14 + $0x30] sm:$0xf]
        %v3455 = vld [vmem:[#allocation14 + $0x34] sm:$0xf]
        %v3456 = vld [vmem:[#allocation14 + $0x38] sm:$0xf]
        %v3457 = vld [vmem:[#allocation14 + $0x3c] sm:$0xf]
        %v3458 = vpack.c.bf16 %v3439, %v3439
        %v3459 = vld [vmem:[%s19] sm:$0x1]
        %v3461 = vlaneseq
        %v3462 = vshrl.u32 %v3461, 7
        %v3463 = vsub.s32 0, %v3462
        %v3464 = vrot.slane %v3459, %v3463
        %v3482 = vunpack.c.l.b16 %v3442
        %v3483 = vunpack.c.l.b16 %v3443
        %v3484 = vunpack.c.l.b16 %v3444
        %v3485 = vunpack.c.l.b16 %v3445
        %v3486 = vunpack.c.l.b16 %v3446
        %v3487 = vunpack.c.l.b16 %v3447
        %v3488 = vunpack.c.l.b16 %v3448
        %v3489 = vunpack.c.l.b16 %v3449
        %v3490 = vunpack.c.l.b16 %v3450
        %v3491 = vunpack.c.l.b16 %v3451
        %v3492 = vunpack.c.l.b16 %v3452
        %v3493 = vunpack.c.l.b16 %v3453
        %v3494 = vunpack.c.l.b16 %v3454
        %v3495 = vunpack.c.l.b16 %v3455
        %v3496 = vunpack.c.l.b16 %v3456
        %v3497 = vunpack.c.l.b16 %v3457
        %v3498 = vpack.c.b16 %v3483, %v3482
        %v3499 = vpack.c.b16 %v3485, %v3484
        %v3500 = vpack.c.b16 %v3487, %v3486
        %v3501 = vpack.c.b16 %v3489, %v3488
        %v3502 = vpack.c.b16 %v3491, %v3490
        %v3503 = vpack.c.b16 %v3493, %v3492
        %v3504 = vpack.c.b16 %v3495, %v3494
        %v3505 = vpack.c.b16 %v3497, %v3496
        %3514 = vmatprep.subr.bf16.mxu0 0
        %3515 = vmatpush1.bf16.msra.mxu0 %v3498
        %3516 = vmatprep.subr.bf16.mxu0 0
        %3517 = vmatpush1.bf16.msra.mxu0 %v3499
        %3518 = vmatprep.subr.bf16.mxu0 0
        %3519 = vmatpush1.bf16.msra.mxu0 %v3500
        %3520 = vmatprep.subr.bf16.mxu0 0
        %3521 = vmatpush1.bf16.msra.mxu0 %v3501
        %3522 = vmatprep.subr.bf16.mxu0 0
        %3523 = vmatpush1.bf16.msra.mxu0 %v3502
        %3524 = vmatprep.subr.bf16.mxu0 0
        %3525 = vmatpush1.bf16.msra.mxu0 %v3503
        %3526 = vmatprep.subr.bf16.mxu0 0
        %3527 = vmatpush1.bf16.msra.mxu0 %v3504
        %3528 = vmatprep.subr.bf16.mxu0 0
        %3529 = vmatpush1.bf16.msra.mxu0 %v3505
        %3530 = vmatprep.subr.bf16.mxu0 0
        %3531 = vmatpush1.bf16.msra.mxu0 0
        %3532 = vmatprep.subr.bf16.mxu0 0
        %3533 = vmatpush1.bf16.msra.mxu0 0
        %3534 = vmatprep.subr.bf16.mxu0 0
        %3535 = vmatpush1.bf16.msra.mxu0 0
        %3536 = vmatprep.subr.bf16.mxu0 0
        %3537 = vmatpush1.bf16.msra.mxu0 0
        %3538 = vmatprep.subr.bf16.mxu0 0
        %3539 = vmatpush1.bf16.msra.mxu0 0
        %3540 = vmatprep.subr.bf16.mxu0 0
        %3541 = vmatpush1.bf16.msra.mxu0 0
        %3542 = vmatprep.subr.bf16.mxu0 0
        %3543 = vmatpush1.bf16.msra.mxu0 0
        %3544 = vmatprep.subr.bf16.mxu0 0
        %3545 = vmatpush1.bf16.msra.mxu0 0
        %3546 = vmatprep.mubr.bf16.mxu0 0
        %3547 = vmatmul.mubr.bf16.gmra.mrb[0].mxu0 %v3458
        %v3548 = vpop.f32.mrb[0].mxu0
        %v3549 = vadd.f32 %v3464, %v3548
        %v3550 = vpop.f32.mrb[0].mxu0
        %v3551 = vpop.f32.mrb[0].mxu0
        %v3552 = vpop.f32.mrb[0].mxu0
        %3553 = vdwg.mxu0
        %3554 = vst [vmem:[%s761] sm:$0xff] %v3549
        %s3555 = sand.u32 %s490, 1
        %s3556 = scalar_lea.sflag [#allocation8], %s3555
        %s3557 = sand.u32 %s490, 1
        %s3558 = smul.addr %s3557, 8
        %s3559 = scalar_lea.vmem [#allocation15], %s3558
        %s3560 = sand.u32 %s516, 1
        %s3561 = scalar_lea.sflag [#allocation17], %s3560
        %s3562 = sand.u32 %s516, 1
        %s3563 = smul.addr %s3562, 8
        %s3564 = scalar_lea.vmem [#allocation16], %s3563
        // Predicated region
        $region121: #{fconv_forward.1} parent=99 // pred_check
          %p3565 = pneg %p500
        $region122: #{fconv_forward.1} parent=99 // pred_check_branch
          %3567 = sbr.rel (%p3565) target = $region124
        $region123: #{fconv_forward.1} parent=99 // pred_region
          %s3569 = ssub.s32 128, 128
          %3570 = vsyncadd %s3556, %s3569
          %s3571 = smul.addr %s42, 128
          %s3572 = scalar_lea.hbm %s20, %s3571
          %s3574 = sshll.u32 %s3559, 4
          %s3575 = int_to_ptr.vmem [resolvable:$true] %s3574
          %3577 = dma.vmem_to_hbm [thread:$0]  %s3575, 128, %s3572, %s3556
        $region124: #{fconv_forward.1} parent=99 // pred_fallthru
          _
        // Predicated region
        $region125: #{fconv_forward.1} parent=99 // pred_check
          %p3578 = pneg %p526
        $region126: #{fconv_forward.1} parent=99 // pred_check_branch
          %3580 = sbr.rel (%p3578) target = $region128
        $region127: #{fconv_forward.1} parent=99 // pred_region
          %s3582 = ssub.s32 128, 128
          %3583 = vsyncadd %s3561, %s3582
          %s3584 = smul.addr %s42, 128
          %s3585 = scalar_lea.hbm %s21, %s3584
          %s3587 = sshll.u32 %s3564, 4
          %s3588 = int_to_ptr.vmem [resolvable:$true] %s3587
          %3590 = dma.vmem_to_hbm [thread:$0]  %s3588, 128, %s3585, %s3561
        $region128: #{fconv_forward.1} parent=99 // pred_fallthru
          _
      $region100: #{fconv_forward.1} parent=5 // pred_fallthru
        _
      %p3591 = scmp.le.s32.totalorder 2, %s37
      // Predicated region
      $region129: #{fconv_forward.1} parent=5 // pred_check
        %p3592 = pneg %p3591
      $region130: #{fconv_forward.1} parent=5 // pred_check_branch
        %3594 = sbr.rel (%p3592) target = $region132
      $region131: #{fconv_forward.1} parent=5 // pred_region
        %s3595 = ssub.s32 %s37, 2
        // Predicated region
        $region133: #{fconv_forward.1} parent=131 // pred_check
          %p3596 = pneg %p506
        $region134: #{fconv_forward.1} parent=131 // pred_check_branch
          %3598 = sbr.rel (%p3596) target = $region136
        $region135: #{fconv_forward.1} parent=131 // pred_region
          %s3599 = sand.u32 %s491, 1
          %s3600 = scalar_lea.sflag [#allocation8], %s3599
          %s3601 = sand.u32 %s491, 1
          %s3602 = smul.addr %s3601, 8
          %s3603 = scalar_lea.vmem [#allocation15], %s3602
          %3604 = dma.done %s3600, 128
        $region136: #{fconv_forward.1} parent=131 // pred_fallthru
          _
        // Predicated region
        $region137: #{fconv_forward.1} parent=131 // pred_check
          %p3605 = pneg %p532
        $region138: #{fconv_forward.1} parent=131 // pred_check_branch
          %3607 = sbr.rel (%p3605) target = $region140
        $region139: #{fconv_forward.1} parent=131 // pred_region
          %s3608 = sand.u32 %s517, 1
          %s3609 = scalar_lea.sflag [#allocation17], %s3608
          %s3610 = sand.u32 %s517, 1
          %s3611 = smul.addr %s3610, 8
          %s3612 = scalar_lea.vmem [#allocation16], %s3611
          %3613 = dma.done %s3609, 128
        $region140: #{fconv_forward.1} parent=131 // pred_fallthru
          _
      $region132: #{fconv_forward.1} parent=5 // pred_fallthru
        _
    $region6: #{fconv_forward.1} parent=1 // loop_footer
      %s41 = sadd.s32 1, %s37
    $region7: #{fconv_forward.1} parent=1 // loop_footer_branch
      %36 = sbr.rel target = $region3
    $region8: #{fconv_forward.1} parent=1 // loop_exit
      _
    %3614 = vsyncpa [#allocation7], 1
    %s3615 = scalar_lea.sflag [#allocation7], 1
    %3616 = vsyncpa %s3615, 1
    %3617 = vsyncpa [#allocation10], 1
    %3618 = vsyncpa [#allocation13], 1
    %3619 = vsyncpa [#allocation8], 1
    %s3620 = scalar_lea.sflag [#allocation8], 1
    %3621 = vsyncpa %s3620, 1
    %3622 = vsyncpa [#allocation17], 1
    %s3623 = scalar_lea.sflag [#allocation17], 1
    %3624 = vsyncpa %s3623, 1

</llo_original>
